<compile_context>
chip_gen: v7x
topology: tpu7x:2x2x1
jax: 0.10.0
libtpu: 0.0.40
codegen_flags: <defaults>
</compile_context>

<pallas_src>
import math

import jax
import jax.numpy as jnp
import numpy as np
from jax.experimental import pallas as pl
from jax.experimental.pallas import tpu as pltpu


def _layernorm(z, eps=1e-5):
    mu = jnp.mean(z, axis=-1, keepdims=True)
    var = jnp.mean((z - mu) ** 2, axis=-1, keepdims=True)
    return (z - mu) * jax.lax.rsqrt(var + eps)


def _encoder_layer_kernel(x_ref, wqkv_ref, wo_ref, w1t_hbm, w2t_hbm,
                          out_ref, attn_ref,
                          w1_buf, w2_buf, dma_sem):
    B, S, D = x_ref.shape
    H = attn_ref.shape[0]
    dk = wqkv_ref.shape[2]
    T = B * S
    HB = H * B

    # Kick off the FFN-weight DMAs (the bulk of this kernel's HBM bytes) so they
    # overlap with the QKV projection + attention compute below.
    cp1 = pltpu.make_async_copy(w1t_hbm, w1_buf, dma_sem.at[0])
    cp2 = pltpu.make_async_copy(w2t_hbm, w2_buf, dma_sem.at[1])
    cp1.start()
    cp2.start()

    x2d = x_ref[...].reshape(T, D)                      # (B*S, D)

    # ---- QKV projection, head-batched: (3H, T, D) @ (3H, D, dk) -> (3H, T, dk).
    # Heads live on the leading (batch) dim, so no lane slicing is ever needed.
    xb = jnp.broadcast_to(x2d[None, :, :], (3 * H, T, D))
    qkv = jnp.einsum('ntd,ndk->ntk', xb, wqkv_ref[...],
                     preferred_element_type=jnp.float32)
    q = qkv[0 * H:1 * H].reshape(HB, S, dk)   # Q slab pre-scaled by 1/sqrt(dk)
    k = qkv[1 * H:2 * H].reshape(HB, S, dk)
    v = qkv[2 * H:3 * H].reshape(HB, S, dk)

    # ---- scaled dot-product attention: ONE batched softmax over all (h, b) ----
    s = jnp.einsum('bqe,bke->bqk', q, k, preferred_element_type=jnp.float32)
    m = jnp.max(s, axis=-1, keepdims=True)
    e = jnp.exp(s - m)
    denom = jnp.sum(e, axis=-1, keepdims=True)
    r = pl.reciprocal(denom, approx=True)
    r = r * (2.0 - denom * r)                 # one Newton step -> full f32 precision
    a = e * r                                 # (H*B, S, S)

    # Single store of the attention probabilities (layout fixed up outside).
    attn_ref[...] = a.reshape(H, B, S, S).astype(attn_ref.dtype)

    ctx = jnp.einsum('bqk,bke->bqe', a, v, preferred_element_type=jnp.float32)
    ctx3 = ctx.reshape(H, T, dk)                         # (H, B*S, dk)

    # ---- output projection: head-batched matmul + sum over heads (== concat@W) ----
    proj_h = jnp.einsum('hte,hed->htd', ctx3, wo_ref[...],
                        preferred_element_type=jnp.float32)   # (H, T, D)
    proj = jnp.sum(proj_h, axis=0)                            # (T, D)
    y = _layernorm(proj + x2d)

    # ---- position-wise FFN (weights pre-transposed; DMA completes here) ----
    cp1.wait()
    cp2.wait()
    hdn = jnp.maximum(
        jnp.dot(y, w1_buf[...], preferred_element_type=jnp.float32), 0.0)
    f = jnp.dot(hdn, w2_buf[...], preferred_element_type=jnp.float32)
    out = _layernorm(f + y)

    out_ref[...] = out.reshape(B, S, D).astype(out_ref.dtype)


def _encoder_layer(x, w_q, w_k, w_v, w_fc, w1, w2):
    """x: (B, S, D) float32.  Returns (enc_outputs (B,S,D), attn (B,H,S,S))."""
    B, S, D = x.shape
    H, _, dk = w_q.shape
    Dff = w1.shape[0]
    scale = 1.0 / math.sqrt(dk)

    # Weight packing (runs under jit -> hoisted/fused by XLA, never in-kernel):
    #  * attention scale folded into the Q slab
    #  * heads stacked along the leading (batch) dim
    #  * fc / FFN weights pre-transposed so every matmul feeds the MXU directly
    wqkv = jnp.concatenate([w_q * scale, w_k, w_v], axis=0)     # (3H, D, dk)
    wo3 = w_fc.T.reshape(H, dk, D)                              # (H, dk, D)
    w1t = w1.T                                                  # (D, Dff)
    w2t = w2.T                                                  # (Dff, D)

    flops = 2 * (3 * H * (B * S) * D * dk          # QKV projection
                 + 2 * B * H * S * S * dk          # scores + context
                 + H * (B * S) * dk * D            # output projection
                 + 2 * (B * S) * D * Dff)          # FFN
    transcendentals = B * H * S * S + 4 * B * S    # exp + layernorm rsqrt
    bytes_accessed = 4 * (x.size + wqkv.size + wo3.size + w1t.size + w2t.size
                          + B * S * D + B * H * S * S)

    out, attn_hb = pl.pallas_call(
        _encoder_layer_kernel,
        out_shape=(
            jax.ShapeDtypeStruct((B, S, D), jnp.float32),
            jax.ShapeDtypeStruct((H, B, S, S), jnp.float32),
        ),
        grid_spec=pltpu.PrefetchScalarGridSpec(
            num_scalar_prefetch=0,
            grid=(1,),                       # whole layer in one invocation
            in_specs=[
                pl.BlockSpec((B, S, D), lambda i: (0, 0, 0)),
                pl.BlockSpec((3 * H, D, dk), lambda i: (0, 0, 0)),
                pl.BlockSpec((H, dk, D), lambda i: (0, 0, 0)),
                pl.BlockSpec(memory_space=pl.ANY),   # w1t: manual DMA, overlapped
                pl.BlockSpec(memory_space=pl.ANY),   # w2t: manual DMA, overlapped
            ],
            out_specs=[
                pl.BlockSpec((B, S, D), lambda i: (0, 0, 0)),
                pl.BlockSpec((H, B, S, S), lambda i: (0, 0, 0, 0)),
            ],
            scratch_shapes=[
                pltpu.VMEM((D, Dff), jnp.float32),
                pltpu.VMEM((Dff, D), jnp.float32),
                pltpu.SemaphoreType.DMA((2,)),
            ],
        ),
        compiler_params=pltpu.CompilerParams(
            dimension_semantics=("arbitrary",)),
        cost_estimate=pl.CostEstimate(flops=flops,
                                      transcendentals=transcendentals,
                                      bytes_accessed=bytes_accessed),
    )(x, wqkv, wo3, w1t, w2t)

    # (H,B,S,S) -> (B,H,S,S): tiny (2 KiB) layout fix handled by XLA outside the
    # kernel; keeps the in-kernel store un-transposed and single-shot.
    return out, jnp.transpose(attn_hb, (1, 0, 2, 3))


encoder_layer = jax.jit(_encoder_layer)


# ---------------- pure-JAX reference (sanity check) ----------------
def _reference(x, w_q, w_k, w_v, w_fc, w1, w2):
    B, S, D = x.shape
    H, _, dk = w_q.shape
    q = jnp.einsum('bsd,hdk->bhsk', x, w_q)
    k = jnp.einsum('bsd,hdk->bhsk', x, w_k)
    v = jnp.einsum('bsd,hdk->bhsk', x, w_v)
    scores = jnp.einsum('bhqe,bhke->bhqk', q, k) / np.sqrt(dk)
    attn = jax.nn.softmax(scores, axis=-1)
    ctx = jnp.einsum('bhqk,bhkd->bhqd', attn, v)
    ctx = jnp.transpose(ctx, (0, 2, 1, 3)).reshape(B, S, H * dk)
    out = ctx @ w_fc.T

    def ln(z, eps=1e-5):
        mu = jnp.mean(z, -1, keepdims=True)
        var = jnp.mean((z - mu) ** 2, -1, keepdims=True)
        return (z - mu) / jnp.sqrt(var + eps)

    y = ln(out + x)
    f = jnp.maximum(y @ w1.T, 0.0) @ w2.T
    return ln(f + y), attn


def _xavier_uniform(key, shape, gain=1.414):
    if len(shape) == 3:
        recep = shape[2]
        fan_in, fan_out = shape[1] * recep, shape[0] * recep
    else:
        fan_in, fan_out = shape[1], shape[0]
    bound = gain * math.sqrt(6.0 / (fan_in + fan_out))
    return jax.random.uniform(key, shape, jnp.float32, -bound, bound)


if __name__ == "__main__":
    B, S, D, H, Dff = 2, 8, 32, 4, 1024
    dk = D // H

    key = jax.random.PRNGKey(0)
    kx, kq, kk, kv, kfc, k1, k2 = jax.random.split(key, 7)

    x = jax.random.normal(kx, (B, S, D), jnp.float32)
    w_q = _xavier_uniform(kq, (H, D, dk))
    w_k = _xavier_uniform(kk, (H, D, dk))
    w_v = _xavier_uniform(kv, (H, D, dk))
    w_fc = _xavier_uniform(kfc, (D, H * dk), gain=1.0)
    w1 = _xavier_uniform(k1, (Dff, D), gain=1.0)
    w2 = _xavier_uniform(k2, (D, Dff), gain=1.0)

    enc_out, attn = encoder_layer(x, w_q, w_k, w_v, w_fc, w1, w2)
    jax.block_until_ready((enc_out, attn))

    ref_out, ref_attn = _reference(x, w_q, w_k, w_v, w_fc, w1, w2)
    np.testing.assert_allclose(np.asarray(enc_out), np.asarray(ref_out),
                               rtol=2e-4, atol=2e-4)
    np.testing.assert_allclose(np.asarray(attn), np.asarray(ref_attn),
                               rtol=2e-4, atol=2e-4)

    assert enc_out.shape == (B, S, D) and attn.shape == (B, H, S, S)
    print("KERNEL_OK")
</pallas_src>

<mosaic_0001>
module attributes {stable_mosaic.version = 11 : i64} {
  func.func @_encoder_layer_kernel(%arg0: i32, %arg1: memref<2x8x32xf32, #tpu.memory_space<vmem>>, %arg2: memref<12x32x8xf32, #tpu.memory_space<vmem>>, %arg3: memref<4x8x32xf32, #tpu.memory_space<vmem>>, %arg4: memref<32x1024xf32, #tpu.memory_space<any>>, %arg5: memref<1024x32xf32, #tpu.memory_space<any>>, %arg6: memref<2x8x32xf32, #tpu.memory_space<vmem>>, %arg7: memref<4x2x8x8xf32, #tpu.memory_space<vmem>>, %arg8: memref<32x1024xf32, #tpu.memory_space<vmem>>, %arg9: memref<1024x32xf32, #tpu.memory_space<vmem>>, %arg10: memref<2x!tpu.dma_semaphore, #tpu.memory_space<semaphore_mem>>) attributes {dimension_semantics = [#tpu.dimension_semantics<arbitrary>], iteration_bounds = array<i64: 1>, scalar_prefetch = 0 : i64, scratch_operands = 3 : i64, tpu.core_type = #tpu.core_type<tc>, window_params = [{pipeline_mode = #tpu.pipeline_mode<synchronous>, transform_indices = @transform_0, window_bounds = array<i64: 2, 8, 32>}, {pipeline_mode = #tpu.pipeline_mode<synchronous>, transform_indices = @transform_1, window_bounds = array<i64: 12, 32, 8>}, {pipeline_mode = #tpu.pipeline_mode<synchronous>, transform_indices = @transform_2, window_bounds = array<i64: 4, 8, 32>}, {}, {}, {pipeline_mode = #tpu.pipeline_mode<synchronous>, transform_indices = @transform_5, window_bounds = array<i64: 2, 8, 32>}, {pipeline_mode = #tpu.pipeline_mode<synchronous>, transform_indices = @transform_6, window_bounds = array<i64: 4, 2, 8, 8>}]} {
    %c0_i32 = arith.constant 0 : i32
    %0 = tpu.memref_slice %arg10[%c0_i32] : memref<2x!tpu.dma_semaphore, #tpu.memory_space<semaphore_mem>> -> memref<1x!tpu.dma_semaphore, #tpu.memory_space<semaphore_mem>>
    %1 = tpu.memref_squeeze %0 : memref<1x!tpu.dma_semaphore, #tpu.memory_space<semaphore_mem>> -> memref<!tpu.dma_semaphore, #tpu.memory_space<semaphore_mem>>
    tpu.enqueue_dma source(%arg4 : memref<32x1024xf32, #tpu.memory_space<any>>) target(%arg8 : memref<32x1024xf32, #tpu.memory_space<vmem>>) target_semaphore(%1 : memref<!tpu.dma_semaphore, #tpu.memory_space<semaphore_mem>>)
    %c1_i32 = arith.constant 1 : i32
    %2 = tpu.memref_slice %arg10[%c1_i32] : memref<2x!tpu.dma_semaphore, #tpu.memory_space<semaphore_mem>> -> memref<1x!tpu.dma_semaphore, #tpu.memory_space<semaphore_mem>>
    %3 = tpu.memref_squeeze %2 : memref<1x!tpu.dma_semaphore, #tpu.memory_space<semaphore_mem>> -> memref<!tpu.dma_semaphore, #tpu.memory_space<semaphore_mem>>
    tpu.enqueue_dma source(%arg5 : memref<1024x32xf32, #tpu.memory_space<any>>) target(%arg9 : memref<1024x32xf32, #tpu.memory_space<vmem>>) target_semaphore(%3 : memref<!tpu.dma_semaphore, #tpu.memory_space<semaphore_mem>>)
    %c0 = arith.constant 0 : index
    %c0_0 = arith.constant 0 : index
    %c0_1 = arith.constant 0 : index
    %4 = vector.load %arg1[%c0, %c0_0, %c0_1] : memref<2x8x32xf32, #tpu.memory_space<vmem>>, vector<2x8x32xf32>
    %5 = vector.shape_cast %4 : vector<2x8x32xf32> to vector<16x32xf32>
    %6 = vector.shape_cast %5 : vector<16x32xf32> to vector<1x16x32xf32>
    %7 = vector.shape_cast %6 : vector<1x16x32xf32> to vector<1x16x32xf32>
    %8 = vector.broadcast %7 : vector<1x16x32xf32> to vector<12x16x32xf32>
    %c0_2 = arith.constant 0 : index
    %c0_3 = arith.constant 0 : index
    %c0_4 = arith.constant 0 : index
    %9 = vector.load %arg2[%c0_2, %c0_3, %c0_4] : memref<12x32x8xf32, #tpu.memory_space<vmem>>, vector<12x32x8xf32>
    "tpu.trace_start"() <{level = 10 : i32, message = "ntd,ndk->ntk"}> : () -> ()
    %cst = arith.constant dense<0.000000e+00> : vector<12x16x8xf32>
    %10 = tpu.matmul %8, %9, %cst {dimension_numbers = #tpu.dot_dimension_numbers<[2], [1], [1], [2], [0, 0, 0, 1, 1, 2], [0], [0]>} : vector<12x16x32xf32>, vector<12x32x8xf32>, vector<12x16x8xf32> -> vector<12x16x8xf32>
    "tpu.trace_stop"() : () -> ()
    %11 = vector.extract_strided_slice %10 {offsets = [0, 0, 0], sizes = [4, 16, 8], strides = [1, 1, 1]} : vector<12x16x8xf32> to vector<4x16x8xf32>
    %12 = vector.shape_cast %11 : vector<4x16x8xf32> to vector<8x8x8xf32>
    %13 = vector.extract_strided_slice %10 {offsets = [4, 0, 0], sizes = [4, 16, 8], strides = [1, 1, 1]} : vector<12x16x8xf32> to vector<4x16x8xf32>
    %14 = vector.shape_cast %13 : vector<4x16x8xf32> to vector<8x8x8xf32>
    %15 = vector.extract_strided_slice %10 {offsets = [8, 0, 0], sizes = [4, 16, 8], strides = [1, 1, 1]} : vector<12x16x8xf32> to vector<4x16x8xf32>
    %16 = vector.shape_cast %15 : vector<4x16x8xf32> to vector<8x8x8xf32>
    "tpu.trace_start"() <{level = 10 : i32, message = "bqe,bke->bqk"}> : () -> ()
    %cst_5 = arith.constant dense<0.000000e+00> : vector<8x8x8xf32>
    %17 = tpu.matmul %12, %14, %cst_5 {dimension_numbers = #tpu.dot_dimension_numbers<[2], [2], [1], [1], [0, 0, 0, 1, 1, 1], [0], [0]>} : vector<8x8x8xf32>, vector<8x8x8xf32>, vector<8x8x8xf32> -> vector<8x8x8xf32>
    "tpu.trace_stop"() : () -> ()
    %cst_6 = arith.constant dense<0xFF800000> : vector<8x8xf32>
    %18 = vector.multi_reduction <maximumf>, %17, %cst_6 [2] : vector<8x8x8xf32> to vector<8x8xf32>
    %19 = vector.shape_cast %18 : vector<8x8xf32> to vector<8x8x1xf32>
    %20 = vector.broadcast %19 : vector<8x8x1xf32> to vector<8x8x8xf32>
    %21 = arith.subf %17, %20 : vector<8x8x8xf32>
    %22 = math.exp %21 : vector<8x8x8xf32>
    %cst_7 = arith.constant dense<0.000000e+00> : vector<8x8xf32>
    %23 = vector.multi_reduction <add>, %22, %cst_7 [2] : vector<8x8x8xf32> to vector<8x8xf32>
    %24 = vector.shape_cast %23 : vector<8x8xf32> to vector<8x8x1xf32>
    %25 = tpu.reciprocal %24 {approx = true} : vector<8x8x1xf32> -> vector<8x8x1xf32>
    %26 = arith.mulf %24, %25 : vector<8x8x1xf32>
    %cst_8 = arith.constant 2.000000e+00 : f32
    %27 = vector.broadcast %cst_8 : f32 to vector<8x8x1xf32>
    %28 = arith.subf %27, %26 : vector<8x8x1xf32>
    %29 = arith.mulf %25, %28 : vector<8x8x1xf32>
    %30 = vector.broadcast %29 : vector<8x8x1xf32> to vector<8x8x8xf32>
    %31 = arith.mulf %22, %30 : vector<8x8x8xf32>
    %32 = vector.shape_cast %31 : vector<8x8x8xf32> to vector<4x2x8x8xf32>
    %c0_9 = arith.constant 0 : index
    %c0_10 = arith.constant 0 : index
    %c0_11 = arith.constant 0 : index
    %c0_12 = arith.constant 0 : index
    %33 = vector.load %arg7[%c0_9, %c0_10, %c0_11, %c0_12] : memref<4x2x8x8xf32, #tpu.memory_space<vmem>>, vector<4x2x8x8xf32>
    tpu.vector_store %arg7[%c0_9, %c0_10, %c0_11, %c0_12], %32 {strides = array<i32>} : memref<4x2x8x8xf32, #tpu.memory_space<vmem>>, vector<4x2x8x8xf32>,
    "tpu.trace_start"() <{level = 10 : i32, message = "bqk,bke->bqe"}> : () -> ()
    %cst_13 = arith.constant dense<0.000000e+00> : vector<8x8x8xf32>
    %34 = tpu.matmul %31, %16, %cst_13 {dimension_numbers = #tpu.dot_dimension_numbers<[2], [1], [1], [2], [0, 0, 0, 1, 1, 2], [0], [0]>} : vector<8x8x8xf32>, vector<8x8x8xf32>, vector<8x8x8xf32> -> vector<8x8x8xf32>
    "tpu.trace_stop"() : () -> ()
    %35 = vector.shape_cast %34 : vector<8x8x8xf32> to vector<4x16x8xf32>
    %c0_14 = arith.constant 0 : index
    %c0_15 = arith.constant 0 : index
    %c0_16 = arith.constant 0 : index
    %36 = vector.load %arg3[%c0_14, %c0_15, %c0_16] : memref<4x8x32xf32, #tpu.memory_space<vmem>>, vector<4x8x32xf32>
    "tpu.trace_start"() <{level = 10 : i32, message = "hte,hed->htd"}> : () -> ()
    %cst_17 = arith.constant dense<0.000000e+00> : vector<4x16x32xf32>
    %37 = tpu.matmul %35, %36, %cst_17 {dimension_numbers = #tpu.dot_dimension_numbers<[2], [1], [1], [2], [0, 0, 0, 1, 1, 2], [0], [0]>} : vector<4x16x8xf32>, vector<4x8x32xf32>, vector<4x16x32xf32> -> vector<4x16x32xf32>
    "tpu.trace_stop"() : () -> ()
    %cst_18 = arith.constant dense<0.000000e+00> : vector<16x32xf32>
    %38 = vector.multi_reduction <add>, %37, %cst_18 [0] : vector<4x16x32xf32> to vector<16x32xf32>
    %39 = arith.addf %38, %5 : vector<16x32xf32>
    %cst_19 = arith.constant dense<0.000000e+00> : vector<16xf32>
    %40 = vector.multi_reduction <add>, %39, %cst_19 [1] : vector<16x32xf32> to vector<16xf32>
    %41 = vector.shape_cast %40 : vector<16xf32> to vector<16x1xf32>
    %cst_20 = arith.constant 3.200000e+01 : f32
    %42 = vector.broadcast %cst_20 : f32 to vector<16x1xf32>
    %43 = arith.divf %41, %42 : vector<16x1xf32>
    %44 = vector.broadcast %43 : vector<16x1xf32> to vector<16x32xf32>
    %45 = arith.subf %39, %44 : vector<16x32xf32>
    %46 = arith.mulf %45, %45 : vector<16x32xf32>
    %cst_21 = arith.constant dense<0.000000e+00> : vector<16xf32>
    %47 = vector.multi_reduction <add>, %46, %cst_21 [1] : vector<16x32xf32> to vector<16xf32>
    %48 = vector.shape_cast %47 : vector<16xf32> to vector<16x1xf32>
    %cst_22 = arith.constant 3.200000e+01 : f32
    %49 = vector.broadcast %cst_22 : f32 to vector<16x1xf32>
    %50 = arith.divf %48, %49 : vector<16x1xf32>
    %51 = vector.broadcast %43 : vector<16x1xf32> to vector<16x32xf32>
    %52 = arith.subf %39, %51 : vector<16x32xf32>
    %cst_23 = arith.constant 9.99999974E-6 : f32
    %53 = vector.broadcast %cst_23 : f32 to vector<16x1xf32>
    %54 = arith.addf %50, %53 : vector<16x1xf32>
    %55 = math.rsqrt %54 : vector<16x1xf32>
    %56 = vector.broadcast %55 : vector<16x1xf32> to vector<16x32xf32>
    %57 = arith.mulf %52, %56 : vector<16x32xf32>
    %c0_i32_24 = arith.constant 0 : i32
    %58 = tpu.memref_slice %arg10[%c0_i32_24] : memref<2x!tpu.dma_semaphore, #tpu.memory_space<semaphore_mem>> -> memref<1x!tpu.dma_semaphore, #tpu.memory_space<semaphore_mem>>
    %59 = tpu.memref_squeeze %58 : memref<1x!tpu.dma_semaphore, #tpu.memory_space<semaphore_mem>> -> memref<!tpu.dma_semaphore, #tpu.memory_space<semaphore_mem>>
    tpu.wait_dma2 semaphore(%59 : memref<!tpu.dma_semaphore, #tpu.memory_space<semaphore_mem>>) src(%arg4 : memref<32x1024xf32, #tpu.memory_space<any>>) dst(%arg8 : memref<32x1024xf32, #tpu.memory_space<vmem>>)
    %c1_i32_25 = arith.constant 1 : i32
    %60 = tpu.memref_slice %arg10[%c1_i32_25] : memref<2x!tpu.dma_semaphore, #tpu.memory_space<semaphore_mem>> -> memref<1x!tpu.dma_semaphore, #tpu.memory_space<semaphore_mem>>
    %61 = tpu.memref_squeeze %60 : memref<1x!tpu.dma_semaphore, #tpu.memory_space<semaphore_mem>> -> memref<!tpu.dma_semaphore, #tpu.memory_space<semaphore_mem>>
    tpu.wait_dma2 semaphore(%61 : memref<!tpu.dma_semaphore, #tpu.memory_space<semaphore_mem>>) src(%arg5 : memref<1024x32xf32, #tpu.memory_space<any>>) dst(%arg9 : memref<1024x32xf32, #tpu.memory_space<vmem>>)
    %c0_26 = arith.constant 0 : index
    %c0_27 = arith.constant 0 : index
    %62 = vector.load %arg8[%c0_26, %c0_27] : memref<32x1024xf32, #tpu.memory_space<vmem>>, vector<32x1024xf32>
    %cst_28 = arith.constant dense<0.000000e+00> : vector<16x1024xf32>
    %63 = tpu.matmul %57, %62, %cst_28 {dimension_numbers = #tpu.dot_dimension_numbers<[1], [0], [0], [1], [0, 0, 1, 1], [], []>} : vector<16x32xf32>, vector<32x1024xf32>, vector<16x1024xf32> -> vector<16x1024xf32>
    %cst_29 = arith.constant 0.000000e+00 : f32
    %64 = vector.broadcast %cst_29 : f32 to vector<16x1024xf32>
    %65 = arith.maximumf %63, %64 : vector<16x1024xf32>
    %c0_30 = arith.constant 0 : index
    %c0_31 = arith.constant 0 : index
    %66 = vector.load %arg9[%c0_30, %c0_31] : memref<1024x32xf32, #tpu.memory_space<vmem>>, vector<1024x32xf32>
    %cst_32 = arith.constant dense<0.000000e+00> : vector<16x32xf32>
    %67 = tpu.matmul %65, %66, %cst_32 {dimension_numbers = #tpu.dot_dimension_numbers<[1], [0], [0], [1], [0, 0, 1, 1], [], []>} : vector<16x1024xf32>, vector<1024x32xf32>, vector<16x32xf32> -> vector<16x32xf32>
    %68 = arith.addf %67, %57 : vector<16x32xf32>
    %cst_33 = arith.constant dense<0.000000e+00> : vector<16xf32>
    %69 = vector.multi_reduction <add>, %68, %cst_33 [1] : vector<16x32xf32> to vector<16xf32>
    %70 = vector.shape_cast %69 : vector<16xf32> to vector<16x1xf32>
    %cst_34 = arith.constant 3.200000e+01 : f32
    %71 = vector.broadcast %cst_34 : f32 to vector<16x1xf32>
    %72 = arith.divf %70, %71 : vector<16x1xf32>
    %73 = vector.broadcast %72 : vector<16x1xf32> to vector<16x32xf32>
    %74 = arith.subf %68, %73 : vector<16x32xf32>
    %75 = arith.mulf %74, %74 : vector<16x32xf32>
    %cst_35 = arith.constant dense<0.000000e+00> : vector<16xf32>
    %76 = vector.multi_reduction <add>, %75, %cst_35 [1] : vector<16x32xf32> to vector<16xf32>
    %77 = vector.shape_cast %76 : vector<16xf32> to vector<16x1xf32>
    %cst_36 = arith.constant 3.200000e+01 : f32
    %78 = vector.broadcast %cst_36 : f32 to vector<16x1xf32>
    %79 = arith.divf %77, %78 : vector<16x1xf32>
    %80 = vector.broadcast %72 : vector<16x1xf32> to vector<16x32xf32>
    %81 = arith.subf %68, %80 : vector<16x32xf32>
    %cst_37 = arith.constant 9.99999974E-6 : f32
    %82 = vector.broadcast %cst_37 : f32 to vector<16x1xf32>
    %83 = arith.addf %79, %82 : vector<16x1xf32>
    %84 = math.rsqrt %83 : vector<16x1xf32>
    %85 = vector.broadcast %84 : vector<16x1xf32> to vector<16x32xf32>
    %86 = arith.mulf %81, %85 : vector<16x32xf32>
    %87 = vector.shape_cast %86 : vector<16x32xf32> to vector<2x8x32xf32>
    %c0_38 = arith.constant 0 : index
    %c0_39 = arith.constant 0 : index
    %c0_40 = arith.constant 0 : index
    %88 = vector.load %arg6[%c0_38, %c0_39, %c0_40] : memref<2x8x32xf32, #tpu.memory_space<vmem>>, vector<2x8x32xf32>
    tpu.vector_store %arg6[%c0_38, %c0_39, %c0_40], %87 {strides = array<i32>} : memref<2x8x32xf32, #tpu.memory_space<vmem>>, vector<2x8x32xf32>,
    return
  }
  func.func @transform_0(%arg0: i32) -> (i32, i32, i32) {
    %c0_i32 = arith.constant 0 : i32
    %c0_i32_0 = arith.constant 0 : i32
    %c0_i32_1 = arith.constant 0 : i32
    %c0_i32_2 = arith.constant 0 : i32
    return %c0_i32, %c0_i32_0, %c0_i32_1 : i32, i32, i32
  }
  func.func @transform_1(%arg0: i32) -> (i32, i32, i32) {
    %c0_i32 = arith.constant 0 : i32
    %c0_i32_0 = arith.constant 0 : i32
    %c0_i32_1 = arith.constant 0 : i32
    %c0_i32_2 = arith.constant 0 : i32
    return %c0_i32, %c0_i32_0, %c0_i32_1 : i32, i32, i32
  }
  func.func @transform_2(%arg0: i32) -> (i32, i32, i32) {
    %c0_i32 = arith.constant 0 : i32
    %c0_i32_0 = arith.constant 0 : i32
    %c0_i32_1 = arith.constant 0 : i32
    %c0_i32_2 = arith.constant 0 : i32
    return %c0_i32, %c0_i32_0, %c0_i32_1 : i32, i32, i32
  }
  func.func @transform_5(%arg0: i32) -> (i32, i32, i32) {
    %c0_i32 = arith.constant 0 : i32
    %c0_i32_0 = arith.constant 0 : i32
    %c0_i32_1 = arith.constant 0 : i32
    %c0_i32_2 = arith.constant 0 : i32
    return %c0_i32, %c0_i32_0, %c0_i32_1 : i32, i32, i32
  }
  func.func @transform_6(%arg0: i32) -> (i32, i32, i32, i32) {
    %c0_i32 = arith.constant 0 : i32
    %c0_i32_0 = arith.constant 0 : i32
    %c0_i32_1 = arith.constant 0 : i32
    %c0_i32_2 = arith.constant 0 : i32
    %c0_i32_3 = arith.constant 0 : i32
    return %c0_i32, %c0_i32_0, %c0_i32_1, %c0_i32_2 : i32, i32, i32, i32
  }
}

</mosaic_0001>

<llo_original>
// kernel: _encoder_layer.1
$region0: #{_encoder_layer.1}
  #allocation0 [shape = 'u32[]', space=smem, size = 0x4, offset = 0x4, fixed_abs, tag = 'smem constant byte address 0x4 - core index']
  #allocation1 [shape = 'u32[144,128]{1,0:T(1,128)}', space=vmem, size = 0x12000, scoped, tag = 'internal scratch']
  #allocation2 [shape = 'f32[32,1024]{1,0:T(8,128)}', space=vmem, size = 0x20000, scoped, tag = 'scratch operand']
  #allocation3 [shape = 'f32[1024,32]{1,0:T(8,128)}', space=vmem, size = 0x80000, scoped, tag = 'scratch operand']
  #allocation4 [shape = 's32[2]{0}', space=sflag, size = 0x8, scoped, tag = 'scratch operand']
  #allocation7 [shape = 's32[]', space=sflag, size = 0x4, offset = 0, fixed_abs, tag = 'sflag constant byte address 0x0 - dummy sync flag']
  #allocation8 [shape = 's32[]', space=sflag, size = 0x4, offset = 0, fixed_abs, tag = 'sflag constant byte address 0x0 - dummy sync flag']
  %s0 = inlined_call_operand.vmem [shape: f32[2,8,32], index: 0, kind: input, shape index: {}]
  %s1 = inlined_call_operand.vmem [shape: f32[12,32,8], index: 1, kind: input, shape index: {}]
  %s2 = inlined_call_operand.vmem [shape: f32[4,8,32], index: 2, kind: input, shape index: {}]
  %s3 = inlined_call_operand.vmem [shape: f32[32,1024], index: 3, kind: input, shape index: {}]
  %s4 = inlined_call_operand.vmem [shape: f32[1024,32], index: 4, kind: input, shape index: {}]
  %s5 = inlined_call_operand.hbm [shape: f32[2,8,32], index: 5, kind: output, shape index: {0}]
  %s6 = inlined_call_operand.vmem [shape: f32[4,2,8,8], index: 6, kind: output, shape index: {1}]
  %7 = xla_tuple %s5, %s6
  %s8 = sld [smem:[#allocation0]]
  $region98: #{_encoder_layer.1} parent=0
    _
  %s10 = ssub.s32 1, %s8
  %s11 = scalar_select 0, %s10, %s8
  $region1: #{_encoder_layer.1} parent=0
    #allocation5 [shape = 'u8[8192]{0}', space=vmem, size = 0x2000, scoped, tag = 'output window, operand 0, single buffered']
    #allocation6 [shape = 's32[1]{0}', space=sflag, size = 0x4, scoped, tag = 'scoped memory for _encoder_layer.1']
    %12 = vsyncpa [#allocation6], 0
    // Predicated region
    $region2: #{_encoder_layer.1} parent=1 // pred_check
      _
    $region3: #{_encoder_layer.1} parent=1 // pred_check_branch
      %14 = sbr.rel (0) target = $region5
    $region4: #{_encoder_layer.1} parent=1 // pred_region
      _
    $region5: #{_encoder_layer.1} parent=1 // pred_fallthru
      _
    // Predicated region
    $region6: #{_encoder_layer.1} parent=1 // pred_check
      _
    $region7: #{_encoder_layer.1} parent=1 // pred_check_branch
      %16 = sbr.rel (0) target = $region9
    $region8: #{_encoder_layer.1} parent=1 // pred_region
      _
    $region9: #{_encoder_layer.1} parent=1 // pred_fallthru
      _
    // Predicated region
    $region10: #{_encoder_layer.1} parent=1 // pred_check
      _
    $region11: #{_encoder_layer.1} parent=1 // pred_check_branch
      %18 = sbr.rel (0) target = $region13
    $region12: #{_encoder_layer.1} parent=1 // pred_region
      _
    $region13: #{_encoder_layer.1} parent=1 // pred_fallthru
      _
    %p20 = scmp.lt.u32.totalorder 256, 8
    %p21 = pneg %p20
    // Predicated region
    $region14: #{_encoder_layer.1} parent=1 // pred_check
      _
    $region15: #{_encoder_layer.1} parent=1 // pred_check_branch
      %23 = sbr.rel (%p20) target = $region17
    $region16: #{_encoder_layer.1} parent=1 // pred_region
      %s38 = sand.u32 256, 7
      %p39 = scmp.eq.s32.totalorder %s38, 0
      // Predicated region
      $region29: #{_encoder_layer.1} parent=16 // pred_check
        %p40 = pneg %p39
      $region30: #{_encoder_layer.1} parent=16 // pred_check_branch
        %42 = sbr.rel (%p40) target = $region32
      $region31: #{_encoder_layer.1} parent=16 // pred_region
        loop: start=0, step=1, limit=1
        $region33: #{_encoder_layer.1} parent=31 // loop_pre_header
          _
        $region34: #{_encoder_layer.1} parent=31 // loop_header
          %s44 = sphi 0, %s48
          %p45 = scmp.ge.s32.totalorder %s44, 1
          %s49 = sphi %s3, %s3
          %s50 = sphi [#allocation2], [#allocation2]
        $region35: #{_encoder_layer.1} parent=31 // loop_header_branch
          %47 = sbr.rel (%p45) target = $region39
        $region36: #{_encoder_layer.1} parent=31 // loop_body
          %v51 = vld [vmem:[%s49] sm:$0xff]
          %52 = vst [vmem:[%s50] sm:$0xff] %v51
          %v53 = vld [vmem:[%s49 + $0x8] sm:$0xff]
          %54 = vst [vmem:[%s50 + $0x8] sm:$0xff] %v53
          %v55 = vld [vmem:[%s49 + $0x10] sm:$0xff]
          %56 = vst [vmem:[%s50 + $0x10] sm:$0xff] %v55
          %v57 = vld [vmem:[%s49 + $0x18] sm:$0xff]
          %58 = vst [vmem:[%s50 + $0x18] sm:$0xff] %v57
          %v59 = vld [vmem:[%s49 + $0x20] sm:$0xff]
          %60 = vst [vmem:[%s50 + $0x20] sm:$0xff] %v59
          %v61 = vld [vmem:[%s49 + $0x28] sm:$0xff]
          %62 = vst [vmem:[%s50 + $0x28] sm:$0xff] %v61
          %v63 = vld [vmem:[%s49 + $0x30] sm:$0xff]
          %64 = vst [vmem:[%s50 + $0x30] sm:$0xff] %v63
          %v65 = vld [vmem:[%s49 + $0x38] sm:$0xff]
          %66 = vst [vmem:[%s50 + $0x38] sm:$0xff] %v65
          %v67 = vld [vmem:[%s49 + $0x40] sm:$0xff]
          %68 = vst [vmem:[%s50 + $0x40] sm:$0xff] %v67
          %v69 = vld [vmem:[%s49 + $0x48] sm:$0xff]
          %70 = vst [vmem:[%s50 + $0x48] sm:$0xff] %v69
          %v71 = vld [vmem:[%s49 + $0x50] sm:$0xff]
          %72 = vst [vmem:[%s50 + $0x50] sm:$0xff] %v71
          %v73 = vld [vmem:[%s49 + $0x58] sm:$0xff]
          %74 = vst [vmem:[%s50 + $0x58] sm:$0xff] %v73
          %v75 = vld [vmem:[%s49 + $0x60] sm:$0xff]
          %76 = vst [vmem:[%s50 + $0x60] sm:$0xff] %v75
          %v77 = vld [vmem:[%s49 + $0x68] sm:$0xff]
          %78 = vst [vmem:[%s50 + $0x68] sm:$0xff] %v77
          %v79 = vld [vmem:[%s49 + $0x70] sm:$0xff]
          %80 = vst [vmem:[%s50 + $0x70] sm:$0xff] %v79
          %v81 = vld [vmem:[%s49 + $0x78] sm:$0xff]
          %82 = vst [vmem:[%s50 + $0x78] sm:$0xff] %v81
          %v83 = vld [vmem:[%s49 + $0x80] sm:$0xff]
          %84 = vst [vmem:[%s50 + $0x80] sm:$0xff] %v83
          %v85 = vld [vmem:[%s49 + $0x88] sm:$0xff]
          %86 = vst [vmem:[%s50 + $0x88] sm:$0xff] %v85
          %v87 = vld [vmem:[%s49 + $0x90] sm:$0xff]
          %88 = vst [vmem:[%s50 + $0x90] sm:$0xff] %v87
          %v89 = vld [vmem:[%s49 + $0x98] sm:$0xff]
          %90 = vst [vmem:[%s50 + $0x98] sm:$0xff] %v89
          %v91 = vld [vmem:[%s49 + $0xa0] sm:$0xff]
          %92 = vst [vmem:[%s50 + $0xa0] sm:$0xff] %v91
          %v93 = vld [vmem:[%s49 + $0xa8] sm:$0xff]
          %94 = vst [vmem:[%s50 + $0xa8] sm:$0xff] %v93
          %v95 = vld [vmem:[%s49 + $0xb0] sm:$0xff]
          %96 = vst [vmem:[%s50 + $0xb0] sm:$0xff] %v95
          %v97 = vld [vmem:[%s49 + $0xb8] sm:$0xff]
          %98 = vst [vmem:[%s50 + $0xb8] sm:$0xff] %v97
          %v99 = vld [vmem:[%s49 + $0xc0] sm:$0xff]
          %100 = vst [vmem:[%s50 + $0xc0] sm:$0xff] %v99
          %v101 = vld [vmem:[%s49 + $0xc8] sm:$0xff]
          %102 = vst [vmem:[%s50 + $0xc8] sm:$0xff] %v101
          %v103 = vld [vmem:[%s49 + $0xd0] sm:$0xff]
          %104 = vst [vmem:[%s50 + $0xd0] sm:$0xff] %v103
          %v105 = vld [vmem:[%s49 + $0xd8] sm:$0xff]
          %106 = vst [vmem:[%s50 + $0xd8] sm:$0xff] %v105
          %v107 = vld [vmem:[%s49 + $0xe0] sm:$0xff]
          %108 = vst [vmem:[%s50 + $0xe0] sm:$0xff] %v107
          %v109 = vld [vmem:[%s49 + $0xe8] sm:$0xff]
          %110 = vst [vmem:[%s50 + $0xe8] sm:$0xff] %v109
          %v111 = vld [vmem:[%s49 + $0xf0] sm:$0xff]
          %112 = vst [vmem:[%s50 + $0xf0] sm:$0xff] %v111
          %v113 = vld [vmem:[%s49 + $0xf8] sm:$0xff]
          %114 = vst [vmem:[%s50 + $0xf8] sm:$0xff] %v113
        $region37: #{_encoder_layer.1} parent=31 // loop_footer
          %s48 = sadd.s32 1, %s44
        $region38: #{_encoder_layer.1} parent=31 // loop_footer_branch
          %43 = sbr.rel target = $region34
        $region39: #{_encoder_layer.1} parent=31 // loop_exit
          _
      $region32: #{_encoder_layer.1} parent=16 // pred_fallthru
        _
      %p115 = pneg %p39
      // Predicated region
      $region40: #{_encoder_layer.1} parent=16 // pred_check
        _
      $region41: #{_encoder_layer.1} parent=16 // pred_check_branch
        %117 = sbr.rel (%p39) target = $region43
      $region42: #{_encoder_layer.1} parent=16 // pred_region
        %s118 = sand.u32 256, 7
      $region43: #{_encoder_layer.1} parent=16 // pred_fallthru
        _
    $region17: #{_encoder_layer.1} parent=1 // pred_fallthru
      _
    // Predicated region
    $region18: #{_encoder_layer.1} parent=1 // pred_check
      %p24 = pneg %p20
    $region19: #{_encoder_layer.1} parent=1 // pred_check_branch
      %26 = sbr.rel (%p24) target = $region21
    $region20: #{_encoder_layer.1} parent=1 // pred_region
      %s27 = sshllo.u32 0, 256
      loop: start=0, step=1, limit=1
      $region22: #{_encoder_layer.1} parent=20 // loop_pre_header
        _
      $region23: #{_encoder_layer.1} parent=20 // loop_header
        %s29 = sphi 0, %s33
        %p30 = scmp.ge.s32.totalorder %s29, 1
        %s34 = sphi %s3, %s3
        %s35 = sphi [#allocation2], [#allocation2]
      $region24: #{_encoder_layer.1} parent=20 // loop_header_branch
        %32 = sbr.rel (%p30) target = $region28
      $region25: #{_encoder_layer.1} parent=20 // loop_body
        %v36 = vld [vmem:[%s34] sm:%s27]
        %37 = vst [vmem:[%s35] sm:%s27] %v36
      $region26: #{_encoder_layer.1} parent=20 // loop_footer
        %s33 = sadd.s32 1, %s29
      $region27: #{_encoder_layer.1} parent=20 // loop_footer_branch
        %28 = sbr.rel target = $region23
      $region28: #{_encoder_layer.1} parent=20 // loop_exit
        _
    $region21: #{_encoder_layer.1} parent=1 // pred_fallthru
      _
    // Predicated region
    $region44: #{_encoder_layer.1} parent=1 // pred_check
      _
    $region45: #{_encoder_layer.1} parent=1 // pred_check_branch
      %121 = sbr.rel (0) target = $region47
    $region46: #{_encoder_layer.1} parent=1 // pred_region
      %122 = vsyncadd [#allocation4], 4096
    $region47: #{_encoder_layer.1} parent=1 // pred_fallthru
      _
    %s123 = scalar_lea.sflag [#allocation4], 1
    %p125 = scmp.lt.u32.totalorder 1024, 8
    %p126 = pneg %p125
    // Predicated region
    $region48: #{_encoder_layer.1} parent=1 // pred_check
      _
    $region49: #{_encoder_layer.1} parent=1 // pred_check_branch
      %128 = sbr.rel (%p125) target = $region51
    $region50: #{_encoder_layer.1} parent=1 // pred_region
      %s143 = sand.u32 1024, 7
      %p144 = scmp.eq.s32.totalorder %s143, 0
      // Predicated region
      $region63: #{_encoder_layer.1} parent=50 // pred_check
        %p145 = pneg %p144
      $region64: #{_encoder_layer.1} parent=50 // pred_check_branch
        %147 = sbr.rel (%p145) target = $region66
      $region65: #{_encoder_layer.1} parent=50 // pred_region
        loop: start=0, step=1, limit=1
        $region67: #{_encoder_layer.1} parent=65 // loop_pre_header
          _
        $region68: #{_encoder_layer.1} parent=65 // loop_header
          %s149 = sphi 0, %s153
          %p150 = scmp.ge.s32.totalorder %s149, 1
          %s154 = sphi %s4, %s4
          %s155 = sphi [#allocation3], [#allocation3]
        $region69: #{_encoder_layer.1} parent=65 // loop_header_branch
          %152 = sbr.rel (%p150) target = $region73
        $region70: #{_encoder_layer.1} parent=65 // loop_body
          %v156 = vld [vmem:[%s154] sm:$0xff]
          %157 = vst [vmem:[%s155] sm:$0xff] %v156
          %v158 = vld [vmem:[%s154 + $0x8] sm:$0xff]
          %159 = vst [vmem:[%s155 + $0x8] sm:$0xff] %v158
          %v160 = vld [vmem:[%s154 + $0x10] sm:$0xff]
          %161 = vst [vmem:[%s155 + $0x10] sm:$0xff] %v160
          %v162 = vld [vmem:[%s154 + $0x18] sm:$0xff]
          %163 = vst [vmem:[%s155 + $0x18] sm:$0xff] %v162
          %v164 = vld [vmem:[%s154 + $0x20] sm:$0xff]
          %165 = vst [vmem:[%s155 + $0x20] sm:$0xff] %v164
          %v166 = vld [vmem:[%s154 + $0x28] sm:$0xff]
          %167 = vst [vmem:[%s155 + $0x28] sm:$0xff] %v166
          %v168 = vld [vmem:[%s154 + $0x30] sm:$0xff]
          %169 = vst [vmem:[%s155 + $0x30] sm:$0xff] %v168
          %v170 = vld [vmem:[%s154 + $0x38] sm:$0xff]
          %171 = vst [vmem:[%s155 + $0x38] sm:$0xff] %v170
          %v172 = vld [vmem:[%s154 + $0x40] sm:$0xff]
          %173 = vst [vmem:[%s155 + $0x40] sm:$0xff] %v172
          %v174 = vld [vmem:[%s154 + $0x48] sm:$0xff]
          %175 = vst [vmem:[%s155 + $0x48] sm:$0xff] %v174
          %v176 = vld [vmem:[%s154 + $0x50] sm:$0xff]
          %177 = vst [vmem:[%s155 + $0x50] sm:$0xff] %v176
          %v178 = vld [vmem:[%s154 + $0x58] sm:$0xff]
          %179 = vst [vmem:[%s155 + $0x58] sm:$0xff] %v178
          %v180 = vld [vmem:[%s154 + $0x60] sm:$0xff]
          %181 = vst [vmem:[%s155 + $0x60] sm:$0xff] %v180
          %v182 = vld [vmem:[%s154 + $0x68] sm:$0xff]
          %183 = vst [vmem:[%s155 + $0x68] sm:$0xff] %v182
          %v184 = vld [vmem:[%s154 + $0x70] sm:$0xff]
          %185 = vst [vmem:[%s155 + $0x70] sm:$0xff] %v184
          %v186 = vld [vmem:[%s154 + $0x78] sm:$0xff]
          %187 = vst [vmem:[%s155 + $0x78] sm:$0xff] %v186
          %v188 = vld [vmem:[%s154 + $0x80] sm:$0xff]
          %189 = vst [vmem:[%s155 + $0x80] sm:$0xff] %v188
          %v190 = vld [vmem:[%s154 + $0x88] sm:$0xff]
          %191 = vst [vmem:[%s155 + $0x88] sm:$0xff] %v190
          %v192 = vld [vmem:[%s154 + $0x90] sm:$0xff]
          %193 = vst [vmem:[%s155 + $0x90] sm:$0xff] %v192
          %v194 = vld [vmem:[%s154 + $0x98] sm:$0xff]
          %195 = vst [vmem:[%s155 + $0x98] sm:$0xff] %v194
          %v196 = vld [vmem:[%s154 + $0xa0] sm:$0xff]
          %197 = vst [vmem:[%s155 + $0xa0] sm:$0xff] %v196
          %v198 = vld [vmem:[%s154 + $0xa8] sm:$0xff]
          %199 = vst [vmem:[%s155 + $0xa8] sm:$0xff] %v198
          %v200 = vld [vmem:[%s154 + $0xb0] sm:$0xff]
          %201 = vst [vmem:[%s155 + $0xb0] sm:$0xff] %v200
          %v202 = vld [vmem:[%s154 + $0xb8] sm:$0xff]
          %203 = vst [vmem:[%s155 + $0xb8] sm:$0xff] %v202
          %v204 = vld [vmem:[%s154 + $0xc0] sm:$0xff]
          %205 = vst [vmem:[%s155 + $0xc0] sm:$0xff] %v204
          %v206 = vld [vmem:[%s154 + $0xc8] sm:$0xff]
          %207 = vst [vmem:[%s155 + $0xc8] sm:$0xff] %v206
          %v208 = vld [vmem:[%s154 + $0xd0] sm:$0xff]
          %209 = vst [vmem:[%s155 + $0xd0] sm:$0xff] %v208
          %v210 = vld [vmem:[%s154 + $0xd8] sm:$0xff]
          %211 = vst [vmem:[%s155 + $0xd8] sm:$0xff] %v210
          %v212 = vld [vmem:[%s154 + $0xe0] sm:$0xff]
          %213 = vst [vmem:[%s155 + $0xe0] sm:$0xff] %v212
          %v214 = vld [vmem:[%s154 + $0xe8] sm:$0xff]
          %215 = vst [vmem:[%s155 + $0xe8] sm:$0xff] %v214
          %v216 = vld [vmem:[%s154 + $0xf0] sm:$0xff]
          %217 = vst [vmem:[%s155 + $0xf0] sm:$0xff] %v216
          %v218 = vld [vmem:[%s154 + $0xf8] sm:$0xff]
          %219 = vst [vmem:[%s155 + $0xf8] sm:$0xff] %v218
          %v220 = vld [vmem:[%s154 + $0x100] sm:$0xff]
          %221 = vst [vmem:[%s155 + $0x100] sm:$0xff] %v220
          %v222 = vld [vmem:[%s154 + $0x108] sm:$0xff]
          %223 = vst [vmem:[%s155 + $0x108] sm:$0xff] %v222
          %v224 = vld [vmem:[%s154 + $0x110] sm:$0xff]
          %225 = vst [vmem:[%s155 + $0x110] sm:$0xff] %v224
          %v226 = vld [vmem:[%s154 + $0x118] sm:$0xff]
          %227 = vst [vmem:[%s155 + $0x118] sm:$0xff] %v226
          %v228 = vld [vmem:[%s154 + $0x120] sm:$0xff]
          %229 = vst [vmem:[%s155 + $0x120] sm:$0xff] %v228
          %v230 = vld [vmem:[%s154 + $0x128] sm:$0xff]
          %231 = vst [vmem:[%s155 + $0x128] sm:$0xff] %v230
          %v232 = vld [vmem:[%s154 + $0x130] sm:$0xff]
          %233 = vst [vmem:[%s155 + $0x130] sm:$0xff] %v232
          %v234 = vld [vmem:[%s154 + $0x138] sm:$0xff]
          %235 = vst [vmem:[%s155 + $0x138] sm:$0xff] %v234
          %v236 = vld [vmem:[%s154 + $0x140] sm:$0xff]
          %237 = vst [vmem:[%s155 + $0x140] sm:$0xff] %v236
          %v238 = vld [vmem:[%s154 + $0x148] sm:$0xff]
          %239 = vst [vmem:[%s155 + $0x148] sm:$0xff] %v238
          %v240 = vld [vmem:[%s154 + $0x150] sm:$0xff]
          %241 = vst [vmem:[%s155 + $0x150] sm:$0xff] %v240
          %v242 = vld [vmem:[%s154 + $0x158] sm:$0xff]
          %243 = vst [vmem:[%s155 + $0x158] sm:$0xff] %v242
          %v244 = vld [vmem:[%s154 + $0x160] sm:$0xff]
          %245 = vst [vmem:[%s155 + $0x160] sm:$0xff] %v244
          %v246 = vld [vmem:[%s154 + $0x168] sm:$0xff]
          %247 = vst [vmem:[%s155 + $0x168] sm:$0xff] %v246
          %v248 = vld [vmem:[%s154 + $0x170] sm:$0xff]
          %249 = vst [vmem:[%s155 + $0x170] sm:$0xff] %v248
          %v250 = vld [vmem:[%s154 + $0x178] sm:$0xff]
          %251 = vst [vmem:[%s155 + $0x178] sm:$0xff] %v250
          %v252 = vld [vmem:[%s154 + $0x180] sm:$0xff]
          %253 = vst [vmem:[%s155 + $0x180] sm:$0xff] %v252
          %v254 = vld [vmem:[%s154 + $0x188] sm:$0xff]
          %255 = vst [vmem:[%s155 + $0x188] sm:$0xff] %v254
          %v256 = vld [vmem:[%s154 + $0x190] sm:$0xff]
          %257 = vst [vmem:[%s155 + $0x190] sm:$0xff] %v256
          %v258 = vld [vmem:[%s154 + $0x198] sm:$0xff]
          %259 = vst [vmem:[%s155 + $0x198] sm:$0xff] %v258
          %v260 = vld [vmem:[%s154 + $0x1a0] sm:$0xff]
          %261 = vst [vmem:[%s155 + $0x1a0] sm:$0xff] %v260
          %v262 = vld [vmem:[%s154 + $0x1a8] sm:$0xff]
          %263 = vst [vmem:[%s155 + $0x1a8] sm:$0xff] %v262
          %v264 = vld [vmem:[%s154 + $0x1b0] sm:$0xff]
          %265 = vst [vmem:[%s155 + $0x1b0] sm:$0xff] %v264
          %v266 = vld [vmem:[%s154 + $0x1b8] sm:$0xff]
          %267 = vst [vmem:[%s155 + $0x1b8] sm:$0xff] %v266
          %v268 = vld [vmem:[%s154 + $0x1c0] sm:$0xff]
          %269 = vst [vmem:[%s155 + $0x1c0] sm:$0xff] %v268
          %v270 = vld [vmem:[%s154 + $0x1c8] sm:$0xff]
          %271 = vst [vmem:[%s155 + $0x1c8] sm:$0xff] %v270
          %v272 = vld [vmem:[%s154 + $0x1d0] sm:$0xff]
          %273 = vst [vmem:[%s155 + $0x1d0] sm:$0xff] %v272
          %v274 = vld [vmem:[%s154 + $0x1d8] sm:$0xff]
          %275 = vst [vmem:[%s155 + $0x1d8] sm:$0xff] %v274
          %v276 = vld [vmem:[%s154 + $0x1e0] sm:$0xff]
          %277 = vst [vmem:[%s155 + $0x1e0] sm:$0xff] %v276
          %v278 = vld [vmem:[%s154 + $0x1e8] sm:$0xff]
          %279 = vst [vmem:[%s155 + $0x1e8] sm:$0xff] %v278
          %v280 = vld [vmem:[%s154 + $0x1f0] sm:$0xff]
          %281 = vst [vmem:[%s155 + $0x1f0] sm:$0xff] %v280
          %v282 = vld [vmem:[%s154 + $0x1f8] sm:$0xff]
          %283 = vst [vmem:[%s155 + $0x1f8] sm:$0xff] %v282
          %v284 = vld [vmem:[%s154 + $0x200] sm:$0xff]
          %285 = vst [vmem:[%s155 + $0x200] sm:$0xff] %v284
          %v286 = vld [vmem:[%s154 + $0x208] sm:$0xff]
          %287 = vst [vmem:[%s155 + $0x208] sm:$0xff] %v286
          %v288 = vld [vmem:[%s154 + $0x210] sm:$0xff]
          %289 = vst [vmem:[%s155 + $0x210] sm:$0xff] %v288
          %v290 = vld [vmem:[%s154 + $0x218] sm:$0xff]
          %291 = vst [vmem:[%s155 + $0x218] sm:$0xff] %v290
          %v292 = vld [vmem:[%s154 + $0x220] sm:$0xff]
          %293 = vst [vmem:[%s155 + $0x220] sm:$0xff] %v292
          %v294 = vld [vmem:[%s154 + $0x228] sm:$0xff]
          %295 = vst [vmem:[%s155 + $0x228] sm:$0xff] %v294
          %v296 = vld [vmem:[%s154 + $0x230] sm:$0xff]
          %297 = vst [vmem:[%s155 + $0x230] sm:$0xff] %v296
          %v298 = vld [vmem:[%s154 + $0x238] sm:$0xff]
          %299 = vst [vmem:[%s155 + $0x238] sm:$0xff] %v298
          %v300 = vld [vmem:[%s154 + $0x240] sm:$0xff]
          %301 = vst [vmem:[%s155 + $0x240] sm:$0xff] %v300
          %v302 = vld [vmem:[%s154 + $0x248] sm:$0xff]
          %303 = vst [vmem:[%s155 + $0x248] sm:$0xff] %v302
          %v304 = vld [vmem:[%s154 + $0x250] sm:$0xff]
          %305 = vst [vmem:[%s155 + $0x250] sm:$0xff] %v304
          %v306 = vld [vmem:[%s154 + $0x258] sm:$0xff]
          %307 = vst [vmem:[%s155 + $0x258] sm:$0xff] %v306
          %v308 = vld [vmem:[%s154 + $0x260] sm:$0xff]
          %309 = vst [vmem:[%s155 + $0x260] sm:$0xff] %v308
          %v310 = vld [vmem:[%s154 + $0x268] sm:$0xff]
          %311 = vst [vmem:[%s155 + $0x268] sm:$0xff] %v310
          %v312 = vld [vmem:[%s154 + $0x270] sm:$0xff]
          %313 = vst [vmem:[%s155 + $0x270] sm:$0xff] %v312
          %v314 = vld [vmem:[%s154 + $0x278] sm:$0xff]
          %315 = vst [vmem:[%s155 + $0x278] sm:$0xff] %v314
          %v316 = vld [vmem:[%s154 + $0x280] sm:$0xff]
          %317 = vst [vmem:[%s155 + $0x280] sm:$0xff] %v316
          %v318 = vld [vmem:[%s154 + $0x288] sm:$0xff]
          %319 = vst [vmem:[%s155 + $0x288] sm:$0xff] %v318
          %v320 = vld [vmem:[%s154 + $0x290] sm:$0xff]
          %321 = vst [vmem:[%s155 + $0x290] sm:$0xff] %v320
          %v322 = vld [vmem:[%s154 + $0x298] sm:$0xff]
          %323 = vst [vmem:[%s155 + $0x298] sm:$0xff] %v322
          %v324 = vld [vmem:[%s154 + $0x2a0] sm:$0xff]
          %325 = vst [vmem:[%s155 + $0x2a0] sm:$0xff] %v324
          %v326 = vld [vmem:[%s154 + $0x2a8] sm:$0xff]
          %327 = vst [vmem:[%s155 + $0x2a8] sm:$0xff] %v326
          %v328 = vld [vmem:[%s154 + $0x2b0] sm:$0xff]
          %329 = vst [vmem:[%s155 + $0x2b0] sm:$0xff] %v328
          %v330 = vld [vmem:[%s154 + $0x2b8] sm:$0xff]
          %331 = vst [vmem:[%s155 + $0x2b8] sm:$0xff] %v330
          %v332 = vld [vmem:[%s154 + $0x2c0] sm:$0xff]
          %333 = vst [vmem:[%s155 + $0x2c0] sm:$0xff] %v332
          %v334 = vld [vmem:[%s154 + $0x2c8] sm:$0xff]
          %335 = vst [vmem:[%s155 + $0x2c8] sm:$0xff] %v334
          %v336 = vld [vmem:[%s154 + $0x2d0] sm:$0xff]
          %337 = vst [vmem:[%s155 + $0x2d0] sm:$0xff] %v336
          %v338 = vld [vmem:[%s154 + $0x2d8] sm:$0xff]
          %339 = vst [vmem:[%s155 + $0x2d8] sm:$0xff] %v338
          %v340 = vld [vmem:[%s154 + $0x2e0] sm:$0xff]
          %341 = vst [vmem:[%s155 + $0x2e0] sm:$0xff] %v340
          %v342 = vld [vmem:[%s154 + $0x2e8] sm:$0xff]
          %343 = vst [vmem:[%s155 + $0x2e8] sm:$0xff] %v342
          %v344 = vld [vmem:[%s154 + $0x2f0] sm:$0xff]
          %345 = vst [vmem:[%s155 + $0x2f0] sm:$0xff] %v344
          %v346 = vld [vmem:[%s154 + $0x2f8] sm:$0xff]
          %347 = vst [vmem:[%s155 + $0x2f8] sm:$0xff] %v346
          %v348 = vld [vmem:[%s154 + $0x300] sm:$0xff]
          %349 = vst [vmem:[%s155 + $0x300] sm:$0xff] %v348
          %v350 = vld [vmem:[%s154 + $0x308] sm:$0xff]
          %351 = vst [vmem:[%s155 + $0x308] sm:$0xff] %v350
          %v352 = vld [vmem:[%s154 + $0x310] sm:$0xff]
          %353 = vst [vmem:[%s155 + $0x310] sm:$0xff] %v352
          %v354 = vld [vmem:[%s154 + $0x318] sm:$0xff]
          %355 = vst [vmem:[%s155 + $0x318] sm:$0xff] %v354
          %v356 = vld [vmem:[%s154 + $0x320] sm:$0xff]
          %357 = vst [vmem:[%s155 + $0x320] sm:$0xff] %v356
          %v358 = vld [vmem:[%s154 + $0x328] sm:$0xff]
          %359 = vst [vmem:[%s155 + $0x328] sm:$0xff] %v358
          %v360 = vld [vmem:[%s154 + $0x330] sm:$0xff]
          %361 = vst [vmem:[%s155 + $0x330] sm:$0xff] %v360
          %v362 = vld [vmem:[%s154 + $0x338] sm:$0xff]
          %363 = vst [vmem:[%s155 + $0x338] sm:$0xff] %v362
          %v364 = vld [vmem:[%s154 + $0x340] sm:$0xff]
          %365 = vst [vmem:[%s155 + $0x340] sm:$0xff] %v364
          %v366 = vld [vmem:[%s154 + $0x348] sm:$0xff]
          %367 = vst [vmem:[%s155 + $0x348] sm:$0xff] %v366
          %v368 = vld [vmem:[%s154 + $0x350] sm:$0xff]
          %369 = vst [vmem:[%s155 + $0x350] sm:$0xff] %v368
          %v370 = vld [vmem:[%s154 + $0x358] sm:$0xff]
          %371 = vst [vmem:[%s155 + $0x358] sm:$0xff] %v370
          %v372 = vld [vmem:[%s154 + $0x360] sm:$0xff]
          %373 = vst [vmem:[%s155 + $0x360] sm:$0xff] %v372
          %v374 = vld [vmem:[%s154 + $0x368] sm:$0xff]
          %375 = vst [vmem:[%s155 + $0x368] sm:$0xff] %v374
          %v376 = vld [vmem:[%s154 + $0x370] sm:$0xff]
          %377 = vst [vmem:[%s155 + $0x370] sm:$0xff] %v376
          %v378 = vld [vmem:[%s154 + $0x378] sm:$0xff]
          %379 = vst [vmem:[%s155 + $0x378] sm:$0xff] %v378
          %v380 = vld [vmem:[%s154 + $0x380] sm:$0xff]
          %381 = vst [vmem:[%s155 + $0x380] sm:$0xff] %v380
          %v382 = vld [vmem:[%s154 + $0x388] sm:$0xff]
          %383 = vst [vmem:[%s155 + $0x388] sm:$0xff] %v382
          %v384 = vld [vmem:[%s154 + $0x390] sm:$0xff]
          %385 = vst [vmem:[%s155 + $0x390] sm:$0xff] %v384
          %v386 = vld [vmem:[%s154 + $0x398] sm:$0xff]
          %387 = vst [vmem:[%s155 + $0x398] sm:$0xff] %v386
          %v388 = vld [vmem:[%s154 + $0x3a0] sm:$0xff]
          %389 = vst [vmem:[%s155 + $0x3a0] sm:$0xff] %v388
          %v390 = vld [vmem:[%s154 + $0x3a8] sm:$0xff]
          %391 = vst [vmem:[%s155 + $0x3a8] sm:$0xff] %v390
          %v392 = vld [vmem:[%s154 + $0x3b0] sm:$0xff]
          %393 = vst [vmem:[%s155 + $0x3b0] sm:$0xff] %v392
          %v394 = vld [vmem:[%s154 + $0x3b8] sm:$0xff]
          %395 = vst [vmem:[%s155 + $0x3b8] sm:$0xff] %v394
          %v396 = vld [vmem:[%s154 + $0x3c0] sm:$0xff]
          %397 = vst [vmem:[%s155 + $0x3c0] sm:$0xff] %v396
          %v398 = vld [vmem:[%s154 + $0x3c8] sm:$0xff]
          %399 = vst [vmem:[%s155 + $0x3c8] sm:$0xff] %v398
          %v400 = vld [vmem:[%s154 + $0x3d0] sm:$0xff]
          %401 = vst [vmem:[%s155 + $0x3d0] sm:$0xff] %v400
          %v402 = vld [vmem:[%s154 + $0x3d8] sm:$0xff]
          %403 = vst [vmem:[%s155 + $0x3d8] sm:$0xff] %v402
          %v404 = vld [vmem:[%s154 + $0x3e0] sm:$0xff]
          %405 = vst [vmem:[%s155 + $0x3e0] sm:$0xff] %v404
          %v406 = vld [vmem:[%s154 + $0x3e8] sm:$0xff]
          %407 = vst [vmem:[%s155 + $0x3e8] sm:$0xff] %v406
          %v408 = vld [vmem:[%s154 + $0x3f0] sm:$0xff]
          %409 = vst [vmem:[%s155 + $0x3f0] sm:$0xff] %v408
          %v410 = vld [vmem:[%s154 + $0x3f8] sm:$0xff]
          %411 = vst [vmem:[%s155 + $0x3f8] sm:$0xff] %v410
        $region71: #{_encoder_layer.1} parent=65 // loop_footer
          %s153 = sadd.s32 1, %s149
        $region72: #{_encoder_layer.1} parent=65 // loop_footer_branch
          %148 = sbr.rel target = $region68
        $region73: #{_encoder_layer.1} parent=65 // loop_exit
          _
      $region66: #{_encoder_layer.1} parent=50 // pred_fallthru
        _
      %p412 = pneg %p144
      // Predicated region
      $region74: #{_encoder_layer.1} parent=50 // pred_check
        _
      $region75: #{_encoder_layer.1} parent=50 // pred_check_branch
        %414 = sbr.rel (%p144) target = $region77
      $region76: #{_encoder_layer.1} parent=50 // pred_region
        %s415 = sand.u32 1024, 7
      $region77: #{_encoder_layer.1} parent=50 // pred_fallthru
        _
    $region51: #{_encoder_layer.1} parent=1 // pred_fallthru
      _
    // Predicated region
    $region52: #{_encoder_layer.1} parent=1 // pred_check
      %p129 = pneg %p125
    $region53: #{_encoder_layer.1} parent=1 // pred_check_branch
      %131 = sbr.rel (%p129) target = $region55
    $region54: #{_encoder_layer.1} parent=1 // pred_region
      %s132 = sshllo.u32 0, 1024
      loop: start=0, step=1, limit=1
      $region56: #{_encoder_layer.1} parent=54 // loop_pre_header
        _
      $region57: #{_encoder_layer.1} parent=54 // loop_header
        %s134 = sphi 0, %s138
        %p135 = scmp.ge.s32.totalorder %s134, 1
        %s139 = sphi %s4, %s4
        %s140 = sphi [#allocation3], [#allocation3]
      $region58: #{_encoder_layer.1} parent=54 // loop_header_branch
        %137 = sbr.rel (%p135) target = $region62
      $region59: #{_encoder_layer.1} parent=54 // loop_body
        %v141 = vld [vmem:[%s139] sm:%s132]
        %142 = vst [vmem:[%s140] sm:%s132] %v141
      $region60: #{_encoder_layer.1} parent=54 // loop_footer
        %s138 = sadd.s32 1, %s134
      $region61: #{_encoder_layer.1} parent=54 // loop_footer_branch
        %133 = sbr.rel target = $region57
      $region62: #{_encoder_layer.1} parent=54 // loop_exit
        _
    $region55: #{_encoder_layer.1} parent=1 // pred_fallthru
      _
    // Predicated region
    $region78: #{_encoder_layer.1} parent=1 // pred_check
      _
    $region79: #{_encoder_layer.1} parent=1 // pred_check_branch
      %418 = sbr.rel (0) target = $region81
    $region80: #{_encoder_layer.1} parent=1 // pred_region
      %419 = vsyncadd %s123, 16384
    $region81: #{_encoder_layer.1} parent=1 // pred_fallthru
      _
    %v420 = vld [vmem:[%s0] sm:$0xff]
    %v421 = vld [vmem:[%s0 + $0x8] sm:$0xff]
    %v422 = vld [vmem:[%s1] sm:$0xff]
    %v423 = vld [vmem:[%s1 + $0x8] sm:$0xff]
    %v424 = vld [vmem:[%s1 + $0x10] sm:$0xff]
    %v425 = vld [vmem:[%s1 + $0x18] sm:$0xff]
    %v426 = vld [vmem:[%s1 + $0x20] sm:$0xff]
    %v427 = vld [vmem:[%s1 + $0x28] sm:$0xff]
    %v428 = vld [vmem:[%s1 + $0x30] sm:$0xff]
    %v429 = vld [vmem:[%s1 + $0x38] sm:$0xff]
    %v430 = vld [vmem:[%s1 + $0x40] sm:$0xff]
    %v431 = vld [vmem:[%s1 + $0x48] sm:$0xff]
    %v432 = vld [vmem:[%s1 + $0x50] sm:$0xff]
    %v433 = vld [vmem:[%s1 + $0x58] sm:$0xff]
    %v434 = vld [vmem:[%s1 + $0x60] sm:$0xff]
    %v435 = vld [vmem:[%s1 + $0x68] sm:$0xff]
    %v436 = vld [vmem:[%s1 + $0x70] sm:$0xff]
    %v437 = vld [vmem:[%s1 + $0x78] sm:$0xff]
    %v438 = vld [vmem:[%s1 + $0x80] sm:$0xff]
    %v439 = vld [vmem:[%s1 + $0x88] sm:$0xff]
    %v440 = vld [vmem:[%s1 + $0x90] sm:$0xff]
    %v441 = vld [vmem:[%s1 + $0x98] sm:$0xff]
    %v442 = vld [vmem:[%s1 + $0xa0] sm:$0xff]
    %v443 = vld [vmem:[%s1 + $0xa8] sm:$0xff]
    %v444 = vld [vmem:[%s1 + $0xb0] sm:$0xff]
    %v445 = vld [vmem:[%s1 + $0xb8] sm:$0xff]
    %v446 = vld [vmem:[%s1 + $0xc0] sm:$0xff]
    %v447 = vld [vmem:[%s1 + $0xc8] sm:$0xff]
    %v448 = vld [vmem:[%s1 + $0xd0] sm:$0xff]
    %v449 = vld [vmem:[%s1 + $0xd8] sm:$0xff]
    %v450 = vld [vmem:[%s1 + $0xe0] sm:$0xff]
    %v451 = vld [vmem:[%s1 + $0xe8] sm:$0xff]
    %v452 = vld [vmem:[%s1 + $0xf0] sm:$0xff]
    %v453 = vld [vmem:[%s1 + $0xf8] sm:$0xff]
    %v454 = vld [vmem:[%s1 + $0x100] sm:$0xff]
    %v455 = vld [vmem:[%s1 + $0x108] sm:$0xff]
    %v456 = vld [vmem:[%s1 + $0x110] sm:$0xff]
    %v457 = vld [vmem:[%s1 + $0x118] sm:$0xff]
    %v458 = vld [vmem:[%s1 + $0x120] sm:$0xff]
    %v459 = vld [vmem:[%s1 + $0x128] sm:$0xff]
    %v460 = vld [vmem:[%s1 + $0x130] sm:$0xff]
    %v461 = vld [vmem:[%s1 + $0x138] sm:$0xff]
    %v462 = vld [vmem:[%s1 + $0x140] sm:$0xff]
    %v463 = vld [vmem:[%s1 + $0x148] sm:$0xff]
    %v464 = vld [vmem:[%s1 + $0x150] sm:$0xff]
    %v465 = vld [vmem:[%s1 + $0x158] sm:$0xff]
    %v466 = vld [vmem:[%s1 + $0x160] sm:$0xff]
    %v467 = vld [vmem:[%s1 + $0x168] sm:$0xff]
    %v468 = vld [vmem:[%s1 + $0x170] sm:$0xff]
    %v469 = vld [vmem:[%s1 + $0x178] sm:$0xff]
    %vm470 = vcmask 261120
    %v472 = vsel %vm470, %v420, 0
    %v475 = vsel %vm470, %v421, 0
    %477 = vmatprep.subr.mxu0 0.0
    %478 = vmatpush1.msra.mxu0 %v422
    %479 = vmatprep.subr.mxu0 0.0
    %480 = vmatpush1.msra.mxu0 %v423
    %481 = vmatprep.subr.mxu0 0.0
    %482 = vmatpush1.msra.mxu0 %v424
    %483 = vmatprep.subr.mxu0 0.0
    %484 = vmatpush1.msra.mxu0 %v425
    %485 = vmatprep.subr.mxu0 0.0
    %486 = vmatpush1.msra.mxu0 0.0
    %487 = vmatprep.subr.mxu0 0.0
    %488 = vmatpush1.msra.mxu0 0.0
    %489 = vmatprep.subr.mxu0 0.0
    %490 = vmatpush1.msra.mxu0 0.0
    %491 = vmatprep.subr.mxu0 0.0
    %492 = vmatpush1.msra.mxu0 0.0
    %493 = vmatprep.subr.mxu0 0.0
    %494 = vmatpush1.msra.mxu0 0.0
    %495 = vmatprep.subr.mxu0 0.0
    %496 = vmatpush1.msra.mxu0 0.0
    %497 = vmatprep.subr.mxu0 0.0
    %498 = vmatpush1.msra.mxu0 0.0
    %499 = vmatprep.subr.mxu0 0.0
    %500 = vmatpush1.msra.mxu0 0.0
    %501 = vmatprep.subr.mxu0 0.0
    %502 = vmatpush1.msra.mxu0 0.0
    %503 = vmatprep.subr.mxu0 0.0
    %504 = vmatpush1.msra.mxu0 0.0
    %505 = vmatprep.subr.mxu0 0.0
    %506 = vmatpush1.msra.mxu0 0.0
    %507 = vmatprep.subr.mxu0 0.0
    %508 = vmatpush1.msra.mxu0 0.0
    %509 = vmatprep.subr.mxu0 0.0
    %510 = vmatpush1.msra.mxu0 0.0
    %511 = vmatprep.subr.mxu0 0.0
    %512 = vmatpush1.msra.mxu0 0.0
    %513 = vmatprep.subr.mxu0 0.0
    %514 = vmatpush1.msra.mxu0 0.0
    %515 = vmatprep.subr.mxu0 0.0
    %516 = vmatpush1.msra.mxu0 0.0
    %517 = vmatprep.subr.mxu0 0.0
    %518 = vmatpush1.msra.mxu0 0.0
    %519 = vmatprep.subr.mxu0 0.0
    %520 = vmatpush1.msra.mxu0 0.0
    %521 = vmatprep.subr.mxu0 0.0
    %522 = vmatpush1.msra.mxu0 0.0
    %523 = vmatprep.subr.mxu0 0.0
    %524 = vmatpush1.msra.mxu0 0.0
    %525 = vmatprep.subr.mxu0 0.0
    %526 = vmatpush1.msra.mxu0 0.0
    %527 = vmatprep.subr.mxu0 0.0
    %528 = vmatpush1.msra.mxu0 0.0
    %529 = vmatprep.subr.mxu0 0.0
    %530 = vmatpush1.msra.mxu0 0.0
    %531 = vmatprep.subr.mxu0 0.0
    %532 = vmatpush1.msra.mxu0 0.0
    %533 = vmatprep.subr.mxu0 0.0
    %534 = vmatpush1.msra.mxu0 0.0
    %535 = vmatprep.subr.mxu0 0.0
    %536 = vmatpush1.msra.mxu0 0.0
    %537 = vmatprep.subr.mxu0 0.0
    %538 = vmatpush1.msra.mxu0 0.0
    %539 = vmatprep.subr.mxu0 0.0
    %540 = vmatpush1.msra.mxu0 0.0
    %541 = vmatprep.mubr.f32.mxu0 0.0
    %542 = vmatmul.mubr.f32.gmra.mrb[0].mxu0 %v472
    %v543 = vpop.f32.mrb[0].mxu0
    %v544 = vadd.f32 0.0, %v543
    %v545 = vpop.f32.mrb[0].mxu0
    %546 = vmatprep.mubr.f32.mxu0 0.0
    %547 = vmatmul.mubr.f32.gmra.mrb[0].mxu0 %v475
    %v548 = vpop.f32.mrb[0].mxu0
    %v549 = vadd.f32 0.0, %v548
    %v550 = vpop.f32.mrb[0].mxu0
    %551 = vdwg.mxu0
    %552 = vmatprep.subr.mxu0 0.0
    %553 = vmatpush1.msra.mxu0 %v426
    %554 = vmatprep.subr.mxu0 0.0
    %555 = vmatpush1.msra.mxu0 %v427
    %556 = vmatprep.subr.mxu0 0.0
    %557 = vmatpush1.msra.mxu0 %v428
    %558 = vmatprep.subr.mxu0 0.0
    %559 = vmatpush1.msra.mxu0 %v429
    %560 = vmatprep.subr.mxu0 0.0
    %561 = vmatpush1.msra.mxu0 0.0
    %562 = vmatprep.subr.mxu0 0.0
    %563 = vmatpush1.msra.mxu0 0.0
    %564 = vmatprep.subr.mxu0 0.0
    %565 = vmatpush1.msra.mxu0 0.0
    %566 = vmatprep.subr.mxu0 0.0
    %567 = vmatpush1.msra.mxu0 0.0
    %568 = vmatprep.subr.mxu0 0.0
    %569 = vmatpush1.msra.mxu0 0.0
    %570 = vmatprep.subr.mxu0 0.0
    %571 = vmatpush1.msra.mxu0 0.0
    %572 = vmatprep.subr.mxu0 0.0
    %573 = vmatpush1.msra.mxu0 0.0
    %574 = vmatprep.subr.mxu0 0.0
    %575 = vmatpush1.msra.mxu0 0.0
    %576 = vmatprep.subr.mxu0 0.0
    %577 = vmatpush1.msra.mxu0 0.0
    %578 = vmatprep.subr.mxu0 0.0
    %579 = vmatpush1.msra.mxu0 0.0
    %580 = vmatprep.subr.mxu0 0.0
    %581 = vmatpush1.msra.mxu0 0.0
    %582 = vmatprep.subr.mxu0 0.0
    %583 = vmatpush1.msra.mxu0 0.0
    %584 = vmatprep.subr.mxu0 0.0
    %585 = vmatpush1.msra.mxu0 0.0
    %586 = vmatprep.subr.mxu0 0.0
    %587 = vmatpush1.msra.mxu0 0.0
    %588 = vmatprep.subr.mxu0 0.0
    %589 = vmatpush1.msra.mxu0 0.0
    %590 = vmatprep.subr.mxu0 0.0
    %591 = vmatpush1.msra.mxu0 0.0
    %592 = vmatprep.subr.mxu0 0.0
    %593 = vmatpush1.msra.mxu0 0.0
    %594 = vmatprep.subr.mxu0 0.0
    %595 = vmatpush1.msra.mxu0 0.0
    %596 = vmatprep.subr.mxu0 0.0
    %597 = vmatpush1.msra.mxu0 0.0
    %598 = vmatprep.subr.mxu0 0.0
    %599 = vmatpush1.msra.mxu0 0.0
    %600 = vmatprep.subr.mxu0 0.0
    %601 = vmatpush1.msra.mxu0 0.0
    %602 = vmatprep.subr.mxu0 0.0
    %603 = vmatpush1.msra.mxu0 0.0
    %604 = vmatprep.subr.mxu0 0.0
    %605 = vmatpush1.msra.mxu0 0.0
    %606 = vmatprep.subr.mxu0 0.0
    %607 = vmatpush1.msra.mxu0 0.0
    %608 = vmatprep.subr.mxu0 0.0
    %609 = vmatpush1.msra.mxu0 0.0
    %610 = vmatprep.subr.mxu0 0.0
    %611 = vmatpush1.msra.mxu0 0.0
    %612 = vmatprep.subr.mxu0 0.0
    %613 = vmatpush1.msra.mxu0 0.0
    %614 = vmatprep.subr.mxu0 0.0
    %615 = vmatpush1.msra.mxu0 0.0
    %616 = vmatprep.mubr.f32.mxu0 0.0
    %617 = vmatmul.mubr.f32.gmra.mrb[0].mxu0 %v472
    %v618 = vpop.f32.mrb[0].mxu0
    %v619 = vadd.f32 0.0, %v618
    %v620 = vpop.f32.mrb[0].mxu0
    %621 = vmatprep.mubr.f32.mxu0 0.0
    %622 = vmatmul.mubr.f32.gmra.mrb[0].mxu0 %v475
    %v623 = vpop.f32.mrb[0].mxu0
    %v624 = vadd.f32 0.0, %v623
    %v625 = vpop.f32.mrb[0].mxu0
    %626 = vdwg.mxu0
    %627 = vmatprep.subr.mxu0 0.0
    %628 = vmatpush1.msra.mxu0 %v430
    %629 = vmatprep.subr.mxu0 0.0
    %630 = vmatpush1.msra.mxu0 %v431
    %631 = vmatprep.subr.mxu0 0.0
    %632 = vmatpush1.msra.mxu0 %v432
    %633 = vmatprep.subr.mxu0 0.0
    %634 = vmatpush1.msra.mxu0 %v433
    %635 = vmatprep.subr.mxu0 0.0
    %636 = vmatpush1.msra.mxu0 0.0
    %637 = vmatprep.subr.mxu0 0.0
    %638 = vmatpush1.msra.mxu0 0.0
    %639 = vmatprep.subr.mxu0 0.0
    %640 = vmatpush1.msra.mxu0 0.0
    %641 = vmatprep.subr.mxu0 0.0
    %642 = vmatpush1.msra.mxu0 0.0
    %643 = vmatprep.subr.mxu0 0.0
    %644 = vmatpush1.msra.mxu0 0.0
    %645 = vmatprep.subr.mxu0 0.0
    %646 = vmatpush1.msra.mxu0 0.0
    %647 = vmatprep.subr.mxu0 0.0
    %648 = vmatpush1.msra.mxu0 0.0
    %649 = vmatprep.subr.mxu0 0.0
    %650 = vmatpush1.msra.mxu0 0.0
    %651 = vmatprep.subr.mxu0 0.0
    %652 = vmatpush1.msra.mxu0 0.0
    %653 = vmatprep.subr.mxu0 0.0
    %654 = vmatpush1.msra.mxu0 0.0
    %655 = vmatprep.subr.mxu0 0.0
    %656 = vmatpush1.msra.mxu0 0.0
    %657 = vmatprep.subr.mxu0 0.0
    %658 = vmatpush1.msra.mxu0 0.0
    %659 = vmatprep.subr.mxu0 0.0
    %660 = vmatpush1.msra.mxu0 0.0
    %661 = vmatprep.subr.mxu0 0.0
    %662 = vmatpush1.msra.mxu0 0.0
    %663 = vmatprep.subr.mxu0 0.0
    %664 = vmatpush1.msra.mxu0 0.0
    %665 = vmatprep.subr.mxu0 0.0
    %666 = vmatpush1.msra.mxu0 0.0
    %667 = vmatprep.subr.mxu0 0.0
    %668 = vmatpush1.msra.mxu0 0.0
    %669 = vmatprep.subr.mxu0 0.0
    %670 = vmatpush1.msra.mxu0 0.0
    %671 = vmatprep.subr.mxu0 0.0
    %672 = vmatpush1.msra.mxu0 0.0
    %673 = vmatprep.subr.mxu0 0.0
    %674 = vmatpush1.msra.mxu0 0.0
    %675 = vmatprep.subr.mxu0 0.0
    %676 = vmatpush1.msra.mxu0 0.0
    %677 = vmatprep.subr.mxu0 0.0
    %678 = vmatpush1.msra.mxu0 0.0
    %679 = vmatprep.subr.mxu0 0.0
    %680 = vmatpush1.msra.mxu0 0.0
    %681 = vmatprep.subr.mxu0 0.0
    %682 = vmatpush1.msra.mxu0 0.0
    %683 = vmatprep.subr.mxu0 0.0
    %684 = vmatpush1.msra.mxu0 0.0
    %685 = vmatprep.subr.mxu0 0.0
    %686 = vmatpush1.msra.mxu0 0.0
    %687 = vmatprep.subr.mxu0 0.0
    %688 = vmatpush1.msra.mxu0 0.0
    %689 = vmatprep.subr.mxu0 0.0
    %690 = vmatpush1.msra.mxu0 0.0
    %691 = vmatprep.mubr.f32.mxu0 0.0
    %692 = vmatmul.mubr.f32.gmra.mrb[0].mxu0 %v472
    %v693 = vpop.f32.mrb[0].mxu0
    %v694 = vadd.f32 0.0, %v693
    %v695 = vpop.f32.mrb[0].mxu0
    %696 = vmatprep.mubr.f32.mxu0 0.0
    %697 = vmatmul.mubr.f32.gmra.mrb[0].mxu0 %v475
    %v698 = vpop.f32.mrb[0].mxu0
    %v699 = vadd.f32 0.0, %v698
    %v700 = vpop.f32.mrb[0].mxu0
    %701 = vdwg.mxu0
    %702 = vmatprep.subr.mxu0 0.0
    %703 = vmatpush1.msra.mxu0 %v434
    %704 = vmatprep.subr.mxu0 0.0
    %705 = vmatpush1.msra.mxu0 %v435
    %706 = vmatprep.subr.mxu0 0.0
    %707 = vmatpush1.msra.mxu0 %v436
    %708 = vmatprep.subr.mxu0 0.0
    %709 = vmatpush1.msra.mxu0 %v437
    %710 = vmatprep.subr.mxu0 0.0
    %711 = vmatpush1.msra.mxu0 0.0
    %712 = vmatprep.subr.mxu0 0.0
    %713 = vmatpush1.msra.mxu0 0.0
    %714 = vmatprep.subr.mxu0 0.0
    %715 = vmatpush1.msra.mxu0 0.0
    %716 = vmatprep.subr.mxu0 0.0
    %717 = vmatpush1.msra.mxu0 0.0
    %718 = vmatprep.subr.mxu0 0.0
    %719 = vmatpush1.msra.mxu0 0.0
    %720 = vmatprep.subr.mxu0 0.0
    %721 = vmatpush1.msra.mxu0 0.0
    %722 = vmatprep.subr.mxu0 0.0
    %723 = vmatpush1.msra.mxu0 0.0
    %724 = vmatprep.subr.mxu0 0.0
    %725 = vmatpush1.msra.mxu0 0.0
    %726 = vmatprep.subr.mxu0 0.0
    %727 = vmatpush1.msra.mxu0 0.0
    %728 = vmatprep.subr.mxu0 0.0
    %729 = vmatpush1.msra.mxu0 0.0
    %730 = vmatprep.subr.mxu0 0.0
    %731 = vmatpush1.msra.mxu0 0.0
    %732 = vmatprep.subr.mxu0 0.0
    %733 = vmatpush1.msra.mxu0 0.0
    %734 = vmatprep.subr.mxu0 0.0
    %735 = vmatpush1.msra.mxu0 0.0
    %736 = vmatprep.subr.mxu0 0.0
    %737 = vmatpush1.msra.mxu0 0.0
    %738 = vmatprep.subr.mxu0 0.0
    %739 = vmatpush1.msra.mxu0 0.0
    %740 = vmatprep.subr.mxu0 0.0
    %741 = vmatpush1.msra.mxu0 0.0
    %742 = vmatprep.subr.mxu0 0.0
    %743 = vmatpush1.msra.mxu0 0.0
    %744 = vmatprep.subr.mxu0 0.0
    %745 = vmatpush1.msra.mxu0 0.0
    %746 = vmatprep.subr.mxu0 0.0
    %747 = vmatpush1.msra.mxu0 0.0
    %748 = vmatprep.subr.mxu0 0.0
    %749 = vmatpush1.msra.mxu0 0.0
    %750 = vmatprep.subr.mxu0 0.0
    %751 = vmatpush1.msra.mxu0 0.0
    %752 = vmatprep.subr.mxu0 0.0
    %753 = vmatpush1.msra.mxu0 0.0
    %754 = vmatprep.subr.mxu0 0.0
    %755 = vmatpush1.msra.mxu0 0.0
    %756 = vmatprep.subr.mxu0 0.0
    %757 = vmatpush1.msra.mxu0 0.0
    %758 = vmatprep.subr.mxu0 0.0
    %759 = vmatpush1.msra.mxu0 0.0
    %760 = vmatprep.subr.mxu0 0.0
    %761 = vmatpush1.msra.mxu0 0.0
    %762 = vmatprep.subr.mxu0 0.0
    %763 = vmatpush1.msra.mxu0 0.0
    %764 = vmatprep.subr.mxu0 0.0
    %765 = vmatpush1.msra.mxu0 0.0
    %766 = vmatprep.mubr.f32.mxu0 0.0
    %767 = vmatmul.mubr.f32.gmra.mrb[0].mxu0 %v472
    %v768 = vpop.f32.mrb[0].mxu0
    %v769 = vadd.f32 0.0, %v768
    %v770 = vpop.f32.mrb[0].mxu0
    %771 = vmatprep.mubr.f32.mxu0 0.0
    %772 = vmatmul.mubr.f32.gmra.mrb[0].mxu0 %v475
    %v773 = vpop.f32.mrb[0].mxu0
    %v774 = vadd.f32 0.0, %v773
    %v775 = vpop.f32.mrb[0].mxu0
    %776 = vdwg.mxu0
    %777 = vmatprep.subr.mxu0 0.0
    %778 = vmatpush1.msra.mxu0 %v438
    %779 = vmatprep.subr.mxu0 0.0
    %780 = vmatpush1.msra.mxu0 %v439
    %781 = vmatprep.subr.mxu0 0.0
    %782 = vmatpush1.msra.mxu0 %v440
    %783 = vmatprep.subr.mxu0 0.0
    %784 = vmatpush1.msra.mxu0 %v441
    %785 = vmatprep.subr.mxu0 0.0
    %786 = vmatpush1.msra.mxu0 0.0
    %787 = vmatprep.subr.mxu0 0.0
    %788 = vmatpush1.msra.mxu0 0.0
    %789 = vmatprep.subr.mxu0 0.0
    %790 = vmatpush1.msra.mxu0 0.0
    %791 = vmatprep.subr.mxu0 0.0
    %792 = vmatpush1.msra.mxu0 0.0
    %793 = vmatprep.subr.mxu0 0.0
    %794 = vmatpush1.msra.mxu0 0.0
    %795 = vmatprep.subr.mxu0 0.0
    %796 = vmatpush1.msra.mxu0 0.0
    %797 = vmatprep.subr.mxu0 0.0
    %798 = vmatpush1.msra.mxu0 0.0
    %799 = vmatprep.subr.mxu0 0.0
    %800 = vmatpush1.msra.mxu0 0.0
    %801 = vmatprep.subr.mxu0 0.0
    %802 = vmatpush1.msra.mxu0 0.0
    %803 = vmatprep.subr.mxu0 0.0
    %804 = vmatpush1.msra.mxu0 0.0
    %805 = vmatprep.subr.mxu0 0.0
    %806 = vmatpush1.msra.mxu0 0.0
    %807 = vmatprep.subr.mxu0 0.0
    %808 = vmatpush1.msra.mxu0 0.0
    %809 = vmatprep.subr.mxu0 0.0
    %810 = vmatpush1.msra.mxu0 0.0
    %811 = vmatprep.subr.mxu0 0.0
    %812 = vmatpush1.msra.mxu0 0.0
    %813 = vmatprep.subr.mxu0 0.0
    %814 = vmatpush1.msra.mxu0 0.0
    %815 = vmatprep.subr.mxu0 0.0
    %816 = vmatpush1.msra.mxu0 0.0
    %817 = vmatprep.subr.mxu0 0.0
    %818 = vmatpush1.msra.mxu0 0.0
    %819 = vmatprep.subr.mxu0 0.0
    %820 = vmatpush1.msra.mxu0 0.0
    %821 = vmatprep.subr.mxu0 0.0
    %822 = vmatpush1.msra.mxu0 0.0
    %823 = vmatprep.subr.mxu0 0.0
    %824 = vmatpush1.msra.mxu0 0.0
    %825 = vmatprep.subr.mxu0 0.0
    %826 = vmatpush1.msra.mxu0 0.0
    %827 = vmatprep.subr.mxu0 0.0
    %828 = vmatpush1.msra.mxu0 0.0
    %829 = vmatprep.subr.mxu0 0.0
    %830 = vmatpush1.msra.mxu0 0.0
    %831 = vmatprep.subr.mxu0 0.0
    %832 = vmatpush1.msra.mxu0 0.0
    %833 = vmatprep.subr.mxu0 0.0
    %834 = vmatpush1.msra.mxu0 0.0
    %835 = vmatprep.subr.mxu0 0.0
    %836 = vmatpush1.msra.mxu0 0.0
    %837 = vmatprep.subr.mxu0 0.0
    %838 = vmatpush1.msra.mxu0 0.0
    %839 = vmatprep.subr.mxu0 0.0
    %840 = vmatpush1.msra.mxu0 0.0
    %841 = vmatprep.mubr.f32.mxu0 0.0
    %842 = vmatmul.mubr.f32.gmra.mrb[0].mxu0 %v472
    %v843 = vpop.f32.mrb[0].mxu0
    %v844 = vadd.f32 0.0, %v843
    %v845 = vpop.f32.mrb[0].mxu0
    %846 = vmatprep.mubr.f32.mxu0 0.0
    %847 = vmatmul.mubr.f32.gmra.mrb[0].mxu0 %v475
    %v848 = vpop.f32.mrb[0].mxu0
    %v849 = vadd.f32 0.0, %v848
    %v850 = vpop.f32.mrb[0].mxu0
    %851 = vdwg.mxu0
    %852 = vmatprep.subr.mxu0 0.0
    %853 = vmatpush1.msra.mxu0 %v442
    %854 = vmatprep.subr.mxu0 0.0
    %855 = vmatpush1.msra.mxu0 %v443
    %856 = vmatprep.subr.mxu0 0.0
    %857 = vmatpush1.msra.mxu0 %v444
    %858 = vmatprep.subr.mxu0 0.0
    %859 = vmatpush1.msra.mxu0 %v445
    %860 = vmatprep.subr.mxu0 0.0
    %861 = vmatpush1.msra.mxu0 0.0
    %862 = vmatprep.subr.mxu0 0.0
    %863 = vmatpush1.msra.mxu0 0.0
    %864 = vmatprep.subr.mxu0 0.0
    %865 = vmatpush1.msra.mxu0 0.0
    %866 = vmatprep.subr.mxu0 0.0
    %867 = vmatpush1.msra.mxu0 0.0
    %868 = vmatprep.subr.mxu0 0.0
    %869 = vmatpush1.msra.mxu0 0.0
    %870 = vmatprep.subr.mxu0 0.0
    %871 = vmatpush1.msra.mxu0 0.0
    %872 = vmatprep.subr.mxu0 0.0
    %873 = vmatpush1.msra.mxu0 0.0
    %874 = vmatprep.subr.mxu0 0.0
    %875 = vmatpush1.msra.mxu0 0.0
    %876 = vmatprep.subr.mxu0 0.0
    %877 = vmatpush1.msra.mxu0 0.0
    %878 = vmatprep.subr.mxu0 0.0
    %879 = vmatpush1.msra.mxu0 0.0
    %880 = vmatprep.subr.mxu0 0.0
    %881 = vmatpush1.msra.mxu0 0.0
    %882 = vmatprep.subr.mxu0 0.0
    %883 = vmatpush1.msra.mxu0 0.0
    %884 = vmatprep.subr.mxu0 0.0
    %885 = vmatpush1.msra.mxu0 0.0
    %886 = vmatprep.subr.mxu0 0.0
    %887 = vmatpush1.msra.mxu0 0.0
    %888 = vmatprep.subr.mxu0 0.0
    %889 = vmatpush1.msra.mxu0 0.0
    %890 = vmatprep.subr.mxu0 0.0
    %891 = vmatpush1.msra.mxu0 0.0
    %892 = vmatprep.subr.mxu0 0.0
    %893 = vmatpush1.msra.mxu0 0.0
    %894 = vmatprep.subr.mxu0 0.0
    %895 = vmatpush1.msra.mxu0 0.0
    %896 = vmatprep.subr.mxu0 0.0
    %897 = vmatpush1.msra.mxu0 0.0
    %898 = vmatprep.subr.mxu0 0.0
    %899 = vmatpush1.msra.mxu0 0.0
    %900 = vmatprep.subr.mxu0 0.0
    %901 = vmatpush1.msra.mxu0 0.0
    %902 = vmatprep.subr.mxu0 0.0
    %903 = vmatpush1.msra.mxu0 0.0
    %904 = vmatprep.subr.mxu0 0.0
    %905 = vmatpush1.msra.mxu0 0.0
    %906 = vmatprep.subr.mxu0 0.0
    %907 = vmatpush1.msra.mxu0 0.0
    %908 = vmatprep.subr.mxu0 0.0
    %909 = vmatpush1.msra.mxu0 0.0
    %910 = vmatprep.subr.mxu0 0.0
    %911 = vmatpush1.msra.mxu0 0.0
    %912 = vmatprep.subr.mxu0 0.0
    %913 = vmatpush1.msra.mxu0 0.0
    %914 = vmatprep.subr.mxu0 0.0
    %915 = vmatpush1.msra.mxu0 0.0
    %916 = vmatprep.mubr.f32.mxu0 0.0
    %917 = vmatmul.mubr.f32.gmra.mrb[0].mxu0 %v472
    %v918 = vpop.f32.mrb[0].mxu0
    %v919 = vadd.f32 0.0, %v918
    %v920 = vpop.f32.mrb[0].mxu0
    %921 = vmatprep.mubr.f32.mxu0 0.0
    %922 = vmatmul.mubr.f32.gmra.mrb[0].mxu0 %v475
    %v923 = vpop.f32.mrb[0].mxu0
    %v924 = vadd.f32 0.0, %v923
    %v925 = vpop.f32.mrb[0].mxu0
    %926 = vdwg.mxu0
    %927 = vmatprep.subr.mxu0 0.0
    %928 = vmatpush1.msra.mxu0 %v446
    %929 = vmatprep.subr.mxu0 0.0
    %930 = vmatpush1.msra.mxu0 %v447
    %931 = vmatprep.subr.mxu0 0.0
    %932 = vmatpush1.msra.mxu0 %v448
    %933 = vmatprep.subr.mxu0 0.0
    %934 = vmatpush1.msra.mxu0 %v449
    %935 = vmatprep.subr.mxu0 0.0
    %936 = vmatpush1.msra.mxu0 0.0
    %937 = vmatprep.subr.mxu0 0.0
    %938 = vmatpush1.msra.mxu0 0.0
    %939 = vmatprep.subr.mxu0 0.0
    %940 = vmatpush1.msra.mxu0 0.0
    %941 = vmatprep.subr.mxu0 0.0
    %942 = vmatpush1.msra.mxu0 0.0
    %943 = vmatprep.subr.mxu0 0.0
    %944 = vmatpush1.msra.mxu0 0.0
    %945 = vmatprep.subr.mxu0 0.0
    %946 = vmatpush1.msra.mxu0 0.0
    %947 = vmatprep.subr.mxu0 0.0
    %948 = vmatpush1.msra.mxu0 0.0
    %949 = vmatprep.subr.mxu0 0.0
    %950 = vmatpush1.msra.mxu0 0.0
    %951 = vmatprep.subr.mxu0 0.0
    %952 = vmatpush1.msra.mxu0 0.0
    %953 = vmatprep.subr.mxu0 0.0
    %954 = vmatpush1.msra.mxu0 0.0
    %955 = vmatprep.subr.mxu0 0.0
    %956 = vmatpush1.msra.mxu0 0.0
    %957 = vmatprep.subr.mxu0 0.0
    %958 = vmatpush1.msra.mxu0 0.0
    %959 = vmatprep.subr.mxu0 0.0
    %960 = vmatpush1.msra.mxu0 0.0
    %961 = vmatprep.subr.mxu0 0.0
    %962 = vmatpush1.msra.mxu0 0.0
    %963 = vmatprep.subr.mxu0 0.0
    %964 = vmatpush1.msra.mxu0 0.0
    %965 = vmatprep.subr.mxu0 0.0
    %966 = vmatpush1.msra.mxu0 0.0
    %967 = vmatprep.subr.mxu0 0.0
    %968 = vmatpush1.msra.mxu0 0.0
    %969 = vmatprep.subr.mxu0 0.0
    %970 = vmatpush1.msra.mxu0 0.0
    %971 = vmatprep.subr.mxu0 0.0
    %972 = vmatpush1.msra.mxu0 0.0
    %973 = vmatprep.subr.mxu0 0.0
    %974 = vmatpush1.msra.mxu0 0.0
    %975 = vmatprep.subr.mxu0 0.0
    %976 = vmatpush1.msra.mxu0 0.0
    %977 = vmatprep.subr.mxu0 0.0
    %978 = vmatpush1.msra.mxu0 0.0
    %979 = vmatprep.subr.mxu0 0.0
    %980 = vmatpush1.msra.mxu0 0.0
    %981 = vmatprep.subr.mxu0 0.0
    %982 = vmatpush1.msra.mxu0 0.0
    %983 = vmatprep.subr.mxu0 0.0
    %984 = vmatpush1.msra.mxu0 0.0
    %985 = vmatprep.subr.mxu0 0.0
    %986 = vmatpush1.msra.mxu0 0.0
    %987 = vmatprep.subr.mxu0 0.0
    %988 = vmatpush1.msra.mxu0 0.0
    %989 = vmatprep.subr.mxu0 0.0
    %990 = vmatpush1.msra.mxu0 0.0
    %991 = vmatprep.mubr.f32.mxu0 0.0
    %992 = vmatmul.mubr.f32.gmra.mrb[0].mxu0 %v472
    %v993 = vpop.f32.mrb[0].mxu0
    %v994 = vadd.f32 0.0, %v993
    %v995 = vpop.f32.mrb[0].mxu0
    %996 = vmatprep.mubr.f32.mxu0 0.0
    %997 = vmatmul.mubr.f32.gmra.mrb[0].mxu0 %v475
    %v998 = vpop.f32.mrb[0].mxu0
    %v999 = vadd.f32 0.0, %v998
    %v1000 = vpop.f32.mrb[0].mxu0
    %1001 = vdwg.mxu0
    %1002 = vmatprep.subr.mxu0 0.0
    %1003 = vmatpush1.msra.mxu0 %v450
    %1004 = vmatprep.subr.mxu0 0.0
    %1005 = vmatpush1.msra.mxu0 %v451
    %1006 = vmatprep.subr.mxu0 0.0
    %1007 = vmatpush1.msra.mxu0 %v452
    %1008 = vmatprep.subr.mxu0 0.0
    %1009 = vmatpush1.msra.mxu0 %v453
    %1010 = vmatprep.subr.mxu0 0.0
    %1011 = vmatpush1.msra.mxu0 0.0
    %1012 = vmatprep.subr.mxu0 0.0
    %1013 = vmatpush1.msra.mxu0 0.0
    %1014 = vmatprep.subr.mxu0 0.0
    %1015 = vmatpush1.msra.mxu0 0.0
    %1016 = vmatprep.subr.mxu0 0.0
    %1017 = vmatpush1.msra.mxu0 0.0
    %1018 = vmatprep.subr.mxu0 0.0
    %1019 = vmatpush1.msra.mxu0 0.0
    %1020 = vmatprep.subr.mxu0 0.0
    %1021 = vmatpush1.msra.mxu0 0.0
    %1022 = vmatprep.subr.mxu0 0.0
    %1023 = vmatpush1.msra.mxu0 0.0
    %1024 = vmatprep.subr.mxu0 0.0
    %1025 = vmatpush1.msra.mxu0 0.0
    %1026 = vmatprep.subr.mxu0 0.0
    %1027 = vmatpush1.msra.mxu0 0.0
    %1028 = vmatprep.subr.mxu0 0.0
    %1029 = vmatpush1.msra.mxu0 0.0
    %1030 = vmatprep.subr.mxu0 0.0
    %1031 = vmatpush1.msra.mxu0 0.0
    %1032 = vmatprep.subr.mxu0 0.0
    %1033 = vmatpush1.msra.mxu0 0.0
    %1034 = vmatprep.subr.mxu0 0.0
    %1035 = vmatpush1.msra.mxu0 0.0
    %1036 = vmatprep.subr.mxu0 0.0
    %1037 = vmatpush1.msra.mxu0 0.0
    %1038 = vmatprep.subr.mxu0 0.0
    %1039 = vmatpush1.msra.mxu0 0.0
    %1040 = vmatprep.subr.mxu0 0.0
    %1041 = vmatpush1.msra.mxu0 0.0
    %1042 = vmatprep.subr.mxu0 0.0
    %1043 = vmatpush1.msra.mxu0 0.0
    %1044 = vmatprep.subr.mxu0 0.0
    %1045 = vmatpush1.msra.mxu0 0.0
    %1046 = vmatprep.subr.mxu0 0.0
    %1047 = vmatpush1.msra.mxu0 0.0
    %1048 = vmatprep.subr.mxu0 0.0
    %1049 = vmatpush1.msra.mxu0 0.0
    %1050 = vmatprep.subr.mxu0 0.0
    %1051 = vmatpush1.msra.mxu0 0.0
    %1052 = vmatprep.subr.mxu0 0.0
    %1053 = vmatpush1.msra.mxu0 0.0
    %1054 = vmatprep.subr.mxu0 0.0
    %1055 = vmatpush1.msra.mxu0 0.0
    %1056 = vmatprep.subr.mxu0 0.0
    %1057 = vmatpush1.msra.mxu0 0.0
    %1058 = vmatprep.subr.mxu0 0.0
    %1059 = vmatpush1.msra.mxu0 0.0
    %1060 = vmatprep.subr.mxu0 0.0
    %1061 = vmatpush1.msra.mxu0 0.0
    %1062 = vmatprep.subr.mxu0 0.0
    %1063 = vmatpush1.msra.mxu0 0.0
    %1064 = vmatprep.subr.mxu0 0.0
    %1065 = vmatpush1.msra.mxu0 0.0
    %1066 = vmatprep.mubr.f32.mxu0 0.0
    %1067 = vmatmul.mubr.f32.gmra.mrb[0].mxu0 %v472
    %v1068 = vpop.f32.mrb[0].mxu0
    %v1069 = vadd.f32 0.0, %v1068
    %v1070 = vpop.f32.mrb[0].mxu0
    %1071 = vmatprep.mubr.f32.mxu0 0.0
    %1072 = vmatmul.mubr.f32.gmra.mrb[0].mxu0 %v475
    %v1073 = vpop.f32.mrb[0].mxu0
    %v1074 = vadd.f32 0.0, %v1073
    %v1075 = vpop.f32.mrb[0].mxu0
    %1076 = vdwg.mxu0
    %1077 = vmatprep.subr.mxu0 0.0
    %1078 = vmatpush1.msra.mxu0 %v454
    %1079 = vmatprep.subr.mxu0 0.0
    %1080 = vmatpush1.msra.mxu0 %v455
    %1081 = vmatprep.subr.mxu0 0.0
    %1082 = vmatpush1.msra.mxu0 %v456
    %1083 = vmatprep.subr.mxu0 0.0
    %1084 = vmatpush1.msra.mxu0 %v457
    %1085 = vmatprep.subr.mxu0 0.0
    %1086 = vmatpush1.msra.mxu0 0.0
    %1087 = vmatprep.subr.mxu0 0.0
    %1088 = vmatpush1.msra.mxu0 0.0
    %1089 = vmatprep.subr.mxu0 0.0
    %1090 = vmatpush1.msra.mxu0 0.0
    %1091 = vmatprep.subr.mxu0 0.0
    %1092 = vmatpush1.msra.mxu0 0.0
    %1093 = vmatprep.subr.mxu0 0.0
    %1094 = vmatpush1.msra.mxu0 0.0
    %1095 = vmatprep.subr.mxu0 0.0
    %1096 = vmatpush1.msra.mxu0 0.0
    %1097 = vmatprep.subr.mxu0 0.0
    %1098 = vmatpush1.msra.mxu0 0.0
    %1099 = vmatprep.subr.mxu0 0.0
    %1100 = vmatpush1.msra.mxu0 0.0
    %1101 = vmatprep.subr.mxu0 0.0
    %1102 = vmatpush1.msra.mxu0 0.0
    %1103 = vmatprep.subr.mxu0 0.0
    %1104 = vmatpush1.msra.mxu0 0.0
    %1105 = vmatprep.subr.mxu0 0.0
    %1106 = vmatpush1.msra.mxu0 0.0
    %1107 = vmatprep.subr.mxu0 0.0
    %1108 = vmatpush1.msra.mxu0 0.0
    %1109 = vmatprep.subr.mxu0 0.0
    %1110 = vmatpush1.msra.mxu0 0.0
    %1111 = vmatprep.subr.mxu0 0.0
    %1112 = vmatpush1.msra.mxu0 0.0
    %1113 = vmatprep.subr.mxu0 0.0
    %1114 = vmatpush1.msra.mxu0 0.0
    %1115 = vmatprep.subr.mxu0 0.0
    %1116 = vmatpush1.msra.mxu0 0.0
    %1117 = vmatprep.subr.mxu0 0.0
    %1118 = vmatpush1.msra.mxu0 0.0
    %1119 = vmatprep.subr.mxu0 0.0
    %1120 = vmatpush1.msra.mxu0 0.0
    %1121 = vmatprep.subr.mxu0 0.0
    %1122 = vmatpush1.msra.mxu0 0.0
    %1123 = vmatprep.subr.mxu0 0.0
    %1124 = vmatpush1.msra.mxu0 0.0
    %1125 = vmatprep.subr.mxu0 0.0
    %1126 = vmatpush1.msra.mxu0 0.0
    %1127 = vmatprep.subr.mxu0 0.0
    %1128 = vmatpush1.msra.mxu0 0.0
    %1129 = vmatprep.subr.mxu0 0.0
    %1130 = vmatpush1.msra.mxu0 0.0
    %1131 = vmatprep.subr.mxu0 0.0
    %1132 = vmatpush1.msra.mxu0 0.0
    %1133 = vmatprep.subr.mxu0 0.0
    %1134 = vmatpush1.msra.mxu0 0.0
    %1135 = vmatprep.subr.mxu0 0.0
    %1136 = vmatpush1.msra.mxu0 0.0
    %1137 = vmatprep.subr.mxu0 0.0
    %1138 = vmatpush1.msra.mxu0 0.0
    %1139 = vmatprep.subr.mxu0 0.0
    %1140 = vmatpush1.msra.mxu0 0.0
    %1141 = vmatprep.mubr.f32.mxu0 0.0
    %1142 = vmatmul.mubr.f32.gmra.mrb[0].mxu0 %v472
    %v1143 = vpop.f32.mrb[0].mxu0
    %v1144 = vadd.f32 0.0, %v1143
    %v1145 = vpop.f32.mrb[0].mxu0
    %1146 = vmatprep.mubr.f32.mxu0 0.0
    %1147 = vmatmul.mubr.f32.gmra.mrb[0].mxu0 %v475
    %v1148 = vpop.f32.mrb[0].mxu0
    %v1149 = vadd.f32 0.0, %v1148
    %v1150 = vpop.f32.mrb[0].mxu0
    %1151 = vdwg.mxu0
    %1152 = vmatprep.subr.mxu0 0.0
    %1153 = vmatpush1.msra.mxu0 %v458
    %1154 = vmatprep.subr.mxu0 0.0
    %1155 = vmatpush1.msra.mxu0 %v459
    %1156 = vmatprep.subr.mxu0 0.0
    %1157 = vmatpush1.msra.mxu0 %v460
    %1158 = vmatprep.subr.mxu0 0.0
    %1159 = vmatpush1.msra.mxu0 %v461
    %1160 = vmatprep.subr.mxu0 0.0
    %1161 = vmatpush1.msra.mxu0 0.0
    %1162 = vmatprep.subr.mxu0 0.0
    %1163 = vmatpush1.msra.mxu0 0.0
    %1164 = vmatprep.subr.mxu0 0.0
    %1165 = vmatpush1.msra.mxu0 0.0
    %1166 = vmatprep.subr.mxu0 0.0
    %1167 = vmatpush1.msra.mxu0 0.0
    %1168 = vmatprep.subr.mxu0 0.0
    %1169 = vmatpush1.msra.mxu0 0.0
    %1170 = vmatprep.subr.mxu0 0.0
    %1171 = vmatpush1.msra.mxu0 0.0
    %1172 = vmatprep.subr.mxu0 0.0
    %1173 = vmatpush1.msra.mxu0 0.0
    %1174 = vmatprep.subr.mxu0 0.0
    %1175 = vmatpush1.msra.mxu0 0.0
    %1176 = vmatprep.subr.mxu0 0.0
    %1177 = vmatpush1.msra.mxu0 0.0
    %1178 = vmatprep.subr.mxu0 0.0
    %1179 = vmatpush1.msra.mxu0 0.0
    %1180 = vmatprep.subr.mxu0 0.0
    %1181 = vmatpush1.msra.mxu0 0.0
    %1182 = vmatprep.subr.mxu0 0.0
    %1183 = vmatpush1.msra.mxu0 0.0
    %1184 = vmatprep.subr.mxu0 0.0
    %1185 = vmatpush1.msra.mxu0 0.0
    %1186 = vmatprep.subr.mxu0 0.0
    %1187 = vmatpush1.msra.mxu0 0.0
    %1188 = vmatprep.subr.mxu0 0.0
    %1189 = vmatpush1.msra.mxu0 0.0
    %1190 = vmatprep.subr.mxu0 0.0
    %1191 = vmatpush1.msra.mxu0 0.0
    %1192 = vmatprep.subr.mxu0 0.0
    %1193 = vmatpush1.msra.mxu0 0.0
    %1194 = vmatprep.subr.mxu0 0.0
    %1195 = vmatpush1.msra.mxu0 0.0
    %1196 = vmatprep.subr.mxu0 0.0
    %1197 = vmatpush1.msra.mxu0 0.0
    %1198 = vmatprep.subr.mxu0 0.0
    %1199 = vmatpush1.msra.mxu0 0.0
    %1200 = vmatprep.subr.mxu0 0.0
    %1201 = vmatpush1.msra.mxu0 0.0
    %1202 = vmatprep.subr.mxu0 0.0
    %1203 = vmatpush1.msra.mxu0 0.0
    %1204 = vmatprep.subr.mxu0 0.0
    %1205 = vmatpush1.msra.mxu0 0.0
    %1206 = vmatprep.subr.mxu0 0.0
    %1207 = vmatpush1.msra.mxu0 0.0
    %1208 = vmatprep.subr.mxu0 0.0
    %1209 = vmatpush1.msra.mxu0 0.0
    %1210 = vmatprep.subr.mxu0 0.0
    %1211 = vmatpush1.msra.mxu0 0.0
    %1212 = vmatprep.subr.mxu0 0.0
    %1213 = vmatpush1.msra.mxu0 0.0
    %1214 = vmatprep.subr.mxu0 0.0
    %1215 = vmatpush1.msra.mxu0 0.0
    %1216 = vmatprep.mubr.f32.mxu0 0.0
    %1217 = vmatmul.mubr.f32.gmra.mrb[0].mxu0 %v472
    %v1218 = vpop.f32.mrb[0].mxu0
    %v1219 = vadd.f32 0.0, %v1218
    %v1220 = vpop.f32.mrb[0].mxu0
    %1221 = vmatprep.mubr.f32.mxu0 0.0
    %1222 = vmatmul.mubr.f32.gmra.mrb[0].mxu0 %v475
    %v1223 = vpop.f32.mrb[0].mxu0
    %v1224 = vadd.f32 0.0, %v1223
    %v1225 = vpop.f32.mrb[0].mxu0
    %1226 = vdwg.mxu0
    %1227 = vmatprep.subr.mxu0 0.0
    %1228 = vmatpush1.msra.mxu0 %v462
    %1229 = vmatprep.subr.mxu0 0.0
    %1230 = vmatpush1.msra.mxu0 %v463
    %1231 = vmatprep.subr.mxu0 0.0
    %1232 = vmatpush1.msra.mxu0 %v464
    %1233 = vmatprep.subr.mxu0 0.0
    %1234 = vmatpush1.msra.mxu0 %v465
    %1235 = vmatprep.subr.mxu0 0.0
    %1236 = vmatpush1.msra.mxu0 0.0
    %1237 = vmatprep.subr.mxu0 0.0
    %1238 = vmatpush1.msra.mxu0 0.0
    %1239 = vmatprep.subr.mxu0 0.0
    %1240 = vmatpush1.msra.mxu0 0.0
    %1241 = vmatprep.subr.mxu0 0.0
    %1242 = vmatpush1.msra.mxu0 0.0
    %1243 = vmatprep.subr.mxu0 0.0
    %1244 = vmatpush1.msra.mxu0 0.0
    %1245 = vmatprep.subr.mxu0 0.0
    %1246 = vmatpush1.msra.mxu0 0.0
    %1247 = vmatprep.subr.mxu0 0.0
    %1248 = vmatpush1.msra.mxu0 0.0
    %1249 = vmatprep.subr.mxu0 0.0
    %1250 = vmatpush1.msra.mxu0 0.0
    %1251 = vmatprep.subr.mxu0 0.0
    %1252 = vmatpush1.msra.mxu0 0.0
    %1253 = vmatprep.subr.mxu0 0.0
    %1254 = vmatpush1.msra.mxu0 0.0
    %1255 = vmatprep.subr.mxu0 0.0
    %1256 = vmatpush1.msra.mxu0 0.0
    %1257 = vmatprep.subr.mxu0 0.0
    %1258 = vmatpush1.msra.mxu0 0.0
    %1259 = vmatprep.subr.mxu0 0.0
    %1260 = vmatpush1.msra.mxu0 0.0
    %1261 = vmatprep.subr.mxu0 0.0
    %1262 = vmatpush1.msra.mxu0 0.0
    %1263 = vmatprep.subr.mxu0 0.0
    %1264 = vmatpush1.msra.mxu0 0.0
    %1265 = vmatprep.subr.mxu0 0.0
    %1266 = vmatpush1.msra.mxu0 0.0
    %1267 = vmatprep.subr.mxu0 0.0
    %1268 = vmatpush1.msra.mxu0 0.0
    %1269 = vmatprep.subr.mxu0 0.0
    %1270 = vmatpush1.msra.mxu0 0.0
    %1271 = vmatprep.subr.mxu0 0.0
    %1272 = vmatpush1.msra.mxu0 0.0
    %1273 = vmatprep.subr.mxu0 0.0
    %1274 = vmatpush1.msra.mxu0 0.0
    %1275 = vmatprep.subr.mxu0 0.0
    %1276 = vmatpush1.msra.mxu0 0.0
    %1277 = vmatprep.subr.mxu0 0.0
    %1278 = vmatpush1.msra.mxu0 0.0
    %1279 = vmatprep.subr.mxu0 0.0
    %1280 = vmatpush1.msra.mxu0 0.0
    %1281 = vmatprep.subr.mxu0 0.0
    %1282 = vmatpush1.msra.mxu0 0.0
    %1283 = vmatprep.subr.mxu0 0.0
    %1284 = vmatpush1.msra.mxu0 0.0
    %1285 = vmatprep.subr.mxu0 0.0
    %1286 = vmatpush1.msra.mxu0 0.0
    %1287 = vmatprep.subr.mxu0 0.0
    %1288 = vmatpush1.msra.mxu0 0.0
    %1289 = vmatprep.subr.mxu0 0.0
    %1290 = vmatpush1.msra.mxu0 0.0
    %1291 = vmatprep.mubr.f32.mxu0 0.0
    %1292 = vmatmul.mubr.f32.gmra.mrb[0].mxu0 %v472
    %v1293 = vpop.f32.mrb[0].mxu0
    %v1294 = vadd.f32 0.0, %v1293
    %v1295 = vpop.f32.mrb[0].mxu0
    %1296 = vmatprep.mubr.f32.mxu0 0.0
    %1297 = vmatmul.mubr.f32.gmra.mrb[0].mxu0 %v475
    %v1298 = vpop.f32.mrb[0].mxu0
    %v1299 = vadd.f32 0.0, %v1298
    %v1300 = vpop.f32.mrb[0].mxu0
    %1301 = vdwg.mxu0
    %1302 = vmatprep.subr.mxu0 0.0
    %1303 = vmatpush1.msra.mxu0 %v466
    %1304 = vmatprep.subr.mxu0 0.0
    %1305 = vmatpush1.msra.mxu0 %v467
    %1306 = vmatprep.subr.mxu0 0.0
    %1307 = vmatpush1.msra.mxu0 %v468
    %1308 = vmatprep.subr.mxu0 0.0
    %1309 = vmatpush1.msra.mxu0 %v469
    %1310 = vmatprep.subr.mxu0 0.0
    %1311 = vmatpush1.msra.mxu0 0.0
    %1312 = vmatprep.subr.mxu0 0.0
    %1313 = vmatpush1.msra.mxu0 0.0
    %1314 = vmatprep.subr.mxu0 0.0
    %1315 = vmatpush1.msra.mxu0 0.0
    %1316 = vmatprep.subr.mxu0 0.0
    %1317 = vmatpush1.msra.mxu0 0.0
    %1318 = vmatprep.subr.mxu0 0.0
    %1319 = vmatpush1.msra.mxu0 0.0
    %1320 = vmatprep.subr.mxu0 0.0
    %1321 = vmatpush1.msra.mxu0 0.0
    %1322 = vmatprep.subr.mxu0 0.0
    %1323 = vmatpush1.msra.mxu0 0.0
    %1324 = vmatprep.subr.mxu0 0.0
    %1325 = vmatpush1.msra.mxu0 0.0
    %1326 = vmatprep.subr.mxu0 0.0
    %1327 = vmatpush1.msra.mxu0 0.0
    %1328 = vmatprep.subr.mxu0 0.0
    %1329 = vmatpush1.msra.mxu0 0.0
    %1330 = vmatprep.subr.mxu0 0.0
    %1331 = vmatpush1.msra.mxu0 0.0
    %1332 = vmatprep.subr.mxu0 0.0
    %1333 = vmatpush1.msra.mxu0 0.0
    %1334 = vmatprep.subr.mxu0 0.0
    %1335 = vmatpush1.msra.mxu0 0.0
    %1336 = vmatprep.subr.mxu0 0.0
    %1337 = vmatpush1.msra.mxu0 0.0
    %1338 = vmatprep.subr.mxu0 0.0
    %1339 = vmatpush1.msra.mxu0 0.0
    %1340 = vmatprep.subr.mxu0 0.0
    %1341 = vmatpush1.msra.mxu0 0.0
    %1342 = vmatprep.subr.mxu0 0.0
    %1343 = vmatpush1.msra.mxu0 0.0
    %1344 = vmatprep.subr.mxu0 0.0
    %1345 = vmatpush1.msra.mxu0 0.0
    %1346 = vmatprep.subr.mxu0 0.0
    %1347 = vmatpush1.msra.mxu0 0.0
    %1348 = vmatprep.subr.mxu0 0.0
    %1349 = vmatpush1.msra.mxu0 0.0
    %1350 = vmatprep.subr.mxu0 0.0
    %1351 = vmatpush1.msra.mxu0 0.0
    %1352 = vmatprep.subr.mxu0 0.0
    %1353 = vmatpush1.msra.mxu0 0.0
    %1354 = vmatprep.subr.mxu0 0.0
    %1355 = vmatpush1.msra.mxu0 0.0
    %1356 = vmatprep.subr.mxu0 0.0
    %1357 = vmatpush1.msra.mxu0 0.0
    %1358 = vmatprep.subr.mxu0 0.0
    %1359 = vmatpush1.msra.mxu0 0.0
    %1360 = vmatprep.subr.mxu0 0.0
    %1361 = vmatpush1.msra.mxu0 0.0
    %1362 = vmatprep.subr.mxu0 0.0
    %1363 = vmatpush1.msra.mxu0 0.0
    %1364 = vmatprep.subr.mxu0 0.0
    %1365 = vmatpush1.msra.mxu0 0.0
    %1366 = vmatprep.mubr.f32.mxu0 0.0
    %1367 = vmatmul.mubr.f32.gmra.mrb[0].mxu0 %v472
    %v1368 = vpop.f32.mrb[0].mxu0
    %v1369 = vadd.f32 0.0, %v1368
    %v1370 = vpop.f32.mrb[0].mxu0
    %1371 = vmatprep.mubr.f32.mxu0 0.0
    %1372 = vmatmul.mubr.f32.gmra.mrb[0].mxu0 %v475
    %v1373 = vpop.f32.mrb[0].mxu0
    %v1374 = vadd.f32 0.0, %v1373
    %v1375 = vpop.f32.mrb[0].mxu0
    %1376 = vdwg.mxu0
    %vm1377 = vcmask 64512
    %v1379 = vsel %vm1377, %v544, 0
    %v1382 = vsel %vm1377, %v844, 0
    %1384 = vmatprep.subr.mxu0 0.0
    %1385 = vmatpush1.xpose.msra.mxu0 %v1382
    %1386 = vmatprep.subr.mxu0 0.0
    %1387 = vmatpush1.xpose.msra.mxu0 0.0
    %1388 = vmatprep.subr.mxu0 0.0
    %1389 = vmatpush1.xpose.msra.mxu0 0.0
    %1390 = vmatprep.subr.mxu0 0.0
    %1391 = vmatpush1.xpose.msra.mxu0 0.0
    %1392 = vmatprep.subr.mxu0 0.0
    %1393 = vmatpush1.xpose.msra.mxu0 0.0
    %1394 = vmatprep.subr.mxu0 0.0
    %1395 = vmatpush1.xpose.msra.mxu0 0.0
    %1396 = vmatprep.subr.mxu0 0.0
    %1397 = vmatpush1.xpose.msra.mxu0 0.0
    %1398 = vmatprep.subr.mxu0 0.0
    %1399 = vmatpush1.xpose.msra.mxu0 0.0
    %1400 = vmatprep.subr.mxu0 0.0
    %1401 = vmatpush1.xpose.msra.mxu0 0.0
    %1402 = vmatprep.subr.mxu0 0.0
    %1403 = vmatpush1.xpose.msra.mxu0 0.0
    %1404 = vmatprep.subr.mxu0 0.0
    %1405 = vmatpush1.xpose.msra.mxu0 0.0
    %1406 = vmatprep.subr.mxu0 0.0
    %1407 = vmatpush1.xpose.msra.mxu0 0.0
    %1408 = vmatprep.subr.mxu0 0.0
    %1409 = vmatpush1.xpose.msra.mxu0 0.0
    %1410 = vmatprep.subr.mxu0 0.0
    %1411 = vmatpush1.xpose.msra.mxu0 0.0
    %1412 = vmatprep.subr.mxu0 0.0
    %1413 = vmatpush1.xpose.msra.mxu0 0.0
    %1414 = vmatprep.subr.mxu0 0.0
    %1415 = vmatpush1.xpose.msra.mxu0 0.0
    %1416 = vmatprep.subr.mxu0 0.0
    %1417 = vmatpush1.xpose.msra.mxu0 0.0
    %1418 = vmatprep.subr.mxu0 0.0
    %1419 = vmatpush1.xpose.msra.mxu0 0.0
    %1420 = vmatprep.subr.mxu0 0.0
    %1421 = vmatpush1.xpose.msra.mxu0 0.0
    %1422 = vmatprep.subr.mxu0 0.0
    %1423 = vmatpush1.xpose.msra.mxu0 0.0
    %1424 = vmatprep.subr.mxu0 0.0
    %1425 = vmatpush1.xpose.msra.mxu0 0.0
    %1426 = vmatprep.subr.mxu0 0.0
    %1427 = vmatpush1.xpose.msra.mxu0 0.0
    %1428 = vmatprep.subr.mxu0 0.0
    %1429 = vmatpush1.xpose.msra.mxu0 0.0
    %1430 = vmatprep.subr.mxu0 0.0
    %1431 = vmatpush1.xpose.msra.mxu0 0.0
    %1432 = vmatprep.subr.mxu0 0.0
    %1433 = vmatpush1.xpose.msra.mxu0 0.0
    %1434 = vmatprep.subr.mxu0 0.0
    %1435 = vmatpush1.xpose.msra.mxu0 0.0
    %1436 = vmatprep.subr.mxu0 0.0
    %1437 = vmatpush1.xpose.msra.mxu0 0.0
    %1438 = vmatprep.subr.mxu0 0.0
    %1439 = vmatpush1.xpose.msra.mxu0 0.0
    %1440 = vmatprep.subr.mxu0 0.0
    %1441 = vmatpush1.xpose.msra.mxu0 0.0
    %1442 = vmatprep.subr.mxu0 0.0
    %1443 = vmatpush1.xpose.msra.mxu0 0.0
    %1444 = vmatprep.subr.mxu0 0.0
    %1445 = vmatpush1.xpose.msra.mxu0 0.0
    %1446 = vmatprep.subr.mxu0 0.0
    %1447 = vmatpush1.xpose.msra.mxu0 0.0
    %1448 = vmatprep.mubr.f32.mxu0 0.0
    %1449 = vmatmul.mubr.f32.gmra.mrb[0].mxu0 %v1379
    %v1450 = vpop.f32.mrb[0].mxu0
    %v1451 = vadd.f32 0.0, %v1450
    %v1452 = vpop.f32.mrb[0].mxu0
    %1453 = vdwg.mxu0
    %v1455 = vsel %vm1377, %v549, 0
    %v1458 = vsel %vm1377, %v849, 0
    %1460 = vmatprep.subr.mxu0 0.0
    %1461 = vmatpush1.xpose.msra.mxu0 %v1458
    %1462 = vmatprep.subr.mxu0 0.0
    %1463 = vmatpush1.xpose.msra.mxu0 0.0
    %1464 = vmatprep.subr.mxu0 0.0
    %1465 = vmatpush1.xpose.msra.mxu0 0.0
    %1466 = vmatprep.subr.mxu0 0.0
    %1467 = vmatpush1.xpose.msra.mxu0 0.0
    %1468 = vmatprep.subr.mxu0 0.0
    %1469 = vmatpush1.xpose.msra.mxu0 0.0
    %1470 = vmatprep.subr.mxu0 0.0
    %1471 = vmatpush1.xpose.msra.mxu0 0.0
    %1472 = vmatprep.subr.mxu0 0.0
    %1473 = vmatpush1.xpose.msra.mxu0 0.0
    %1474 = vmatprep.subr.mxu0 0.0
    %1475 = vmatpush1.xpose.msra.mxu0 0.0
    %1476 = vmatprep.subr.mxu0 0.0
    %1477 = vmatpush1.xpose.msra.mxu0 0.0
    %1478 = vmatprep.subr.mxu0 0.0
    %1479 = vmatpush1.xpose.msra.mxu0 0.0
    %1480 = vmatprep.subr.mxu0 0.0
    %1481 = vmatpush1.xpose.msra.mxu0 0.0
    %1482 = vmatprep.subr.mxu0 0.0
    %1483 = vmatpush1.xpose.msra.mxu0 0.0
    %1484 = vmatprep.subr.mxu0 0.0
    %1485 = vmatpush1.xpose.msra.mxu0 0.0
    %1486 = vmatprep.subr.mxu0 0.0
    %1487 = vmatpush1.xpose.msra.mxu0 0.0
    %1488 = vmatprep.subr.mxu0 0.0
    %1489 = vmatpush1.xpose.msra.mxu0 0.0
    %1490 = vmatprep.subr.mxu0 0.0
    %1491 = vmatpush1.xpose.msra.mxu0 0.0
    %1492 = vmatprep.subr.mxu0 0.0
    %1493 = vmatpush1.xpose.msra.mxu0 0.0
    %1494 = vmatprep.subr.mxu0 0.0
    %1495 = vmatpush1.xpose.msra.mxu0 0.0
    %1496 = vmatprep.subr.mxu0 0.0
    %1497 = vmatpush1.xpose.msra.mxu0 0.0
    %1498 = vmatprep.subr.mxu0 0.0
    %1499 = vmatpush1.xpose.msra.mxu0 0.0
    %1500 = vmatprep.subr.mxu0 0.0
    %1501 = vmatpush1.xpose.msra.mxu0 0.0
    %1502 = vmatprep.subr.mxu0 0.0
    %1503 = vmatpush1.xpose.msra.mxu0 0.0
    %1504 = vmatprep.subr.mxu0 0.0
    %1505 = vmatpush1.xpose.msra.mxu0 0.0
    %1506 = vmatprep.subr.mxu0 0.0
    %1507 = vmatpush1.xpose.msra.mxu0 0.0
    %1508 = vmatprep.subr.mxu0 0.0
    %1509 = vmatpush1.xpose.msra.mxu0 0.0
    %1510 = vmatprep.subr.mxu0 0.0
    %1511 = vmatpush1.xpose.msra.mxu0 0.0
    %1512 = vmatprep.subr.mxu0 0.0
    %1513 = vmatpush1.xpose.msra.mxu0 0.0
    %1514 = vmatprep.subr.mxu0 0.0
    %1515 = vmatpush1.xpose.msra.mxu0 0.0
    %1516 = vmatprep.subr.mxu0 0.0
    %1517 = vmatpush1.xpose.msra.mxu0 0.0
    %1518 = vmatprep.subr.mxu0 0.0
    %1519 = vmatpush1.xpose.msra.mxu0 0.0
    %1520 = vmatprep.subr.mxu0 0.0
    %1521 = vmatpush1.xpose.msra.mxu0 0.0
    %1522 = vmatprep.subr.mxu0 0.0
    %1523 = vmatpush1.xpose.msra.mxu0 0.0
    %1524 = vmatprep.mubr.f32.mxu0 0.0
    %1525 = vmatmul.mubr.f32.gmra.mrb[0].mxu0 %v1455
    %v1526 = vpop.f32.mrb[0].mxu0
    %v1527 = vadd.f32 0.0, %v1526
    %v1528 = vpop.f32.mrb[0].mxu0
    %1529 = vdwg.mxu0
    %v1531 = vsel %vm1377, %v619, 0
    %v1534 = vsel %vm1377, %v919, 0
    %1536 = vmatprep.subr.mxu0 0.0
    %1537 = vmatpush1.xpose.msra.mxu0 %v1534
    %1538 = vmatprep.subr.mxu0 0.0
    %1539 = vmatpush1.xpose.msra.mxu0 0.0
    %1540 = vmatprep.subr.mxu0 0.0
    %1541 = vmatpush1.xpose.msra.mxu0 0.0
    %1542 = vmatprep.subr.mxu0 0.0
    %1543 = vmatpush1.xpose.msra.mxu0 0.0
    %1544 = vmatprep.subr.mxu0 0.0
    %1545 = vmatpush1.xpose.msra.mxu0 0.0
    %1546 = vmatprep.subr.mxu0 0.0
    %1547 = vmatpush1.xpose.msra.mxu0 0.0
    %1548 = vmatprep.subr.mxu0 0.0
    %1549 = vmatpush1.xpose.msra.mxu0 0.0
    %1550 = vmatprep.subr.mxu0 0.0
    %1551 = vmatpush1.xpose.msra.mxu0 0.0
    %1552 = vmatprep.subr.mxu0 0.0
    %1553 = vmatpush1.xpose.msra.mxu0 0.0
    %1554 = vmatprep.subr.mxu0 0.0
    %1555 = vmatpush1.xpose.msra.mxu0 0.0
    %1556 = vmatprep.subr.mxu0 0.0
    %1557 = vmatpush1.xpose.msra.mxu0 0.0
    %1558 = vmatprep.subr.mxu0 0.0
    %1559 = vmatpush1.xpose.msra.mxu0 0.0
    %1560 = vmatprep.subr.mxu0 0.0
    %1561 = vmatpush1.xpose.msra.mxu0 0.0
    %1562 = vmatprep.subr.mxu0 0.0
    %1563 = vmatpush1.xpose.msra.mxu0 0.0
    %1564 = vmatprep.subr.mxu0 0.0
    %1565 = vmatpush1.xpose.msra.mxu0 0.0
    %1566 = vmatprep.subr.mxu0 0.0
    %1567 = vmatpush1.xpose.msra.mxu0 0.0
    %1568 = vmatprep.subr.mxu0 0.0
    %1569 = vmatpush1.xpose.msra.mxu0 0.0
    %1570 = vmatprep.subr.mxu0 0.0
    %1571 = vmatpush1.xpose.msra.mxu0 0.0
    %1572 = vmatprep.subr.mxu0 0.0
    %1573 = vmatpush1.xpose.msra.mxu0 0.0
    %1574 = vmatprep.subr.mxu0 0.0
    %1575 = vmatpush1.xpose.msra.mxu0 0.0
    %1576 = vmatprep.subr.mxu0 0.0
    %1577 = vmatpush1.xpose.msra.mxu0 0.0
    %1578 = vmatprep.subr.mxu0 0.0
    %1579 = vmatpush1.xpose.msra.mxu0 0.0
    %1580 = vmatprep.subr.mxu0 0.0
    %1581 = vmatpush1.xpose.msra.mxu0 0.0
    %1582 = vmatprep.subr.mxu0 0.0
    %1583 = vmatpush1.xpose.msra.mxu0 0.0
    %1584 = vmatprep.subr.mxu0 0.0
    %1585 = vmatpush1.xpose.msra.mxu0 0.0
    %1586 = vmatprep.subr.mxu0 0.0
    %1587 = vmatpush1.xpose.msra.mxu0 0.0
    %1588 = vmatprep.subr.mxu0 0.0
    %1589 = vmatpush1.xpose.msra.mxu0 0.0
    %1590 = vmatprep.subr.mxu0 0.0
    %1591 = vmatpush1.xpose.msra.mxu0 0.0
    %1592 = vmatprep.subr.mxu0 0.0
    %1593 = vmatpush1.xpose.msra.mxu0 0.0
    %1594 = vmatprep.subr.mxu0 0.0
    %1595 = vmatpush1.xpose.msra.mxu0 0.0
    %1596 = vmatprep.subr.mxu0 0.0
    %1597 = vmatpush1.xpose.msra.mxu0 0.0
    %1598 = vmatprep.subr.mxu0 0.0
    %1599 = vmatpush1.xpose.msra.mxu0 0.0
    %1600 = vmatprep.mubr.f32.mxu0 0.0
    %1601 = vmatmul.mubr.f32.gmra.mrb[0].mxu0 %v1531
    %v1602 = vpop.f32.mrb[0].mxu0
    %v1603 = vadd.f32 0.0, %v1602
    %v1604 = vpop.f32.mrb[0].mxu0
    %1605 = vdwg.mxu0
    %v1607 = vsel %vm1377, %v624, 0
    %v1610 = vsel %vm1377, %v924, 0
    %1612 = vmatprep.subr.mxu0 0.0
    %1613 = vmatpush1.xpose.msra.mxu0 %v1610
    %1614 = vmatprep.subr.mxu0 0.0
    %1615 = vmatpush1.xpose.msra.mxu0 0.0
    %1616 = vmatprep.subr.mxu0 0.0
    %1617 = vmatpush1.xpose.msra.mxu0 0.0
    %1618 = vmatprep.subr.mxu0 0.0
    %1619 = vmatpush1.xpose.msra.mxu0 0.0
    %1620 = vmatprep.subr.mxu0 0.0
    %1621 = vmatpush1.xpose.msra.mxu0 0.0
    %1622 = vmatprep.subr.mxu0 0.0
    %1623 = vmatpush1.xpose.msra.mxu0 0.0
    %1624 = vmatprep.subr.mxu0 0.0
    %1625 = vmatpush1.xpose.msra.mxu0 0.0
    %1626 = vmatprep.subr.mxu0 0.0
    %1627 = vmatpush1.xpose.msra.mxu0 0.0
    %1628 = vmatprep.subr.mxu0 0.0
    %1629 = vmatpush1.xpose.msra.mxu0 0.0
    %1630 = vmatprep.subr.mxu0 0.0
    %1631 = vmatpush1.xpose.msra.mxu0 0.0
    %1632 = vmatprep.subr.mxu0 0.0
    %1633 = vmatpush1.xpose.msra.mxu0 0.0
    %1634 = vmatprep.subr.mxu0 0.0
    %1635 = vmatpush1.xpose.msra.mxu0 0.0
    %1636 = vmatprep.subr.mxu0 0.0
    %1637 = vmatpush1.xpose.msra.mxu0 0.0
    %1638 = vmatprep.subr.mxu0 0.0
    %1639 = vmatpush1.xpose.msra.mxu0 0.0
    %1640 = vmatprep.subr.mxu0 0.0
    %1641 = vmatpush1.xpose.msra.mxu0 0.0
    %1642 = vmatprep.subr.mxu0 0.0
    %1643 = vmatpush1.xpose.msra.mxu0 0.0
    %1644 = vmatprep.subr.mxu0 0.0
    %1645 = vmatpush1.xpose.msra.mxu0 0.0
    %1646 = vmatprep.subr.mxu0 0.0
    %1647 = vmatpush1.xpose.msra.mxu0 0.0
    %1648 = vmatprep.subr.mxu0 0.0
    %1649 = vmatpush1.xpose.msra.mxu0 0.0
    %1650 = vmatprep.subr.mxu0 0.0
    %1651 = vmatpush1.xpose.msra.mxu0 0.0
    %1652 = vmatprep.subr.mxu0 0.0
    %1653 = vmatpush1.xpose.msra.mxu0 0.0
    %1654 = vmatprep.subr.mxu0 0.0
    %1655 = vmatpush1.xpose.msra.mxu0 0.0
    %1656 = vmatprep.subr.mxu0 0.0
    %1657 = vmatpush1.xpose.msra.mxu0 0.0
    %1658 = vmatprep.subr.mxu0 0.0
    %1659 = vmatpush1.xpose.msra.mxu0 0.0
    %1660 = vmatprep.subr.mxu0 0.0
    %1661 = vmatpush1.xpose.msra.mxu0 0.0
    %1662 = vmatprep.subr.mxu0 0.0
    %1663 = vmatpush1.xpose.msra.mxu0 0.0
    %1664 = vmatprep.subr.mxu0 0.0
    %1665 = vmatpush1.xpose.msra.mxu0 0.0
    %1666 = vmatprep.subr.mxu0 0.0
    %1667 = vmatpush1.xpose.msra.mxu0 0.0
    %1668 = vmatprep.subr.mxu0 0.0
    %1669 = vmatpush1.xpose.msra.mxu0 0.0
    %1670 = vmatprep.subr.mxu0 0.0
    %1671 = vmatpush1.xpose.msra.mxu0 0.0
    %1672 = vmatprep.subr.mxu0 0.0
    %1673 = vmatpush1.xpose.msra.mxu0 0.0
    %1674 = vmatprep.subr.mxu0 0.0
    %1675 = vmatpush1.xpose.msra.mxu0 0.0
    %1676 = vmatprep.mubr.f32.mxu0 0.0
    %1677 = vmatmul.mubr.f32.gmra.mrb[0].mxu0 %v1607
    %v1678 = vpop.f32.mrb[0].mxu0
    %v1679 = vadd.f32 0.0, %v1678
    %v1680 = vpop.f32.mrb[0].mxu0
    %1681 = vdwg.mxu0
    %v1683 = vsel %vm1377, %v694, 0
    %v1686 = vsel %vm1377, %v994, 0
    %1688 = vmatprep.subr.mxu0 0.0
    %1689 = vmatpush1.xpose.msra.mxu0 %v1686
    %1690 = vmatprep.subr.mxu0 0.0
    %1691 = vmatpush1.xpose.msra.mxu0 0.0
    %1692 = vmatprep.subr.mxu0 0.0
    %1693 = vmatpush1.xpose.msra.mxu0 0.0
    %1694 = vmatprep.subr.mxu0 0.0
    %1695 = vmatpush1.xpose.msra.mxu0 0.0
    %1696 = vmatprep.subr.mxu0 0.0
    %1697 = vmatpush1.xpose.msra.mxu0 0.0
    %1698 = vmatprep.subr.mxu0 0.0
    %1699 = vmatpush1.xpose.msra.mxu0 0.0
    %1700 = vmatprep.subr.mxu0 0.0
    %1701 = vmatpush1.xpose.msra.mxu0 0.0
    %1702 = vmatprep.subr.mxu0 0.0
    %1703 = vmatpush1.xpose.msra.mxu0 0.0
    %1704 = vmatprep.subr.mxu0 0.0
    %1705 = vmatpush1.xpose.msra.mxu0 0.0
    %1706 = vmatprep.subr.mxu0 0.0
    %1707 = vmatpush1.xpose.msra.mxu0 0.0
    %1708 = vmatprep.subr.mxu0 0.0
    %1709 = vmatpush1.xpose.msra.mxu0 0.0
    %1710 = vmatprep.subr.mxu0 0.0
    %1711 = vmatpush1.xpose.msra.mxu0 0.0
    %1712 = vmatprep.subr.mxu0 0.0
    %1713 = vmatpush1.xpose.msra.mxu0 0.0
    %1714 = vmatprep.subr.mxu0 0.0
    %1715 = vmatpush1.xpose.msra.mxu0 0.0
    %1716 = vmatprep.subr.mxu0 0.0
    %1717 = vmatpush1.xpose.msra.mxu0 0.0
    %1718 = vmatprep.subr.mxu0 0.0
    %1719 = vmatpush1.xpose.msra.mxu0 0.0
    %1720 = vmatprep.subr.mxu0 0.0
    %1721 = vmatpush1.xpose.msra.mxu0 0.0
    %1722 = vmatprep.subr.mxu0 0.0
    %1723 = vmatpush1.xpose.msra.mxu0 0.0
    %1724 = vmatprep.subr.mxu0 0.0
    %1725 = vmatpush1.xpose.msra.mxu0 0.0
    %1726 = vmatprep.subr.mxu0 0.0
    %1727 = vmatpush1.xpose.msra.mxu0 0.0
    %1728 = vmatprep.subr.mxu0 0.0
    %1729 = vmatpush1.xpose.msra.mxu0 0.0
    %1730 = vmatprep.subr.mxu0 0.0
    %1731 = vmatpush1.xpose.msra.mxu0 0.0
    %1732 = vmatprep.subr.mxu0 0.0
    %1733 = vmatpush1.xpose.msra.mxu0 0.0
    %1734 = vmatprep.subr.mxu0 0.0
    %1735 = vmatpush1.xpose.msra.mxu0 0.0
    %1736 = vmatprep.subr.mxu0 0.0
    %1737 = vmatpush1.xpose.msra.mxu0 0.0
    %1738 = vmatprep.subr.mxu0 0.0
    %1739 = vmatpush1.xpose.msra.mxu0 0.0
    %1740 = vmatprep.subr.mxu0 0.0
    %1741 = vmatpush1.xpose.msra.mxu0 0.0
    %1742 = vmatprep.subr.mxu0 0.0
    %1743 = vmatpush1.xpose.msra.mxu0 0.0
    %1744 = vmatprep.subr.mxu0 0.0
    %1745 = vmatpush1.xpose.msra.mxu0 0.0
    %1746 = vmatprep.subr.mxu0 0.0
    %1747 = vmatpush1.xpose.msra.mxu0 0.0
    %1748 = vmatprep.subr.mxu0 0.0
    %1749 = vmatpush1.xpose.msra.mxu0 0.0
    %1750 = vmatprep.subr.mxu0 0.0
    %1751 = vmatpush1.xpose.msra.mxu0 0.0
    %1752 = vmatprep.mubr.f32.mxu0 0.0
    %1753 = vmatmul.mubr.f32.gmra.mrb[0].mxu0 %v1683
    %v1754 = vpop.f32.mrb[0].mxu0
    %v1755 = vadd.f32 0.0, %v1754
    %v1756 = vpop.f32.mrb[0].mxu0
    %1757 = vdwg.mxu0
    %v1759 = vsel %vm1377, %v699, 0
    %v1762 = vsel %vm1377, %v999, 0
    %1764 = vmatprep.subr.mxu0 0.0
    %1765 = vmatpush1.xpose.msra.mxu0 %v1762
    %1766 = vmatprep.subr.mxu0 0.0
    %1767 = vmatpush1.xpose.msra.mxu0 0.0
    %1768 = vmatprep.subr.mxu0 0.0
    %1769 = vmatpush1.xpose.msra.mxu0 0.0
    %1770 = vmatprep.subr.mxu0 0.0
    %1771 = vmatpush1.xpose.msra.mxu0 0.0
    %1772 = vmatprep.subr.mxu0 0.0
    %1773 = vmatpush1.xpose.msra.mxu0 0.0
    %1774 = vmatprep.subr.mxu0 0.0
    %1775 = vmatpush1.xpose.msra.mxu0 0.0
    %1776 = vmatprep.subr.mxu0 0.0
    %1777 = vmatpush1.xpose.msra.mxu0 0.0
    %1778 = vmatprep.subr.mxu0 0.0
    %1779 = vmatpush1.xpose.msra.mxu0 0.0
    %1780 = vmatprep.subr.mxu0 0.0
    %1781 = vmatpush1.xpose.msra.mxu0 0.0
    %1782 = vmatprep.subr.mxu0 0.0
    %1783 = vmatpush1.xpose.msra.mxu0 0.0
    %1784 = vmatprep.subr.mxu0 0.0
    %1785 = vmatpush1.xpose.msra.mxu0 0.0
    %1786 = vmatprep.subr.mxu0 0.0
    %1787 = vmatpush1.xpose.msra.mxu0 0.0
    %1788 = vmatprep.subr.mxu0 0.0
    %1789 = vmatpush1.xpose.msra.mxu0 0.0
    %1790 = vmatprep.subr.mxu0 0.0
    %1791 = vmatpush1.xpose.msra.mxu0 0.0
    %1792 = vmatprep.subr.mxu0 0.0
    %1793 = vmatpush1.xpose.msra.mxu0 0.0
    %1794 = vmatprep.subr.mxu0 0.0
    %1795 = vmatpush1.xpose.msra.mxu0 0.0
    %1796 = vmatprep.subr.mxu0 0.0
    %1797 = vmatpush1.xpose.msra.mxu0 0.0
    %1798 = vmatprep.subr.mxu0 0.0
    %1799 = vmatpush1.xpose.msra.mxu0 0.0
    %1800 = vmatprep.subr.mxu0 0.0
    %1801 = vmatpush1.xpose.msra.mxu0 0.0
    %1802 = vmatprep.subr.mxu0 0.0
    %1803 = vmatpush1.xpose.msra.mxu0 0.0
    %1804 = vmatprep.subr.mxu0 0.0
    %1805 = vmatpush1.xpose.msra.mxu0 0.0
    %1806 = vmatprep.subr.mxu0 0.0
    %1807 = vmatpush1.xpose.msra.mxu0 0.0
    %1808 = vmatprep.subr.mxu0 0.0
    %1809 = vmatpush1.xpose.msra.mxu0 0.0
    %1810 = vmatprep.subr.mxu0 0.0
    %1811 = vmatpush1.xpose.msra.mxu0 0.0
    %1812 = vmatprep.subr.mxu0 0.0
    %1813 = vmatpush1.xpose.msra.mxu0 0.0
    %1814 = vmatprep.subr.mxu0 0.0
    %1815 = vmatpush1.xpose.msra.mxu0 0.0
    %1816 = vmatprep.subr.mxu0 0.0
    %1817 = vmatpush1.xpose.msra.mxu0 0.0
    %1818 = vmatprep.subr.mxu0 0.0
    %1819 = vmatpush1.xpose.msra.mxu0 0.0
    %1820 = vmatprep.subr.mxu0 0.0
    %1821 = vmatpush1.xpose.msra.mxu0 0.0
    %1822 = vmatprep.subr.mxu0 0.0
    %1823 = vmatpush1.xpose.msra.mxu0 0.0
    %1824 = vmatprep.subr.mxu0 0.0
    %1825 = vmatpush1.xpose.msra.mxu0 0.0
    %1826 = vmatprep.subr.mxu0 0.0
    %1827 = vmatpush1.xpose.msra.mxu0 0.0
    %1828 = vmatprep.mubr.f32.mxu0 0.0
    %1829 = vmatmul.mubr.f32.gmra.mrb[0].mxu0 %v1759
    %v1830 = vpop.f32.mrb[0].mxu0
    %v1831 = vadd.f32 0.0, %v1830
    %v1832 = vpop.f32.mrb[0].mxu0
    %1833 = vdwg.mxu0
    %v1835 = vsel %vm1377, %v769, 0
    %v1838 = vsel %vm1377, %v1069, 0
    %1840 = vmatprep.subr.mxu0 0.0
    %1841 = vmatpush1.xpose.msra.mxu0 %v1838
    %1842 = vmatprep.subr.mxu0 0.0
    %1843 = vmatpush1.xpose.msra.mxu0 0.0
    %1844 = vmatprep.subr.mxu0 0.0
    %1845 = vmatpush1.xpose.msra.mxu0 0.0
    %1846 = vmatprep.subr.mxu0 0.0
    %1847 = vmatpush1.xpose.msra.mxu0 0.0
    %1848 = vmatprep.subr.mxu0 0.0
    %1849 = vmatpush1.xpose.msra.mxu0 0.0
    %1850 = vmatprep.subr.mxu0 0.0
    %1851 = vmatpush1.xpose.msra.mxu0 0.0
    %1852 = vmatprep.subr.mxu0 0.0
    %1853 = vmatpush1.xpose.msra.mxu0 0.0
    %1854 = vmatprep.subr.mxu0 0.0
    %1855 = vmatpush1.xpose.msra.mxu0 0.0
    %1856 = vmatprep.subr.mxu0 0.0
    %1857 = vmatpush1.xpose.msra.mxu0 0.0
    %1858 = vmatprep.subr.mxu0 0.0
    %1859 = vmatpush1.xpose.msra.mxu0 0.0
    %1860 = vmatprep.subr.mxu0 0.0
    %1861 = vmatpush1.xpose.msra.mxu0 0.0
    %1862 = vmatprep.subr.mxu0 0.0
    %1863 = vmatpush1.xpose.msra.mxu0 0.0
    %1864 = vmatprep.subr.mxu0 0.0
    %1865 = vmatpush1.xpose.msra.mxu0 0.0
    %1866 = vmatprep.subr.mxu0 0.0
    %1867 = vmatpush1.xpose.msra.mxu0 0.0
    %1868 = vmatprep.subr.mxu0 0.0
    %1869 = vmatpush1.xpose.msra.mxu0 0.0
    %1870 = vmatprep.subr.mxu0 0.0
    %1871 = vmatpush1.xpose.msra.mxu0 0.0
    %1872 = vmatprep.subr.mxu0 0.0
    %1873 = vmatpush1.xpose.msra.mxu0 0.0
    %1874 = vmatprep.subr.mxu0 0.0
    %1875 = vmatpush1.xpose.msra.mxu0 0.0
    %1876 = vmatprep.subr.mxu0 0.0
    %1877 = vmatpush1.xpose.msra.mxu0 0.0
    %1878 = vmatprep.subr.mxu0 0.0
    %1879 = vmatpush1.xpose.msra.mxu0 0.0
    %1880 = vmatprep.subr.mxu0 0.0
    %1881 = vmatpush1.xpose.msra.mxu0 0.0
    %1882 = vmatprep.subr.mxu0 0.0
    %1883 = vmatpush1.xpose.msra.mxu0 0.0
    %1884 = vmatprep.subr.mxu0 0.0
    %1885 = vmatpush1.xpose.msra.mxu0 0.0
    %1886 = vmatprep.subr.mxu0 0.0
    %1887 = vmatpush1.xpose.msra.mxu0 0.0
    %1888 = vmatprep.subr.mxu0 0.0
    %1889 = vmatpush1.xpose.msra.mxu0 0.0
    %1890 = vmatprep.subr.mxu0 0.0
    %1891 = vmatpush1.xpose.msra.mxu0 0.0
    %1892 = vmatprep.subr.mxu0 0.0
    %1893 = vmatpush1.xpose.msra.mxu0 0.0
    %1894 = vmatprep.subr.mxu0 0.0
    %1895 = vmatpush1.xpose.msra.mxu0 0.0
    %1896 = vmatprep.subr.mxu0 0.0
    %1897 = vmatpush1.xpose.msra.mxu0 0.0
    %1898 = vmatprep.subr.mxu0 0.0
    %1899 = vmatpush1.xpose.msra.mxu0 0.0
    %1900 = vmatprep.subr.mxu0 0.0
    %1901 = vmatpush1.xpose.msra.mxu0 0.0
    %1902 = vmatprep.subr.mxu0 0.0
    %1903 = vmatpush1.xpose.msra.mxu0 0.0
    %1904 = vmatprep.mubr.f32.mxu0 0.0
    %1905 = vmatmul.mubr.f32.gmra.mrb[0].mxu0 %v1835
    %v1906 = vpop.f32.mrb[0].mxu0
    %v1907 = vadd.f32 0.0, %v1906
    %v1908 = vpop.f32.mrb[0].mxu0
    %1909 = vdwg.mxu0
    %v1911 = vsel %vm1377, %v774, 0
    %v1914 = vsel %vm1377, %v1074, 0
    %1916 = vmatprep.subr.mxu0 0.0
    %1917 = vmatpush1.xpose.msra.mxu0 %v1914
    %1918 = vmatprep.subr.mxu0 0.0
    %1919 = vmatpush1.xpose.msra.mxu0 0.0
    %1920 = vmatprep.subr.mxu0 0.0
    %1921 = vmatpush1.xpose.msra.mxu0 0.0
    %1922 = vmatprep.subr.mxu0 0.0
    %1923 = vmatpush1.xpose.msra.mxu0 0.0
    %1924 = vmatprep.subr.mxu0 0.0
    %1925 = vmatpush1.xpose.msra.mxu0 0.0
    %1926 = vmatprep.subr.mxu0 0.0
    %1927 = vmatpush1.xpose.msra.mxu0 0.0
    %1928 = vmatprep.subr.mxu0 0.0
    %1929 = vmatpush1.xpose.msra.mxu0 0.0
    %1930 = vmatprep.subr.mxu0 0.0
    %1931 = vmatpush1.xpose.msra.mxu0 0.0
    %1932 = vmatprep.subr.mxu0 0.0
    %1933 = vmatpush1.xpose.msra.mxu0 0.0
    %1934 = vmatprep.subr.mxu0 0.0
    %1935 = vmatpush1.xpose.msra.mxu0 0.0
    %1936 = vmatprep.subr.mxu0 0.0
    %1937 = vmatpush1.xpose.msra.mxu0 0.0
    %1938 = vmatprep.subr.mxu0 0.0
    %1939 = vmatpush1.xpose.msra.mxu0 0.0
    %1940 = vmatprep.subr.mxu0 0.0
    %1941 = vmatpush1.xpose.msra.mxu0 0.0
    %1942 = vmatprep.subr.mxu0 0.0
    %1943 = vmatpush1.xpose.msra.mxu0 0.0
    %1944 = vmatprep.subr.mxu0 0.0
    %1945 = vmatpush1.xpose.msra.mxu0 0.0
    %1946 = vmatprep.subr.mxu0 0.0
    %1947 = vmatpush1.xpose.msra.mxu0 0.0
    %1948 = vmatprep.subr.mxu0 0.0
    %1949 = vmatpush1.xpose.msra.mxu0 0.0
    %1950 = vmatprep.subr.mxu0 0.0
    %1951 = vmatpush1.xpose.msra.mxu0 0.0
    %1952 = vmatprep.subr.mxu0 0.0
    %1953 = vmatpush1.xpose.msra.mxu0 0.0
    %1954 = vmatprep.subr.mxu0 0.0
    %1955 = vmatpush1.xpose.msra.mxu0 0.0
    %1956 = vmatprep.subr.mxu0 0.0
    %1957 = vmatpush1.xpose.msra.mxu0 0.0
    %1958 = vmatprep.subr.mxu0 0.0
    %1959 = vmatpush1.xpose.msra.mxu0 0.0
    %1960 = vmatprep.subr.mxu0 0.0
    %1961 = vmatpush1.xpose.msra.mxu0 0.0
    %1962 = vmatprep.subr.mxu0 0.0
    %1963 = vmatpush1.xpose.msra.mxu0 0.0
    %1964 = vmatprep.subr.mxu0 0.0
    %1965 = vmatpush1.xpose.msra.mxu0 0.0
    %1966 = vmatprep.subr.mxu0 0.0
    %1967 = vmatpush1.xpose.msra.mxu0 0.0
    %1968 = vmatprep.subr.mxu0 0.0
    %1969 = vmatpush1.xpose.msra.mxu0 0.0
    %1970 = vmatprep.subr.mxu0 0.0
    %1971 = vmatpush1.xpose.msra.mxu0 0.0
    %1972 = vmatprep.subr.mxu0 0.0
    %1973 = vmatpush1.xpose.msra.mxu0 0.0
    %1974 = vmatprep.subr.mxu0 0.0
    %1975 = vmatpush1.xpose.msra.mxu0 0.0
    %1976 = vmatprep.subr.mxu0 0.0
    %1977 = vmatpush1.xpose.msra.mxu0 0.0
    %1978 = vmatprep.subr.mxu0 0.0
    %1979 = vmatpush1.xpose.msra.mxu0 0.0
    %1980 = vmatprep.mubr.f32.mxu0 0.0
    %1981 = vmatmul.mubr.f32.gmra.mrb[0].mxu0 %v1911
    %v1982 = vpop.f32.mrb[0].mxu0
    %v1983 = vadd.f32 0.0, %v1982
    %v1984 = vpop.f32.mrb[0].mxu0
    %1985 = vdwg.mxu0
    %v1986 = vsel %vm1377, %v1451, -inf
    %1987 = vmax.xlane.f32.xlu0 %v1986
    %v1988 = vpop.xlane.xlu0 %1987
    %v1989 = vsel %vm1377, %v1527, -inf
    %1990 = vmax.xlane.f32.xlu0 %v1989
    %v1991 = vpop.xlane.xlu0 %1990
    %v1992 = vsel %vm1377, %v1603, -inf
    %1993 = vmax.xlane.f32.xlu0 %v1992
    %v1994 = vpop.xlane.xlu0 %1993
    %v1995 = vsel %vm1377, %v1679, -inf
    %1996 = vmax.xlane.f32.xlu0 %v1995
    %v1997 = vpop.xlane.xlu0 %1996
    %v1998 = vsel %vm1377, %v1755, -inf
    %1999 = vmax.xlane.f32.xlu0 %v1998
    %v2000 = vpop.xlane.xlu0 %1999
    %v2001 = vsel %vm1377, %v1831, -inf
    %2002 = vmax.xlane.f32.xlu0 %v2001
    %v2003 = vpop.xlane.xlu0 %2002
    %v2004 = vsel %vm1377, %v1907, -inf
    %2005 = vmax.xlane.f32.xlu0 %v2004
    %v2006 = vpop.xlane.xlu0 %2005
    %v2007 = vsel %vm1377, %v1983, -inf
    %2008 = vmax.xlane.f32.xlu0 %v2007
    %v2009 = vpop.xlane.xlu0 %2008
    %v2010 = vsub.f32 %v1451, %v1988
    %v2011 = vsub.f32 %v1527, %v1991
    %v2012 = vsub.f32 %v1603, %v1994
    %v2013 = vsub.f32 %v1679, %v1997
    %v2014 = vsub.f32 %v1755, %v2000
    %v2015 = vsub.f32 %v1831, %v2003
    %v2016 = vsub.f32 %v1907, %v2006
    %v2017 = vsub.f32 %v1983, %v2009
    %v2018 = vmul.f32 %v2010, 1.442695
    %v2019 = vpow.pop %v2018
    %v2020 = vmul.f32 %v2011, 1.442695
    %v2021 = vpow.pop %v2020
    %v2022 = vmul.f32 %v2012, 1.442695
    %v2023 = vpow.pop %v2022
    %v2024 = vmul.f32 %v2013, 1.442695
    %v2025 = vpow.pop %v2024
    %v2026 = vmul.f32 %v2014, 1.442695
    %v2027 = vpow.pop %v2026
    %v2028 = vmul.f32 %v2015, 1.442695
    %v2029 = vpow.pop %v2028
    %v2030 = vmul.f32 %v2016, 1.442695
    %v2031 = vpow.pop %v2030
    %v2032 = vmul.f32 %v2017, 1.442695
    %v2033 = vpow.pop %v2032
    %v2034 = vsel %vm1377, %v2019, 0.0
    %2035 = vadd.xlane.f32.xlu0 %v2034
    %v2036 = vpop.xlane.xlu0 %2035
    %v2037 = vsel %vm1377, %v2021, 0.0
    %2038 = vadd.xlane.f32.xlu0 %v2037
    %v2039 = vpop.xlane.xlu0 %2038
    %v2040 = vsel %vm1377, %v2023, 0.0
    %2041 = vadd.xlane.f32.xlu0 %v2040
    %v2042 = vpop.xlane.xlu0 %2041
    %v2043 = vsel %vm1377, %v2025, 0.0
    %2044 = vadd.xlane.f32.xlu0 %v2043
    %v2045 = vpop.xlane.xlu0 %2044
    %v2046 = vsel %vm1377, %v2027, 0.0
    %2047 = vadd.xlane.f32.xlu0 %v2046
    %v2048 = vpop.xlane.xlu0 %2047
    %v2049 = vsel %vm1377, %v2029, 0.0
    %2050 = vadd.xlane.f32.xlu0 %v2049
    %v2051 = vpop.xlane.xlu0 %2050
    %v2052 = vsel %vm1377, %v2031, 0.0
    %2053 = vadd.xlane.f32.xlu0 %v2052
    %v2054 = vpop.xlane.xlu0 %2053
    %v2055 = vsel %vm1377, %v2033, 0.0
    %2056 = vadd.xlane.f32.xlu0 %v2055
    %v2057 = vpop.xlane.xlu0 %2056
    %v2058 = vrcp.pop %v2036
    %v2059 = vrcp.pop %v2039
    %v2060 = vrcp.pop %v2042
    %v2061 = vrcp.pop %v2045
    %v2062 = vrcp.pop %v2048
    %v2063 = vrcp.pop %v2051
    %v2064 = vrcp.pop %v2054
    %v2065 = vrcp.pop %v2057
    %v2066 = vmul.f32 %v2036, %v2058
    %v2067 = vmul.f32 %v2039, %v2059
    %v2068 = vmul.f32 %v2042, %v2060
    %v2069 = vmul.f32 %v2045, %v2061
    %v2070 = vmul.f32 %v2048, %v2062
    %v2071 = vmul.f32 %v2051, %v2063
    %v2072 = vmul.f32 %v2054, %v2064
    %v2073 = vmul.f32 %v2057, %v2065
    %v2074 = vsub.f32 2.0, %v2066
    %v2075 = vsub.f32 2.0, %v2067
    %v2076 = vsub.f32 2.0, %v2068
    %v2077 = vsub.f32 2.0, %v2069
    %v2078 = vsub.f32 2.0, %v2070
    %v2079 = vsub.f32 2.0, %v2071
    %v2080 = vsub.f32 2.0, %v2072
    %v2081 = vsub.f32 2.0, %v2073
    %v2082 = vmul.f32 %v2058, %v2074
    %v2083 = vmul.f32 %v2059, %v2075
    %v2084 = vmul.f32 %v2060, %v2076
    %v2085 = vmul.f32 %v2061, %v2077
    %v2086 = vmul.f32 %v2062, %v2078
    %v2087 = vmul.f32 %v2063, %v2079
    %v2088 = vmul.f32 %v2064, %v2080
    %v2089 = vmul.f32 %v2065, %v2081
    %v2090 = vmul.f32 %v2019, %v2082
    %v2091 = vmul.f32 %v2021, %v2083
    %v2092 = vmul.f32 %v2023, %v2084
    %v2093 = vmul.f32 %v2025, %v2085
    %v2094 = vmul.f32 %v2027, %v2086
    %v2095 = vmul.f32 %v2029, %v2087
    %v2096 = vmul.f32 %v2031, %v2088
    %v2097 = vmul.f32 %v2033, %v2089
    %2098 = vst.msk [vmem:[%s6] sm:$0xff] %vm1377, %v2090
    %2099 = vst.msk [vmem:[%s6 + $0x8] sm:$0xff] %vm1377, %v2091
    %2100 = vst.msk [vmem:[%s6 + $0x10] sm:$0xff] %vm1377, %v2092
    %2101 = vst.msk [vmem:[%s6 + $0x18] sm:$0xff] %vm1377, %v2093
    %2102 = vst.msk [vmem:[%s6 + $0x20] sm:$0xff] %vm1377, %v2094
    %2103 = vst.msk [vmem:[%s6 + $0x28] sm:$0xff] %vm1377, %v2095
    %2104 = vst.msk [vmem:[%s6 + $0x30] sm:$0xff] %vm1377, %v2096
    %2105 = vst.msk [vmem:[%s6 + $0x38] sm:$0xff] %vm1377, %v2097
    %v2107 = vsel %vm1377, %v2090, 0
    %2109 = vmatprep.subr.mxu0 0.0
    %2110 = vmatpush1.msra.mxu0 %v1144
    %2111 = vmatprep.subr.mxu0 0.0
    %2112 = vmatpush1.msra.mxu0 0.0
    %2113 = vmatprep.subr.mxu0 0.0
    %2114 = vmatpush1.msra.mxu0 0.0
    %2115 = vmatprep.subr.mxu0 0.0
    %2116 = vmatpush1.msra.mxu0 0.0
    %2117 = vmatprep.subr.mxu0 0.0
    %2118 = vmatpush1.msra.mxu0 0.0
    %2119 = vmatprep.subr.mxu0 0.0
    %2120 = vmatpush1.msra.mxu0 0.0
    %2121 = vmatprep.subr.mxu0 0.0
    %2122 = vmatpush1.msra.mxu0 0.0
    %2123 = vmatprep.subr.mxu0 0.0
    %2124 = vmatpush1.msra.mxu0 0.0
    %2125 = vmatprep.subr.mxu0 0.0
    %2126 = vmatpush1.msra.mxu0 0.0
    %2127 = vmatprep.subr.mxu0 0.0
    %2128 = vmatpush1.msra.mxu0 0.0
    %2129 = vmatprep.subr.mxu0 0.0
    %2130 = vmatpush1.msra.mxu0 0.0
    %2131 = vmatprep.subr.mxu0 0.0
    %2132 = vmatpush1.msra.mxu0 0.0
    %2133 = vmatprep.subr.mxu0 0.0
    %2134 = vmatpush1.msra.mxu0 0.0
    %2135 = vmatprep.subr.mxu0 0.0
    %2136 = vmatpush1.msra.mxu0 0.0
    %2137 = vmatprep.subr.mxu0 0.0
    %2138 = vmatpush1.msra.mxu0 0.0
    %2139 = vmatprep.subr.mxu0 0.0
    %2140 = vmatpush1.msra.mxu0 0.0
    %2141 = vmatprep.subr.mxu0 0.0
    %2142 = vmatpush1.msra.mxu0 0.0
    %2143 = vmatprep.subr.mxu0 0.0
    %2144 = vmatpush1.msra.mxu0 0.0
    %2145 = vmatprep.subr.mxu0 0.0
    %2146 = vmatpush1.msra.mxu0 0.0
    %2147 = vmatprep.subr.mxu0 0.0
    %2148 = vmatpush1.msra.mxu0 0.0
    %2149 = vmatprep.subr.mxu0 0.0
    %2150 = vmatpush1.msra.mxu0 0.0
    %2151 = vmatprep.subr.mxu0 0.0
    %2152 = vmatpush1.msra.mxu0 0.0
    %2153 = vmatprep.subr.mxu0 0.0
    %2154 = vmatpush1.msra.mxu0 0.0
    %2155 = vmatprep.subr.mxu0 0.0
    %2156 = vmatpush1.msra.mxu0 0.0
    %2157 = vmatprep.subr.mxu0 0.0
    %2158 = vmatpush1.msra.mxu0 0.0
    %2159 = vmatprep.subr.mxu0 0.0
    %2160 = vmatpush1.msra.mxu0 0.0
    %2161 = vmatprep.subr.mxu0 0.0
    %2162 = vmatpush1.msra.mxu0 0.0
    %2163 = vmatprep.subr.mxu0 0.0
    %2164 = vmatpush1.msra.mxu0 0.0
    %2165 = vmatprep.subr.mxu0 0.0
    %2166 = vmatpush1.msra.mxu0 0.0
    %2167 = vmatprep.subr.mxu0 0.0
    %2168 = vmatpush1.msra.mxu0 0.0
    %2169 = vmatprep.subr.mxu0 0.0
    %2170 = vmatpush1.msra.mxu0 0.0
    %2171 = vmatprep.subr.mxu0 0.0
    %2172 = vmatpush1.msra.mxu0 0.0
    %2173 = vmatprep.mubr.f32.mxu0 0.0
    %2174 = vmatmul.mubr.f32.gmra.mrb[0].mxu0 %v2107
    %v2175 = vpop.f32.mrb[0].mxu0
    %v2176 = vadd.f32 0.0, %v2175
    %v2177 = vpop.f32.mrb[0].mxu0
    %2178 = vdwg.mxu0
    %v2180 = vsel %vm1377, %v2091, 0
    %2182 = vmatprep.subr.mxu0 0.0
    %2183 = vmatpush1.msra.mxu0 %v1149
    %2184 = vmatprep.subr.mxu0 0.0
    %2185 = vmatpush1.msra.mxu0 0.0
    %2186 = vmatprep.subr.mxu0 0.0
    %2187 = vmatpush1.msra.mxu0 0.0
    %2188 = vmatprep.subr.mxu0 0.0
    %2189 = vmatpush1.msra.mxu0 0.0
    %2190 = vmatprep.subr.mxu0 0.0
    %2191 = vmatpush1.msra.mxu0 0.0
    %2192 = vmatprep.subr.mxu0 0.0
    %2193 = vmatpush1.msra.mxu0 0.0
    %2194 = vmatprep.subr.mxu0 0.0
    %2195 = vmatpush1.msra.mxu0 0.0
    %2196 = vmatprep.subr.mxu0 0.0
    %2197 = vmatpush1.msra.mxu0 0.0
    %2198 = vmatprep.subr.mxu0 0.0
    %2199 = vmatpush1.msra.mxu0 0.0
    %2200 = vmatprep.subr.mxu0 0.0
    %2201 = vmatpush1.msra.mxu0 0.0
    %2202 = vmatprep.subr.mxu0 0.0
    %2203 = vmatpush1.msra.mxu0 0.0
    %2204 = vmatprep.subr.mxu0 0.0
    %2205 = vmatpush1.msra.mxu0 0.0
    %2206 = vmatprep.subr.mxu0 0.0
    %2207 = vmatpush1.msra.mxu0 0.0
    %2208 = vmatprep.subr.mxu0 0.0
    %2209 = vmatpush1.msra.mxu0 0.0
    %2210 = vmatprep.subr.mxu0 0.0
    %2211 = vmatpush1.msra.mxu0 0.0
    %2212 = vmatprep.subr.mxu0 0.0
    %2213 = vmatpush1.msra.mxu0 0.0
    %2214 = vmatprep.subr.mxu0 0.0
    %2215 = vmatpush1.msra.mxu0 0.0
    %2216 = vmatprep.subr.mxu0 0.0
    %2217 = vmatpush1.msra.mxu0 0.0
    %2218 = vmatprep.subr.mxu0 0.0
    %2219 = vmatpush1.msra.mxu0 0.0
    %2220 = vmatprep.subr.mxu0 0.0
    %2221 = vmatpush1.msra.mxu0 0.0
    %2222 = vmatprep.subr.mxu0 0.0
    %2223 = vmatpush1.msra.mxu0 0.0
    %2224 = vmatprep.subr.mxu0 0.0
    %2225 = vmatpush1.msra.mxu0 0.0
    %2226 = vmatprep.subr.mxu0 0.0
    %2227 = vmatpush1.msra.mxu0 0.0
    %2228 = vmatprep.subr.mxu0 0.0
    %2229 = vmatpush1.msra.mxu0 0.0
    %2230 = vmatprep.subr.mxu0 0.0
    %2231 = vmatpush1.msra.mxu0 0.0
    %2232 = vmatprep.subr.mxu0 0.0
    %2233 = vmatpush1.msra.mxu0 0.0
    %2234 = vmatprep.subr.mxu0 0.0
    %2235 = vmatpush1.msra.mxu0 0.0
    %2236 = vmatprep.subr.mxu0 0.0
    %2237 = vmatpush1.msra.mxu0 0.0
    %2238 = vmatprep.subr.mxu0 0.0
    %2239 = vmatpush1.msra.mxu0 0.0
    %2240 = vmatprep.subr.mxu0 0.0
    %2241 = vmatpush1.msra.mxu0 0.0
    %2242 = vmatprep.subr.mxu0 0.0
    %2243 = vmatpush1.msra.mxu0 0.0
    %2244 = vmatprep.subr.mxu0 0.0
    %2245 = vmatpush1.msra.mxu0 0.0
    %2246 = vmatprep.mubr.f32.mxu0 0.0
    %2247 = vmatmul.mubr.f32.gmra.mrb[0].mxu0 %v2180
    %v2248 = vpop.f32.mrb[0].mxu0
    %v2249 = vadd.f32 0.0, %v2248
    %v2250 = vpop.f32.mrb[0].mxu0
    %2251 = vdwg.mxu0
    %v2253 = vsel %vm1377, %v2092, 0
    %2255 = vmatprep.subr.mxu0 0.0
    %2256 = vmatpush1.msra.mxu0 %v1219
    %2257 = vmatprep.subr.mxu0 0.0
    %2258 = vmatpush1.msra.mxu0 0.0
    %2259 = vmatprep.subr.mxu0 0.0
    %2260 = vmatpush1.msra.mxu0 0.0
    %2261 = vmatprep.subr.mxu0 0.0
    %2262 = vmatpush1.msra.mxu0 0.0
    %2263 = vmatprep.subr.mxu0 0.0
    %2264 = vmatpush1.msra.mxu0 0.0
    %2265 = vmatprep.subr.mxu0 0.0
    %2266 = vmatpush1.msra.mxu0 0.0
    %2267 = vmatprep.subr.mxu0 0.0
    %2268 = vmatpush1.msra.mxu0 0.0
    %2269 = vmatprep.subr.mxu0 0.0
    %2270 = vmatpush1.msra.mxu0 0.0
    %2271 = vmatprep.subr.mxu0 0.0
    %2272 = vmatpush1.msra.mxu0 0.0
    %2273 = vmatprep.subr.mxu0 0.0
    %2274 = vmatpush1.msra.mxu0 0.0
    %2275 = vmatprep.subr.mxu0 0.0
    %2276 = vmatpush1.msra.mxu0 0.0
    %2277 = vmatprep.subr.mxu0 0.0
    %2278 = vmatpush1.msra.mxu0 0.0
    %2279 = vmatprep.subr.mxu0 0.0
    %2280 = vmatpush1.msra.mxu0 0.0
    %2281 = vmatprep.subr.mxu0 0.0
    %2282 = vmatpush1.msra.mxu0 0.0
    %2283 = vmatprep.subr.mxu0 0.0
    %2284 = vmatpush1.msra.mxu0 0.0
    %2285 = vmatprep.subr.mxu0 0.0
    %2286 = vmatpush1.msra.mxu0 0.0
    %2287 = vmatprep.subr.mxu0 0.0
    %2288 = vmatpush1.msra.mxu0 0.0
    %2289 = vmatprep.subr.mxu0 0.0
    %2290 = vmatpush1.msra.mxu0 0.0
    %2291 = vmatprep.subr.mxu0 0.0
    %2292 = vmatpush1.msra.mxu0 0.0
    %2293 = vmatprep.subr.mxu0 0.0
    %2294 = vmatpush1.msra.mxu0 0.0
    %2295 = vmatprep.subr.mxu0 0.0
    %2296 = vmatpush1.msra.mxu0 0.0
    %2297 = vmatprep.subr.mxu0 0.0
    %2298 = vmatpush1.msra.mxu0 0.0
    %2299 = vmatprep.subr.mxu0 0.0
    %2300 = vmatpush1.msra.mxu0 0.0
    %2301 = vmatprep.subr.mxu0 0.0
    %2302 = vmatpush1.msra.mxu0 0.0
    %2303 = vmatprep.subr.mxu0 0.0
    %2304 = vmatpush1.msra.mxu0 0.0
    %2305 = vmatprep.subr.mxu0 0.0
    %2306 = vmatpush1.msra.mxu0 0.0
    %2307 = vmatprep.subr.mxu0 0.0
    %2308 = vmatpush1.msra.mxu0 0.0
    %2309 = vmatprep.subr.mxu0 0.0
    %2310 = vmatpush1.msra.mxu0 0.0
    %2311 = vmatprep.subr.mxu0 0.0
    %2312 = vmatpush1.msra.mxu0 0.0
    %2313 = vmatprep.subr.mxu0 0.0
    %2314 = vmatpush1.msra.mxu0 0.0
    %2315 = vmatprep.subr.mxu0 0.0
    %2316 = vmatpush1.msra.mxu0 0.0
    %2317 = vmatprep.subr.mxu0 0.0
    %2318 = vmatpush1.msra.mxu0 0.0
    %2319 = vmatprep.mubr.f32.mxu0 0.0
    %2320 = vmatmul.mubr.f32.gmra.mrb[0].mxu0 %v2253
    %v2321 = vpop.f32.mrb[0].mxu0
    %v2322 = vadd.f32 0.0, %v2321
    %v2323 = vpop.f32.mrb[0].mxu0
    %2324 = vdwg.mxu0
    %v2326 = vsel %vm1377, %v2093, 0
    %2328 = vmatprep.subr.mxu0 0.0
    %2329 = vmatpush1.msra.mxu0 %v1224
    %2330 = vmatprep.subr.mxu0 0.0
    %2331 = vmatpush1.msra.mxu0 0.0
    %2332 = vmatprep.subr.mxu0 0.0
    %2333 = vmatpush1.msra.mxu0 0.0
    %2334 = vmatprep.subr.mxu0 0.0
    %2335 = vmatpush1.msra.mxu0 0.0
    %2336 = vmatprep.subr.mxu0 0.0
    %2337 = vmatpush1.msra.mxu0 0.0
    %2338 = vmatprep.subr.mxu0 0.0
    %2339 = vmatpush1.msra.mxu0 0.0
    %2340 = vmatprep.subr.mxu0 0.0
    %2341 = vmatpush1.msra.mxu0 0.0
    %2342 = vmatprep.subr.mxu0 0.0
    %2343 = vmatpush1.msra.mxu0 0.0
    %2344 = vmatprep.subr.mxu0 0.0
    %2345 = vmatpush1.msra.mxu0 0.0
    %2346 = vmatprep.subr.mxu0 0.0
    %2347 = vmatpush1.msra.mxu0 0.0
    %2348 = vmatprep.subr.mxu0 0.0
    %2349 = vmatpush1.msra.mxu0 0.0
    %2350 = vmatprep.subr.mxu0 0.0
    %2351 = vmatpush1.msra.mxu0 0.0
    %2352 = vmatprep.subr.mxu0 0.0
    %2353 = vmatpush1.msra.mxu0 0.0
    %2354 = vmatprep.subr.mxu0 0.0
    %2355 = vmatpush1.msra.mxu0 0.0
    %2356 = vmatprep.subr.mxu0 0.0
    %2357 = vmatpush1.msra.mxu0 0.0
    %2358 = vmatprep.subr.mxu0 0.0
    %2359 = vmatpush1.msra.mxu0 0.0
    %2360 = vmatprep.subr.mxu0 0.0
    %2361 = vmatpush1.msra.mxu0 0.0
    %2362 = vmatprep.subr.mxu0 0.0
    %2363 = vmatpush1.msra.mxu0 0.0
    %2364 = vmatprep.subr.mxu0 0.0
    %2365 = vmatpush1.msra.mxu0 0.0
    %2366 = vmatprep.subr.mxu0 0.0
    %2367 = vmatpush1.msra.mxu0 0.0
    %2368 = vmatprep.subr.mxu0 0.0
    %2369 = vmatpush1.msra.mxu0 0.0
    %2370 = vmatprep.subr.mxu0 0.0
    %2371 = vmatpush1.msra.mxu0 0.0
    %2372 = vmatprep.subr.mxu0 0.0
    %2373 = vmatpush1.msra.mxu0 0.0
    %2374 = vmatprep.subr.mxu0 0.0
    %2375 = vmatpush1.msra.mxu0 0.0
    %2376 = vmatprep.subr.mxu0 0.0
    %2377 = vmatpush1.msra.mxu0 0.0
    %2378 = vmatprep.subr.mxu0 0.0
    %2379 = vmatpush1.msra.mxu0 0.0
    %2380 = vmatprep.subr.mxu0 0.0
    %2381 = vmatpush1.msra.mxu0 0.0
    %2382 = vmatprep.subr.mxu0 0.0
    %2383 = vmatpush1.msra.mxu0 0.0
    %2384 = vmatprep.subr.mxu0 0.0
    %2385 = vmatpush1.msra.mxu0 0.0
    %2386 = vmatprep.subr.mxu0 0.0
    %2387 = vmatpush1.msra.mxu0 0.0
    %2388 = vmatprep.subr.mxu0 0.0
    %2389 = vmatpush1.msra.mxu0 0.0
    %2390 = vmatprep.subr.mxu0 0.0
    %2391 = vmatpush1.msra.mxu0 0.0
    %2392 = vmatprep.mubr.f32.mxu0 0.0
    %2393 = vmatmul.mubr.f32.gmra.mrb[0].mxu0 %v2326
    %v2394 = vpop.f32.mrb[0].mxu0
    %v2395 = vadd.f32 0.0, %v2394
    %v2396 = vpop.f32.mrb[0].mxu0
    %2397 = vdwg.mxu0
    %v2399 = vsel %vm1377, %v2094, 0
    %2401 = vmatprep.subr.mxu0 0.0
    %2402 = vmatpush1.msra.mxu0 %v1294
    %2403 = vmatprep.subr.mxu0 0.0
    %2404 = vmatpush1.msra.mxu0 0.0
    %2405 = vmatprep.subr.mxu0 0.0
    %2406 = vmatpush1.msra.mxu0 0.0
    %2407 = vmatprep.subr.mxu0 0.0
    %2408 = vmatpush1.msra.mxu0 0.0
    %2409 = vmatprep.subr.mxu0 0.0
    %2410 = vmatpush1.msra.mxu0 0.0
    %2411 = vmatprep.subr.mxu0 0.0
    %2412 = vmatpush1.msra.mxu0 0.0
    %2413 = vmatprep.subr.mxu0 0.0
    %2414 = vmatpush1.msra.mxu0 0.0
    %2415 = vmatprep.subr.mxu0 0.0
    %2416 = vmatpush1.msra.mxu0 0.0
    %2417 = vmatprep.subr.mxu0 0.0
    %2418 = vmatpush1.msra.mxu0 0.0
    %2419 = vmatprep.subr.mxu0 0.0
    %2420 = vmatpush1.msra.mxu0 0.0
    %2421 = vmatprep.subr.mxu0 0.0
    %2422 = vmatpush1.msra.mxu0 0.0
    %2423 = vmatprep.subr.mxu0 0.0
    %2424 = vmatpush1.msra.mxu0 0.0
    %2425 = vmatprep.subr.mxu0 0.0
    %2426 = vmatpush1.msra.mxu0 0.0
    %2427 = vmatprep.subr.mxu0 0.0
    %2428 = vmatpush1.msra.mxu0 0.0
    %2429 = vmatprep.subr.mxu0 0.0
    %2430 = vmatpush1.msra.mxu0 0.0
    %2431 = vmatprep.subr.mxu0 0.0
    %2432 = vmatpush1.msra.mxu0 0.0
    %2433 = vmatprep.subr.mxu0 0.0
    %2434 = vmatpush1.msra.mxu0 0.0
    %2435 = vmatprep.subr.mxu0 0.0
    %2436 = vmatpush1.msra.mxu0 0.0
    %2437 = vmatprep.subr.mxu0 0.0
    %2438 = vmatpush1.msra.mxu0 0.0
    %2439 = vmatprep.subr.mxu0 0.0
    %2440 = vmatpush1.msra.mxu0 0.0
    %2441 = vmatprep.subr.mxu0 0.0
    %2442 = vmatpush1.msra.mxu0 0.0
    %2443 = vmatprep.subr.mxu0 0.0
    %2444 = vmatpush1.msra.mxu0 0.0
    %2445 = vmatprep.subr.mxu0 0.0
    %2446 = vmatpush1.msra.mxu0 0.0
    %2447 = vmatprep.subr.mxu0 0.0
    %2448 = vmatpush1.msra.mxu0 0.0
    %2449 = vmatprep.subr.mxu0 0.0
    %2450 = vmatpush1.msra.mxu0 0.0
    %2451 = vmatprep.subr.mxu0 0.0
    %2452 = vmatpush1.msra.mxu0 0.0
    %2453 = vmatprep.subr.mxu0 0.0
    %2454 = vmatpush1.msra.mxu0 0.0
    %2455 = vmatprep.subr.mxu0 0.0
    %2456 = vmatpush1.msra.mxu0 0.0
    %2457 = vmatprep.subr.mxu0 0.0
    %2458 = vmatpush1.msra.mxu0 0.0
    %2459 = vmatprep.subr.mxu0 0.0
    %2460 = vmatpush1.msra.mxu0 0.0
    %2461 = vmatprep.subr.mxu0 0.0
    %2462 = vmatpush1.msra.mxu0 0.0
    %2463 = vmatprep.subr.mxu0 0.0
    %2464 = vmatpush1.msra.mxu0 0.0
    %2465 = vmatprep.mubr.f32.mxu0 0.0
    %2466 = vmatmul.mubr.f32.gmra.mrb[0].mxu0 %v2399
    %v2467 = vpop.f32.mrb[0].mxu0
    %v2468 = vadd.f32 0.0, %v2467
    %v2469 = vpop.f32.mrb[0].mxu0
    %2470 = vdwg.mxu0
    %v2472 = vsel %vm1377, %v2095, 0
    %2474 = vmatprep.subr.mxu0 0.0
    %2475 = vmatpush1.msra.mxu0 %v1299
    %2476 = vmatprep.subr.mxu0 0.0
    %2477 = vmatpush1.msra.mxu0 0.0
    %2478 = vmatprep.subr.mxu0 0.0
    %2479 = vmatpush1.msra.mxu0 0.0
    %2480 = vmatprep.subr.mxu0 0.0
    %2481 = vmatpush1.msra.mxu0 0.0
    %2482 = vmatprep.subr.mxu0 0.0
    %2483 = vmatpush1.msra.mxu0 0.0
    %2484 = vmatprep.subr.mxu0 0.0
    %2485 = vmatpush1.msra.mxu0 0.0
    %2486 = vmatprep.subr.mxu0 0.0
    %2487 = vmatpush1.msra.mxu0 0.0
    %2488 = vmatprep.subr.mxu0 0.0
    %2489 = vmatpush1.msra.mxu0 0.0
    %2490 = vmatprep.subr.mxu0 0.0
    %2491 = vmatpush1.msra.mxu0 0.0
    %2492 = vmatprep.subr.mxu0 0.0
    %2493 = vmatpush1.msra.mxu0 0.0
    %2494 = vmatprep.subr.mxu0 0.0
    %2495 = vmatpush1.msra.mxu0 0.0
    %2496 = vmatprep.subr.mxu0 0.0
    %2497 = vmatpush1.msra.mxu0 0.0
    %2498 = vmatprep.subr.mxu0 0.0
    %2499 = vmatpush1.msra.mxu0 0.0
    %2500 = vmatprep.subr.mxu0 0.0
    %2501 = vmatpush1.msra.mxu0 0.0
    %2502 = vmatprep.subr.mxu0 0.0
    %2503 = vmatpush1.msra.mxu0 0.0
    %2504 = vmatprep.subr.mxu0 0.0
    %2505 = vmatpush1.msra.mxu0 0.0
    %2506 = vmatprep.subr.mxu0 0.0
    %2507 = vmatpush1.msra.mxu0 0.0
    %2508 = vmatprep.subr.mxu0 0.0
    %2509 = vmatpush1.msra.mxu0 0.0
    %2510 = vmatprep.subr.mxu0 0.0
    %2511 = vmatpush1.msra.mxu0 0.0
    %2512 = vmatprep.subr.mxu0 0.0
    %2513 = vmatpush1.msra.mxu0 0.0
    %2514 = vmatprep.subr.mxu0 0.0
    %2515 = vmatpush1.msra.mxu0 0.0
    %2516 = vmatprep.subr.mxu0 0.0
    %2517 = vmatpush1.msra.mxu0 0.0
    %2518 = vmatprep.subr.mxu0 0.0
    %2519 = vmatpush1.msra.mxu0 0.0
    %2520 = vmatprep.subr.mxu0 0.0
    %2521 = vmatpush1.msra.mxu0 0.0
    %2522 = vmatprep.subr.mxu0 0.0
    %2523 = vmatpush1.msra.mxu0 0.0
    %2524 = vmatprep.subr.mxu0 0.0
    %2525 = vmatpush1.msra.mxu0 0.0
    %2526 = vmatprep.subr.mxu0 0.0
    %2527 = vmatpush1.msra.mxu0 0.0
    %2528 = vmatprep.subr.mxu0 0.0
    %2529 = vmatpush1.msra.mxu0 0.0
    %2530 = vmatprep.subr.mxu0 0.0
    %2531 = vmatpush1.msra.mxu0 0.0
    %2532 = vmatprep.subr.mxu0 0.0
    %2533 = vmatpush1.msra.mxu0 0.0
    %2534 = vmatprep.subr.mxu0 0.0
    %2535 = vmatpush1.msra.mxu0 0.0
    %2536 = vmatprep.subr.mxu0 0.0
    %2537 = vmatpush1.msra.mxu0 0.0
    %2538 = vmatprep.mubr.f32.mxu0 0.0
    %2539 = vmatmul.mubr.f32.gmra.mrb[0].mxu0 %v2472
    %v2540 = vpop.f32.mrb[0].mxu0
    %v2541 = vadd.f32 0.0, %v2540
    %v2542 = vpop.f32.mrb[0].mxu0
    %2543 = vdwg.mxu0
    %v2545 = vsel %vm1377, %v2096, 0
    %2547 = vmatprep.subr.mxu0 0.0
    %2548 = vmatpush1.msra.mxu0 %v1369
    %2549 = vmatprep.subr.mxu0 0.0
    %2550 = vmatpush1.msra.mxu0 0.0
    %2551 = vmatprep.subr.mxu0 0.0
    %2552 = vmatpush1.msra.mxu0 0.0
    %2553 = vmatprep.subr.mxu0 0.0
    %2554 = vmatpush1.msra.mxu0 0.0
    %2555 = vmatprep.subr.mxu0 0.0
    %2556 = vmatpush1.msra.mxu0 0.0
    %2557 = vmatprep.subr.mxu0 0.0
    %2558 = vmatpush1.msra.mxu0 0.0
    %2559 = vmatprep.subr.mxu0 0.0
    %2560 = vmatpush1.msra.mxu0 0.0
    %2561 = vmatprep.subr.mxu0 0.0
    %2562 = vmatpush1.msra.mxu0 0.0
    %2563 = vmatprep.subr.mxu0 0.0
    %2564 = vmatpush1.msra.mxu0 0.0
    %2565 = vmatprep.subr.mxu0 0.0
    %2566 = vmatpush1.msra.mxu0 0.0
    %2567 = vmatprep.subr.mxu0 0.0
    %2568 = vmatpush1.msra.mxu0 0.0
    %2569 = vmatprep.subr.mxu0 0.0
    %2570 = vmatpush1.msra.mxu0 0.0
    %2571 = vmatprep.subr.mxu0 0.0
    %2572 = vmatpush1.msra.mxu0 0.0
    %2573 = vmatprep.subr.mxu0 0.0
    %2574 = vmatpush1.msra.mxu0 0.0
    %2575 = vmatprep.subr.mxu0 0.0
    %2576 = vmatpush1.msra.mxu0 0.0
    %2577 = vmatprep.subr.mxu0 0.0
    %2578 = vmatpush1.msra.mxu0 0.0
    %2579 = vmatprep.subr.mxu0 0.0
    %2580 = vmatpush1.msra.mxu0 0.0
    %2581 = vmatprep.subr.mxu0 0.0
    %2582 = vmatpush1.msra.mxu0 0.0
    %2583 = vmatprep.subr.mxu0 0.0
    %2584 = vmatpush1.msra.mxu0 0.0
    %2585 = vmatprep.subr.mxu0 0.0
    %2586 = vmatpush1.msra.mxu0 0.0
    %2587 = vmatprep.subr.mxu0 0.0
    %2588 = vmatpush1.msra.mxu0 0.0
    %2589 = vmatprep.subr.mxu0 0.0
    %2590 = vmatpush1.msra.mxu0 0.0
    %2591 = vmatprep.subr.mxu0 0.0
    %2592 = vmatpush1.msra.mxu0 0.0
    %2593 = vmatprep.subr.mxu0 0.0
    %2594 = vmatpush1.msra.mxu0 0.0
    %2595 = vmatprep.subr.mxu0 0.0
    %2596 = vmatpush1.msra.mxu0 0.0
    %2597 = vmatprep.subr.mxu0 0.0
    %2598 = vmatpush1.msra.mxu0 0.0
    %2599 = vmatprep.subr.mxu0 0.0
    %2600 = vmatpush1.msra.mxu0 0.0
    %2601 = vmatprep.subr.mxu0 0.0
    %2602 = vmatpush1.msra.mxu0 0.0
    %2603 = vmatprep.subr.mxu0 0.0
    %2604 = vmatpush1.msra.mxu0 0.0
    %2605 = vmatprep.subr.mxu0 0.0
    %2606 = vmatpush1.msra.mxu0 0.0
    %2607 = vmatprep.subr.mxu0 0.0
    %2608 = vmatpush1.msra.mxu0 0.0
    %2609 = vmatprep.subr.mxu0 0.0
    %2610 = vmatpush1.msra.mxu0 0.0
    %2611 = vmatprep.mubr.f32.mxu0 0.0
    %2612 = vmatmul.mubr.f32.gmra.mrb[0].mxu0 %v2545
    %v2613 = vpop.f32.mrb[0].mxu0
    %v2614 = vadd.f32 0.0, %v2613
    %v2615 = vpop.f32.mrb[0].mxu0
    %2616 = vdwg.mxu0
    %v2618 = vsel %vm1377, %v2097, 0
    %2620 = vmatprep.subr.mxu0 0.0
    %2621 = vmatpush1.msra.mxu0 %v1374
    %2622 = vmatprep.subr.mxu0 0.0
    %2623 = vmatpush1.msra.mxu0 0.0
    %2624 = vmatprep.subr.mxu0 0.0
    %2625 = vmatpush1.msra.mxu0 0.0
    %2626 = vmatprep.subr.mxu0 0.0
    %2627 = vmatpush1.msra.mxu0 0.0
    %2628 = vmatprep.subr.mxu0 0.0
    %2629 = vmatpush1.msra.mxu0 0.0
    %2630 = vmatprep.subr.mxu0 0.0
    %2631 = vmatpush1.msra.mxu0 0.0
    %2632 = vmatprep.subr.mxu0 0.0
    %2633 = vmatpush1.msra.mxu0 0.0
    %2634 = vmatprep.subr.mxu0 0.0
    %2635 = vmatpush1.msra.mxu0 0.0
    %2636 = vmatprep.subr.mxu0 0.0
    %2637 = vmatpush1.msra.mxu0 0.0
    %2638 = vmatprep.subr.mxu0 0.0
    %2639 = vmatpush1.msra.mxu0 0.0
    %2640 = vmatprep.subr.mxu0 0.0
    %2641 = vmatpush1.msra.mxu0 0.0
    %2642 = vmatprep.subr.mxu0 0.0
    %2643 = vmatpush1.msra.mxu0 0.0
    %2644 = vmatprep.subr.mxu0 0.0
    %2645 = vmatpush1.msra.mxu0 0.0
    %2646 = vmatprep.subr.mxu0 0.0
    %2647 = vmatpush1.msra.mxu0 0.0
    %2648 = vmatprep.subr.mxu0 0.0
    %2649 = vmatpush1.msra.mxu0 0.0
    %2650 = vmatprep.subr.mxu0 0.0
    %2651 = vmatpush1.msra.mxu0 0.0
    %2652 = vmatprep.subr.mxu0 0.0
    %2653 = vmatpush1.msra.mxu0 0.0
    %2654 = vmatprep.subr.mxu0 0.0
    %2655 = vmatpush1.msra.mxu0 0.0
    %2656 = vmatprep.subr.mxu0 0.0
    %2657 = vmatpush1.msra.mxu0 0.0
    %2658 = vmatprep.subr.mxu0 0.0
    %2659 = vmatpush1.msra.mxu0 0.0
    %2660 = vmatprep.subr.mxu0 0.0
    %2661 = vmatpush1.msra.mxu0 0.0
    %2662 = vmatprep.subr.mxu0 0.0
    %2663 = vmatpush1.msra.mxu0 0.0
    %2664 = vmatprep.subr.mxu0 0.0
    %2665 = vmatpush1.msra.mxu0 0.0
    %2666 = vmatprep.subr.mxu0 0.0
    %2667 = vmatpush1.msra.mxu0 0.0
    %2668 = vmatprep.subr.mxu0 0.0
    %2669 = vmatpush1.msra.mxu0 0.0
    %2670 = vmatprep.subr.mxu0 0.0
    %2671 = vmatpush1.msra.mxu0 0.0
    %2672 = vmatprep.subr.mxu0 0.0
    %2673 = vmatpush1.msra.mxu0 0.0
    %2674 = vmatprep.subr.mxu0 0.0
    %2675 = vmatpush1.msra.mxu0 0.0
    %2676 = vmatprep.subr.mxu0 0.0
    %2677 = vmatpush1.msra.mxu0 0.0
    %2678 = vmatprep.subr.mxu0 0.0
    %2679 = vmatpush1.msra.mxu0 0.0
    %2680 = vmatprep.subr.mxu0 0.0
    %2681 = vmatpush1.msra.mxu0 0.0
    %2682 = vmatprep.subr.mxu0 0.0
    %2683 = vmatpush1.msra.mxu0 0.0
    %2684 = vmatprep.mubr.f32.mxu0 0.0
    %2685 = vmatmul.mubr.f32.gmra.mrb[0].mxu0 %v2618
    %v2686 = vpop.f32.mrb[0].mxu0
    %v2687 = vadd.f32 0.0, %v2686
    %v2688 = vpop.f32.mrb[0].mxu0
    %2689 = vdwg.mxu0
    %v2690 = vld [vmem:[%s2] sm:$0xff]
    %v2691 = vld [vmem:[%s2 + $0x8] sm:$0xff]
    %v2692 = vld [vmem:[%s2 + $0x10] sm:$0xff]
    %v2693 = vld [vmem:[%s2 + $0x18] sm:$0xff]
    %v2695 = vsel %vm1377, %v2176, 0
    %v2698 = vsel %vm1377, %v2249, 0
    %2700 = vmatprep.subr.mxu0 0.0
    %2701 = vmatpush1.msra.mxu0 %v2690
    %2702 = vmatprep.subr.mxu0 0.0
    %2703 = vmatpush1.msra.mxu0 0.0
    %2704 = vmatprep.subr.mxu0 0.0
    %2705 = vmatpush1.msra.mxu0 0.0
    %2706 = vmatprep.subr.mxu0 0.0
    %2707 = vmatpush1.msra.mxu0 0.0
    %2708 = vmatprep.subr.mxu0 0.0
    %2709 = vmatpush1.msra.mxu0 0.0
    %2710 = vmatprep.subr.mxu0 0.0
    %2711 = vmatpush1.msra.mxu0 0.0
    %2712 = vmatprep.subr.mxu0 0.0
    %2713 = vmatpush1.msra.mxu0 0.0
    %2714 = vmatprep.subr.mxu0 0.0
    %2715 = vmatpush1.msra.mxu0 0.0
    %2716 = vmatprep.subr.mxu0 0.0
    %2717 = vmatpush1.msra.mxu0 0.0
    %2718 = vmatprep.subr.mxu0 0.0
    %2719 = vmatpush1.msra.mxu0 0.0
    %2720 = vmatprep.subr.mxu0 0.0
    %2721 = vmatpush1.msra.mxu0 0.0
    %2722 = vmatprep.subr.mxu0 0.0
    %2723 = vmatpush1.msra.mxu0 0.0
    %2724 = vmatprep.subr.mxu0 0.0
    %2725 = vmatpush1.msra.mxu0 0.0
    %2726 = vmatprep.subr.mxu0 0.0
    %2727 = vmatpush1.msra.mxu0 0.0
    %2728 = vmatprep.subr.mxu0 0.0
    %2729 = vmatpush1.msra.mxu0 0.0
    %2730 = vmatprep.subr.mxu0 0.0
    %2731 = vmatpush1.msra.mxu0 0.0
    %2732 = vmatprep.subr.mxu0 0.0
    %2733 = vmatpush1.msra.mxu0 0.0
    %2734 = vmatprep.subr.mxu0 0.0
    %2735 = vmatpush1.msra.mxu0 0.0
    %2736 = vmatprep.subr.mxu0 0.0
    %2737 = vmatpush1.msra.mxu0 0.0
    %2738 = vmatprep.subr.mxu0 0.0
    %2739 = vmatpush1.msra.mxu0 0.0
    %2740 = vmatprep.subr.mxu0 0.0
    %2741 = vmatpush1.msra.mxu0 0.0
    %2742 = vmatprep.subr.mxu0 0.0
    %2743 = vmatpush1.msra.mxu0 0.0
    %2744 = vmatprep.subr.mxu0 0.0
    %2745 = vmatpush1.msra.mxu0 0.0
    %2746 = vmatprep.subr.mxu0 0.0
    %2747 = vmatpush1.msra.mxu0 0.0
    %2748 = vmatprep.subr.mxu0 0.0
    %2749 = vmatpush1.msra.mxu0 0.0
    %2750 = vmatprep.subr.mxu0 0.0
    %2751 = vmatpush1.msra.mxu0 0.0
    %2752 = vmatprep.subr.mxu0 0.0
    %2753 = vmatpush1.msra.mxu0 0.0
    %2754 = vmatprep.subr.mxu0 0.0
    %2755 = vmatpush1.msra.mxu0 0.0
    %2756 = vmatprep.subr.mxu0 0.0
    %2757 = vmatpush1.msra.mxu0 0.0
    %2758 = vmatprep.subr.mxu0 0.0
    %2759 = vmatpush1.msra.mxu0 0.0
    %2760 = vmatprep.subr.mxu0 0.0
    %2761 = vmatpush1.msra.mxu0 0.0
    %2762 = vmatprep.subr.mxu0 0.0
    %2763 = vmatpush1.msra.mxu0 0.0
    %2764 = vmatprep.mubr.f32.mxu0 0.0
    %2765 = vmatmul.mubr.f32.gmra.mrb[0].mxu0 %v2695
    %v2766 = vpop.f32.mrb[0].mxu0
    %v2767 = vadd.f32 0.0, %v2766
    %v2768 = vpop.f32.mrb[0].mxu0
    %2769 = vmatprep.mubr.f32.mxu0 0.0
    %2770 = vmatmul.mubr.f32.gmra.mrb[0].mxu0 %v2698
    %v2771 = vpop.f32.mrb[0].mxu0
    %v2772 = vadd.f32 0.0, %v2771
    %v2773 = vpop.f32.mrb[0].mxu0
    %2774 = vdwg.mxu0
    %v2776 = vsel %vm1377, %v2322, 0
    %v2779 = vsel %vm1377, %v2395, 0
    %2781 = vmatprep.subr.mxu0 0.0
    %2782 = vmatpush1.msra.mxu0 %v2691
    %2783 = vmatprep.subr.mxu0 0.0
    %2784 = vmatpush1.msra.mxu0 0.0
    %2785 = vmatprep.subr.mxu0 0.0
    %2786 = vmatpush1.msra.mxu0 0.0
    %2787 = vmatprep.subr.mxu0 0.0
    %2788 = vmatpush1.msra.mxu0 0.0
    %2789 = vmatprep.subr.mxu0 0.0
    %2790 = vmatpush1.msra.mxu0 0.0
    %2791 = vmatprep.subr.mxu0 0.0
    %2792 = vmatpush1.msra.mxu0 0.0
    %2793 = vmatprep.subr.mxu0 0.0
    %2794 = vmatpush1.msra.mxu0 0.0
    %2795 = vmatprep.subr.mxu0 0.0
    %2796 = vmatpush1.msra.mxu0 0.0
    %2797 = vmatprep.subr.mxu0 0.0
    %2798 = vmatpush1.msra.mxu0 0.0
    %2799 = vmatprep.subr.mxu0 0.0
    %2800 = vmatpush1.msra.mxu0 0.0
    %2801 = vmatprep.subr.mxu0 0.0
    %2802 = vmatpush1.msra.mxu0 0.0
    %2803 = vmatprep.subr.mxu0 0.0
    %2804 = vmatpush1.msra.mxu0 0.0
    %2805 = vmatprep.subr.mxu0 0.0
    %2806 = vmatpush1.msra.mxu0 0.0
    %2807 = vmatprep.subr.mxu0 0.0
    %2808 = vmatpush1.msra.mxu0 0.0
    %2809 = vmatprep.subr.mxu0 0.0
    %2810 = vmatpush1.msra.mxu0 0.0
    %2811 = vmatprep.subr.mxu0 0.0
    %2812 = vmatpush1.msra.mxu0 0.0
    %2813 = vmatprep.subr.mxu0 0.0
    %2814 = vmatpush1.msra.mxu0 0.0
    %2815 = vmatprep.subr.mxu0 0.0
    %2816 = vmatpush1.msra.mxu0 0.0
    %2817 = vmatprep.subr.mxu0 0.0
    %2818 = vmatpush1.msra.mxu0 0.0
    %2819 = vmatprep.subr.mxu0 0.0
    %2820 = vmatpush1.msra.mxu0 0.0
    %2821 = vmatprep.subr.mxu0 0.0
    %2822 = vmatpush1.msra.mxu0 0.0
    %2823 = vmatprep.subr.mxu0 0.0
    %2824 = vmatpush1.msra.mxu0 0.0
    %2825 = vmatprep.subr.mxu0 0.0
    %2826 = vmatpush1.msra.mxu0 0.0
    %2827 = vmatprep.subr.mxu0 0.0
    %2828 = vmatpush1.msra.mxu0 0.0
    %2829 = vmatprep.subr.mxu0 0.0
    %2830 = vmatpush1.msra.mxu0 0.0
    %2831 = vmatprep.subr.mxu0 0.0
    %2832 = vmatpush1.msra.mxu0 0.0
    %2833 = vmatprep.subr.mxu0 0.0
    %2834 = vmatpush1.msra.mxu0 0.0
    %2835 = vmatprep.subr.mxu0 0.0
    %2836 = vmatpush1.msra.mxu0 0.0
    %2837 = vmatprep.subr.mxu0 0.0
    %2838 = vmatpush1.msra.mxu0 0.0
    %2839 = vmatprep.subr.mxu0 0.0
    %2840 = vmatpush1.msra.mxu0 0.0
    %2841 = vmatprep.subr.mxu0 0.0
    %2842 = vmatpush1.msra.mxu0 0.0
    %2843 = vmatprep.subr.mxu0 0.0
    %2844 = vmatpush1.msra.mxu0 0.0
    %2845 = vmatprep.mubr.f32.mxu0 0.0
    %2846 = vmatmul.mubr.f32.gmra.mrb[0].mxu0 %v2776
    %v2847 = vpop.f32.mrb[0].mxu0
    %v2848 = vadd.f32 0.0, %v2847
    %v2849 = vpop.f32.mrb[0].mxu0
    %2850 = vmatprep.mubr.f32.mxu0 0.0
    %2851 = vmatmul.mubr.f32.gmra.mrb[0].mxu0 %v2779
    %v2852 = vpop.f32.mrb[0].mxu0
    %v2853 = vadd.f32 0.0, %v2852
    %v2854 = vpop.f32.mrb[0].mxu0
    %2855 = vdwg.mxu0
    %v2857 = vsel %vm1377, %v2468, 0
    %v2860 = vsel %vm1377, %v2541, 0
    %2862 = vmatprep.subr.mxu0 0.0
    %2863 = vmatpush1.msra.mxu0 %v2692
    %2864 = vmatprep.subr.mxu0 0.0
    %2865 = vmatpush1.msra.mxu0 0.0
    %2866 = vmatprep.subr.mxu0 0.0
    %2867 = vmatpush1.msra.mxu0 0.0
    %2868 = vmatprep.subr.mxu0 0.0
    %2869 = vmatpush1.msra.mxu0 0.0
    %2870 = vmatprep.subr.mxu0 0.0
    %2871 = vmatpush1.msra.mxu0 0.0
    %2872 = vmatprep.subr.mxu0 0.0
    %2873 = vmatpush1.msra.mxu0 0.0
    %2874 = vmatprep.subr.mxu0 0.0
    %2875 = vmatpush1.msra.mxu0 0.0
    %2876 = vmatprep.subr.mxu0 0.0
    %2877 = vmatpush1.msra.mxu0 0.0
    %2878 = vmatprep.subr.mxu0 0.0
    %2879 = vmatpush1.msra.mxu0 0.0
    %2880 = vmatprep.subr.mxu0 0.0
    %2881 = vmatpush1.msra.mxu0 0.0
    %2882 = vmatprep.subr.mxu0 0.0
    %2883 = vmatpush1.msra.mxu0 0.0
    %2884 = vmatprep.subr.mxu0 0.0
    %2885 = vmatpush1.msra.mxu0 0.0
    %2886 = vmatprep.subr.mxu0 0.0
    %2887 = vmatpush1.msra.mxu0 0.0
    %2888 = vmatprep.subr.mxu0 0.0
    %2889 = vmatpush1.msra.mxu0 0.0
    %2890 = vmatprep.subr.mxu0 0.0
    %2891 = vmatpush1.msra.mxu0 0.0
    %2892 = vmatprep.subr.mxu0 0.0
    %2893 = vmatpush1.msra.mxu0 0.0
    %2894 = vmatprep.subr.mxu0 0.0
    %2895 = vmatpush1.msra.mxu0 0.0
    %2896 = vmatprep.subr.mxu0 0.0
    %2897 = vmatpush1.msra.mxu0 0.0
    %2898 = vmatprep.subr.mxu0 0.0
    %2899 = vmatpush1.msra.mxu0 0.0
    %2900 = vmatprep.subr.mxu0 0.0
    %2901 = vmatpush1.msra.mxu0 0.0
    %2902 = vmatprep.subr.mxu0 0.0
    %2903 = vmatpush1.msra.mxu0 0.0
    %2904 = vmatprep.subr.mxu0 0.0
    %2905 = vmatpush1.msra.mxu0 0.0
    %2906 = vmatprep.subr.mxu0 0.0
    %2907 = vmatpush1.msra.mxu0 0.0
    %2908 = vmatprep.subr.mxu0 0.0
    %2909 = vmatpush1.msra.mxu0 0.0
    %2910 = vmatprep.subr.mxu0 0.0
    %2911 = vmatpush1.msra.mxu0 0.0
    %2912 = vmatprep.subr.mxu0 0.0
    %2913 = vmatpush1.msra.mxu0 0.0
    %2914 = vmatprep.subr.mxu0 0.0
    %2915 = vmatpush1.msra.mxu0 0.0
    %2916 = vmatprep.subr.mxu0 0.0
    %2917 = vmatpush1.msra.mxu0 0.0
    %2918 = vmatprep.subr.mxu0 0.0
    %2919 = vmatpush1.msra.mxu0 0.0
    %2920 = vmatprep.subr.mxu0 0.0
    %2921 = vmatpush1.msra.mxu0 0.0
    %2922 = vmatprep.subr.mxu0 0.0
    %2923 = vmatpush1.msra.mxu0 0.0
    %2924 = vmatprep.subr.mxu0 0.0
    %2925 = vmatpush1.msra.mxu0 0.0
    %2926 = vmatprep.mubr.f32.mxu0 0.0
    %2927 = vmatmul.mubr.f32.gmra.mrb[0].mxu0 %v2857
    %v2928 = vpop.f32.mrb[0].mxu0
    %v2929 = vadd.f32 0.0, %v2928
    %v2930 = vpop.f32.mrb[0].mxu0
    %2931 = vmatprep.mubr.f32.mxu0 0.0
    %2932 = vmatmul.mubr.f32.gmra.mrb[0].mxu0 %v2860
    %v2933 = vpop.f32.mrb[0].mxu0
    %v2934 = vadd.f32 0.0, %v2933
    %v2935 = vpop.f32.mrb[0].mxu0
    %2936 = vdwg.mxu0
    %v2938 = vsel %vm1377, %v2614, 0
    %v2941 = vsel %vm1377, %v2687, 0
    %2943 = vmatprep.subr.mxu0 0.0
    %2944 = vmatpush1.msra.mxu0 %v2693
    %2945 = vmatprep.subr.mxu0 0.0
    %2946 = vmatpush1.msra.mxu0 0.0
    %2947 = vmatprep.subr.mxu0 0.0
    %2948 = vmatpush1.msra.mxu0 0.0
    %2949 = vmatprep.subr.mxu0 0.0
    %2950 = vmatpush1.msra.mxu0 0.0
    %2951 = vmatprep.subr.mxu0 0.0
    %2952 = vmatpush1.msra.mxu0 0.0
    %2953 = vmatprep.subr.mxu0 0.0
    %2954 = vmatpush1.msra.mxu0 0.0
    %2955 = vmatprep.subr.mxu0 0.0
    %2956 = vmatpush1.msra.mxu0 0.0
    %2957 = vmatprep.subr.mxu0 0.0
    %2958 = vmatpush1.msra.mxu0 0.0
    %2959 = vmatprep.subr.mxu0 0.0
    %2960 = vmatpush1.msra.mxu0 0.0
    %2961 = vmatprep.subr.mxu0 0.0
    %2962 = vmatpush1.msra.mxu0 0.0
    %2963 = vmatprep.subr.mxu0 0.0
    %2964 = vmatpush1.msra.mxu0 0.0
    %2965 = vmatprep.subr.mxu0 0.0
    %2966 = vmatpush1.msra.mxu0 0.0
    %2967 = vmatprep.subr.mxu0 0.0
    %2968 = vmatpush1.msra.mxu0 0.0
    %2969 = vmatprep.subr.mxu0 0.0
    %2970 = vmatpush1.msra.mxu0 0.0
    %2971 = vmatprep.subr.mxu0 0.0
    %2972 = vmatpush1.msra.mxu0 0.0
    %2973 = vmatprep.subr.mxu0 0.0
    %2974 = vmatpush1.msra.mxu0 0.0
    %2975 = vmatprep.subr.mxu0 0.0
    %2976 = vmatpush1.msra.mxu0 0.0
    %2977 = vmatprep.subr.mxu0 0.0
    %2978 = vmatpush1.msra.mxu0 0.0
    %2979 = vmatprep.subr.mxu0 0.0
    %2980 = vmatpush1.msra.mxu0 0.0
    %2981 = vmatprep.subr.mxu0 0.0
    %2982 = vmatpush1.msra.mxu0 0.0
    %2983 = vmatprep.subr.mxu0 0.0
    %2984 = vmatpush1.msra.mxu0 0.0
    %2985 = vmatprep.subr.mxu0 0.0
    %2986 = vmatpush1.msra.mxu0 0.0
    %2987 = vmatprep.subr.mxu0 0.0
    %2988 = vmatpush1.msra.mxu0 0.0
    %2989 = vmatprep.subr.mxu0 0.0
    %2990 = vmatpush1.msra.mxu0 0.0
    %2991 = vmatprep.subr.mxu0 0.0
    %2992 = vmatpush1.msra.mxu0 0.0
    %2993 = vmatprep.subr.mxu0 0.0
    %2994 = vmatpush1.msra.mxu0 0.0
    %2995 = vmatprep.subr.mxu0 0.0
    %2996 = vmatpush1.msra.mxu0 0.0
    %2997 = vmatprep.subr.mxu0 0.0
    %2998 = vmatpush1.msra.mxu0 0.0
    %2999 = vmatprep.subr.mxu0 0.0
    %3000 = vmatpush1.msra.mxu0 0.0
    %3001 = vmatprep.subr.mxu0 0.0
    %3002 = vmatpush1.msra.mxu0 0.0
    %3003 = vmatprep.subr.mxu0 0.0
    %3004 = vmatpush1.msra.mxu0 0.0
    %3005 = vmatprep.subr.mxu0 0.0
    %3006 = vmatpush1.msra.mxu0 0.0
    %3007 = vmatprep.mubr.f32.mxu0 0.0
    %3008 = vmatmul.mubr.f32.gmra.mrb[0].mxu0 %v2938
    %v3009 = vpop.f32.mrb[0].mxu0
    %v3010 = vadd.f32 0.0, %v3009
    %v3011 = vpop.f32.mrb[0].mxu0
    %3012 = vmatprep.mubr.f32.mxu0 0.0
    %3013 = vmatmul.mubr.f32.gmra.mrb[0].mxu0 %v2941
    %v3014 = vpop.f32.mrb[0].mxu0
    %v3015 = vadd.f32 0.0, %v3014
    %v3016 = vpop.f32.mrb[0].mxu0
    %3017 = vdwg.mxu0
    %v3018 = vsel %vm470, %v2767, 0.0
    %v3019 = vsel %vm470, %v2848, 0.0
    %v3020 = vadd.f32 %v3018, %v3019
    %v3021 = vsel %vm470, %v2929, 0.0
    %v3022 = vadd.f32 %v3020, %v3021
    %v3023 = vsel %vm470, %v3010, 0.0
    %v3024 = vadd.f32 %v3022, %v3023
    %v3025 = vsel %vm470, %v2772, 0.0
    %v3026 = vsel %vm470, %v2853, 0.0
    %v3027 = vadd.f32 %v3025, %v3026
    %v3028 = vsel %vm470, %v2934, 0.0
    %v3029 = vadd.f32 %v3027, %v3028
    %v3030 = vsel %vm470, %v3015, 0.0
    %v3031 = vadd.f32 %v3029, %v3030
    %v3032 = vadd.f32 %v3024, %v420
    %v3033 = vadd.f32 %v3031, %v421
    %v3034 = vsel %vm470, %v3032, 0.0
    %3035 = vadd.xlane.f32.xlu0 %v3034
    %v3036 = vpop.xlane.xlu0 %3035
    %v3037 = vsel %vm470, %v3033, 0.0
    %3038 = vadd.xlane.f32.xlu0 %v3037
    %v3039 = vpop.xlane.xlu0 %3038
    %v3040 = vrcp.pop 32.0
    %v3041 = vmul.f32 %v3036, %v3040
    %v3042 = vmul.f32 %v3039, %v3040
    %v3043 = vsub.f32 %v3032, %v3041
    %v3044 = vsub.f32 %v3033, %v3042
    %v3045 = vmul.f32 %v3043, %v3043
    %v3046 = vmul.f32 %v3044, %v3044
    %v3047 = vsel %vm470, %v3045, 0.0
    %3048 = vadd.xlane.f32.xlu0 %v3047
    %v3049 = vpop.xlane.xlu0 %3048
    %v3050 = vsel %vm470, %v3046, 0.0
    %3051 = vadd.xlane.f32.xlu0 %v3050
    %v3052 = vpop.xlane.xlu0 %3051
    %v3053 = vmul.f32 %v3049, %v3040
    %v3054 = vmul.f32 %v3052, %v3040
    %v3055 = vadd.f32 %v3053, 1e-05
    %v3056 = vadd.f32 %v3054, 1e-05
    %v3057 = vrsqrt.pop %v3055
    %v3058 = vrsqrt.pop %v3056
    %v3059 = vmul.f32 %v3043, %v3057
    %v3060 = vmul.f32 %v3044, %v3058
    %s3061 = smul.u32 8, 4
    %s3062 = smul.u32 %s3061, 8
    %s3063 = sshll.u32 %s3062, 4
    %3064 = dma.done [#allocation4], %s3063
    %s3065 = smul.u32 1024, 1
    %s3066 = sshll.u32 %s3065, 4
    %3067 = dma.done %s123, %s3066
    %v3068 = vld [vmem:[#allocation2] sm:$0xff]
    %v3069 = vld [vmem:[#allocation2 + $0x8] sm:$0xff]
    %v3070 = vld [vmem:[#allocation2 + $0x10] sm:$0xff]
    %v3071 = vld [vmem:[#allocation2 + $0x18] sm:$0xff]
    %v3072 = vld [vmem:[#allocation2 + $0x20] sm:$0xff]
    %v3073 = vld [vmem:[#allocation2 + $0x28] sm:$0xff]
    %v3074 = vld [vmem:[#allocation2 + $0x30] sm:$0xff]
    %v3075 = vld [vmem:[#allocation2 + $0x38] sm:$0xff]
    %v3076 = vld [vmem:[#allocation2 + $0x40] sm:$0xff]
    %v3077 = vld [vmem:[#allocation2 + $0x48] sm:$0xff]
    %v3078 = vld [vmem:[#allocation2 + $0x50] sm:$0xff]
    %v3079 = vld [vmem:[#allocation2 + $0x58] sm:$0xff]
    %v3080 = vld [vmem:[#allocation2 + $0x60] sm:$0xff]
    %v3081 = vld [vmem:[#allocation2 + $0x68] sm:$0xff]
    %v3082 = vld [vmem:[#allocation2 + $0x70] sm:$0xff]
    %v3083 = vld [vmem:[#allocation2 + $0x78] sm:$0xff]
    %v3084 = vld [vmem:[#allocation2 + $0x80] sm:$0xff]
    %v3085 = vld [vmem:[#allocation2 + $0x88] sm:$0xff]
    %v3086 = vld [vmem:[#allocation2 + $0x90] sm:$0xff]
    %v3087 = vld [vmem:[#allocation2 + $0x98] sm:$0xff]
    %v3088 = vld [vmem:[#allocation2 + $0xa0] sm:$0xff]
    %v3089 = vld [vmem:[#allocation2 + $0xa8] sm:$0xff]
    %v3090 = vld [vmem:[#allocation2 + $0xb0] sm:$0xff]
    %v3091 = vld [vmem:[#allocation2 + $0xb8] sm:$0xff]
    %v3092 = vld [vmem:[#allocation2 + $0xc0] sm:$0xff]
    %v3093 = vld [vmem:[#allocation2 + $0xc8] sm:$0xff]
    %v3094 = vld [vmem:[#allocation2 + $0xd0] sm:$0xff]
    %v3095 = vld [vmem:[#allocation2 + $0xd8] sm:$0xff]
    %v3096 = vld [vmem:[#allocation2 + $0xe0] sm:$0xff]
    %v3097 = vld [vmem:[#allocation2 + $0xe8] sm:$0xff]
    %v3098 = vld [vmem:[#allocation2 + $0xf0] sm:$0xff]
    %v3099 = vld [vmem:[#allocation2 + $0xf8] sm:$0xff]
    %v3101 = vsel %vm470, %v3059, 0
    %v3104 = vsel %vm470, %v3060, 0
    %3106 = vmatprep.subr.mxu0 %v3069
    %3107 = vmatpush1.msra.mxu0 %v3068
    %3108 = vmatprep.subr.mxu0 %v3077
    %3109 = vmatpush1.msra.mxu0 %v3076
    %3110 = vmatprep.subr.mxu0 %v3085
    %3111 = vmatpush1.msra.mxu0 %v3084
    %3112 = vmatprep.subr.mxu0 %v3093
    %3113 = vmatpush1.msra.mxu0 %v3092
    %3114 = vmatprep.subr.mxu0 0.0
    %3115 = vmatpush1.msra.mxu0 0.0
    %3116 = vmatprep.subr.mxu0 0.0
    %3117 = vmatpush1.msra.mxu0 0.0
    %3118 = vmatprep.subr.mxu0 0.0
    %3119 = vmatpush1.msra.mxu0 0.0
    %3120 = vmatprep.subr.mxu0 0.0
    %3121 = vmatpush1.msra.mxu0 0.0
    %3122 = vmatprep.subr.mxu0 0.0
    %3123 = vmatpush1.msra.mxu0 0.0
    %3124 = vmatprep.subr.mxu0 0.0
    %3125 = vmatpush1.msra.mxu0 0.0
    %3126 = vmatprep.subr.mxu0 0.0
    %3127 = vmatpush1.msra.mxu0 0.0
    %3128 = vmatprep.subr.mxu0 0.0
    %3129 = vmatpush1.msra.mxu0 0.0
    %3130 = vmatprep.subr.mxu0 0.0
    %3131 = vmatpush1.msra.mxu0 0.0
    %3132 = vmatprep.subr.mxu0 0.0
    %3133 = vmatpush1.msra.mxu0 0.0
    %3134 = vmatprep.subr.mxu0 0.0
    %3135 = vmatpush1.msra.mxu0 0.0
    %3136 = vmatprep.subr.mxu0 0.0
    %3137 = vmatpush1.msra.mxu0 0.0
    %3138 = vmatprep.subr.mxu0 0.0
    %3139 = vmatpush1.msra.mxu0 0.0
    %3140 = vmatprep.subr.mxu0 0.0
    %3141 = vmatpush1.msra.mxu0 0.0
    %3142 = vmatprep.subr.mxu0 0.0
    %3143 = vmatpush1.msra.mxu0 0.0
    %3144 = vmatprep.subr.mxu0 0.0
    %3145 = vmatpush1.msra.mxu0 0.0
    %3146 = vmatprep.subr.mxu0 0.0
    %3147 = vmatpush1.msra.mxu0 0.0
    %3148 = vmatprep.subr.mxu0 0.0
    %3149 = vmatpush1.msra.mxu0 0.0
    %3150 = vmatprep.subr.mxu0 0.0
    %3151 = vmatpush1.msra.mxu0 0.0
    %3152 = vmatprep.subr.mxu0 0.0
    %3153 = vmatpush1.msra.mxu0 0.0
    %3154 = vmatprep.subr.mxu0 0.0
    %3155 = vmatpush1.msra.mxu0 0.0
    %3156 = vmatprep.subr.mxu0 0.0
    %3157 = vmatpush1.msra.mxu0 0.0
    %3158 = vmatprep.subr.mxu0 0.0
    %3159 = vmatpush1.msra.mxu0 0.0
    %3160 = vmatprep.subr.mxu0 0.0
    %3161 = vmatpush1.msra.mxu0 0.0
    %3162 = vmatprep.subr.mxu0 0.0
    %3163 = vmatpush1.msra.mxu0 0.0
    %3164 = vmatprep.subr.mxu0 0.0
    %3165 = vmatpush1.msra.mxu0 0.0
    %3166 = vmatprep.subr.mxu0 0.0
    %3167 = vmatpush1.msra.mxu0 0.0
    %3168 = vmatprep.subr.mxu0 0.0
    %3169 = vmatpush1.msra.mxu0 0.0
    %3170 = vmatprep.mubr.f32.mxu0 0.0
    %3171 = vmatmul.mubr.f32.gmra.mrb[0].mxu0 %v3101
    %v3172 = vpop.f32.mrb[0].mxu0
    %v3173 = vadd.f32 0.0, %v3172
    %v3174 = vpop.f32.mrb[0].mxu0
    %v3175 = vadd.f32 0.0, %v3174
    %3176 = vmatprep.mubr.f32.mxu0 0.0
    %3177 = vmatmul.mubr.f32.gmra.mrb[0].mxu0 %v3104
    %v3178 = vpop.f32.mrb[0].mxu0
    %v3179 = vadd.f32 0.0, %v3178
    %v3180 = vpop.f32.mrb[0].mxu0
    %v3181 = vadd.f32 0.0, %v3180
    %3182 = vdwg.mxu0
    %3183 = vmatprep.subr.mxu0 %v3071
    %3184 = vmatpush1.msra.mxu0 %v3070
    %3185 = vmatprep.subr.mxu0 %v3079
    %3186 = vmatpush1.msra.mxu0 %v3078
    %3187 = vmatprep.subr.mxu0 %v3087
    %3188 = vmatpush1.msra.mxu0 %v3086
    %3189 = vmatprep.subr.mxu0 %v3095
    %3190 = vmatpush1.msra.mxu0 %v3094
    %3191 = vmatprep.subr.mxu0 0.0
    %3192 = vmatpush1.msra.mxu0 0.0
    %3193 = vmatprep.subr.mxu0 0.0
    %3194 = vmatpush1.msra.mxu0 0.0
    %3195 = vmatprep.subr.mxu0 0.0
    %3196 = vmatpush1.msra.mxu0 0.0
    %3197 = vmatprep.subr.mxu0 0.0
    %3198 = vmatpush1.msra.mxu0 0.0
    %3199 = vmatprep.subr.mxu0 0.0
    %3200 = vmatpush1.msra.mxu0 0.0
    %3201 = vmatprep.subr.mxu0 0.0
    %3202 = vmatpush1.msra.mxu0 0.0
    %3203 = vmatprep.subr.mxu0 0.0
    %3204 = vmatpush1.msra.mxu0 0.0
    %3205 = vmatprep.subr.mxu0 0.0
    %3206 = vmatpush1.msra.mxu0 0.0
    %3207 = vmatprep.subr.mxu0 0.0
    %3208 = vmatpush1.msra.mxu0 0.0
    %3209 = vmatprep.subr.mxu0 0.0
    %3210 = vmatpush1.msra.mxu0 0.0
    %3211 = vmatprep.subr.mxu0 0.0
    %3212 = vmatpush1.msra.mxu0 0.0
    %3213 = vmatprep.subr.mxu0 0.0
    %3214 = vmatpush1.msra.mxu0 0.0
    %3215 = vmatprep.subr.mxu0 0.0
    %3216 = vmatpush1.msra.mxu0 0.0
    %3217 = vmatprep.subr.mxu0 0.0
    %3218 = vmatpush1.msra.mxu0 0.0
    %3219 = vmatprep.subr.mxu0 0.0
    %3220 = vmatpush1.msra.mxu0 0.0
    %3221 = vmatprep.subr.mxu0 0.0
    %3222 = vmatpush1.msra.mxu0 0.0
    %3223 = vmatprep.subr.mxu0 0.0
    %3224 = vmatpush1.msra.mxu0 0.0
    %3225 = vmatprep.subr.mxu0 0.0
    %3226 = vmatpush1.msra.mxu0 0.0
    %3227 = vmatprep.subr.mxu0 0.0
    %3228 = vmatpush1.msra.mxu0 0.0
    %3229 = vmatprep.subr.mxu0 0.0
    %3230 = vmatpush1.msra.mxu0 0.0
    %3231 = vmatprep.subr.mxu0 0.0
    %3232 = vmatpush1.msra.mxu0 0.0
    %3233 = vmatprep.subr.mxu0 0.0
    %3234 = vmatpush1.msra.mxu0 0.0
    %3235 = vmatprep.subr.mxu0 0.0
    %3236 = vmatpush1.msra.mxu0 0.0
    %3237 = vmatprep.subr.mxu0 0.0
    %3238 = vmatpush1.msra.mxu0 0.0
    %3239 = vmatprep.subr.mxu0 0.0
    %3240 = vmatpush1.msra.mxu0 0.0
    %3241 = vmatprep.subr.mxu0 0.0
    %3242 = vmatpush1.msra.mxu0 0.0
    %3243 = vmatprep.subr.mxu0 0.0
    %3244 = vmatpush1.msra.mxu0 0.0
    %3245 = vmatprep.subr.mxu0 0.0
    %3246 = vmatpush1.msra.mxu0 0.0
    %3247 = vmatprep.mubr.f32.mxu0 0.0
    %3248 = vmatmul.mubr.f32.gmra.mrb[0].mxu0 %v3101
    %v3249 = vpop.f32.mrb[0].mxu0
    %v3250 = vadd.f32 0.0, %v3249
    %v3251 = vpop.f32.mrb[0].mxu0
    %v3252 = vadd.f32 0.0, %v3251
    %3253 = vmatprep.mubr.f32.mxu0 0.0
    %3254 = vmatmul.mubr.f32.gmra.mrb[0].mxu0 %v3104
    %v3255 = vpop.f32.mrb[0].mxu0
    %v3256 = vadd.f32 0.0, %v3255
    %v3257 = vpop.f32.mrb[0].mxu0
    %v3258 = vadd.f32 0.0, %v3257
    %3259 = vdwg.mxu0
    %3260 = vmatprep.subr.mxu0 %v3073
    %3261 = vmatpush1.msra.mxu0 %v3072
    %3262 = vmatprep.subr.mxu0 %v3081
    %3263 = vmatpush1.msra.mxu0 %v3080
    %3264 = vmatprep.subr.mxu0 %v3089
    %3265 = vmatpush1.msra.mxu0 %v3088
    %3266 = vmatprep.subr.mxu0 %v3097
    %3267 = vmatpush1.msra.mxu0 %v3096
    %3268 = vmatprep.subr.mxu0 0.0
    %3269 = vmatpush1.msra.mxu0 0.0
    %3270 = vmatprep.subr.mxu0 0.0
    %3271 = vmatpush1.msra.mxu0 0.0
    %3272 = vmatprep.subr.mxu0 0.0
    %3273 = vmatpush1.msra.mxu0 0.0
    %3274 = vmatprep.subr.mxu0 0.0
    %3275 = vmatpush1.msra.mxu0 0.0
    %3276 = vmatprep.subr.mxu0 0.0
    %3277 = vmatpush1.msra.mxu0 0.0
    %3278 = vmatprep.subr.mxu0 0.0
    %3279 = vmatpush1.msra.mxu0 0.0
    %3280 = vmatprep.subr.mxu0 0.0
    %3281 = vmatpush1.msra.mxu0 0.0
    %3282 = vmatprep.subr.mxu0 0.0
    %3283 = vmatpush1.msra.mxu0 0.0
    %3284 = vmatprep.subr.mxu0 0.0
    %3285 = vmatpush1.msra.mxu0 0.0
    %3286 = vmatprep.subr.mxu0 0.0
    %3287 = vmatpush1.msra.mxu0 0.0
    %3288 = vmatprep.subr.mxu0 0.0
    %3289 = vmatpush1.msra.mxu0 0.0
    %3290 = vmatprep.subr.mxu0 0.0
    %3291 = vmatpush1.msra.mxu0 0.0
    %3292 = vmatprep.subr.mxu0 0.0
    %3293 = vmatpush1.msra.mxu0 0.0
    %3294 = vmatprep.subr.mxu0 0.0
    %3295 = vmatpush1.msra.mxu0 0.0
    %3296 = vmatprep.subr.mxu0 0.0
    %3297 = vmatpush1.msra.mxu0 0.0
    %3298 = vmatprep.subr.mxu0 0.0
    %3299 = vmatpush1.msra.mxu0 0.0
    %3300 = vmatprep.subr.mxu0 0.0
    %3301 = vmatpush1.msra.mxu0 0.0
    %3302 = vmatprep.subr.mxu0 0.0
    %3303 = vmatpush1.msra.mxu0 0.0
    %3304 = vmatprep.subr.mxu0 0.0
    %3305 = vmatpush1.msra.mxu0 0.0
    %3306 = vmatprep.subr.mxu0 0.0
    %3307 = vmatpush1.msra.mxu0 0.0
    %3308 = vmatprep.subr.mxu0 0.0
    %3309 = vmatpush1.msra.mxu0 0.0
    %3310 = vmatprep.subr.mxu0 0.0
    %3311 = vmatpush1.msra.mxu0 0.0
    %3312 = vmatprep.subr.mxu0 0.0
    %3313 = vmatpush1.msra.mxu0 0.0
    %3314 = vmatprep.subr.mxu0 0.0
    %3315 = vmatpush1.msra.mxu0 0.0
    %3316 = vmatprep.subr.mxu0 0.0
    %3317 = vmatpush1.msra.mxu0 0.0
    %3318 = vmatprep.subr.mxu0 0.0
    %3319 = vmatpush1.msra.mxu0 0.0
    %3320 = vmatprep.subr.mxu0 0.0
    %3321 = vmatpush1.msra.mxu0 0.0
    %3322 = vmatprep.subr.mxu0 0.0
    %3323 = vmatpush1.msra.mxu0 0.0
    %3324 = vmatprep.mubr.f32.mxu0 0.0
    %3325 = vmatmul.mubr.f32.gmra.mrb[0].mxu0 %v3101
    %v3326 = vpop.f32.mrb[0].mxu0
    %v3327 = vadd.f32 0.0, %v3326
    %v3328 = vpop.f32.mrb[0].mxu0
    %v3329 = vadd.f32 0.0, %v3328
    %3330 = vmatprep.mubr.f32.mxu0 0.0
    %3331 = vmatmul.mubr.f32.gmra.mrb[0].mxu0 %v3104
    %v3332 = vpop.f32.mrb[0].mxu0
    %v3333 = vadd.f32 0.0, %v3332
    %v3334 = vpop.f32.mrb[0].mxu0
    %v3335 = vadd.f32 0.0, %v3334
    %3336 = vdwg.mxu0
    %3337 = vmatprep.subr.mxu0 %v3075
    %3338 = vmatpush1.msra.mxu0 %v3074
    %3339 = vmatprep.subr.mxu0 %v3083
    %3340 = vmatpush1.msra.mxu0 %v3082
    %3341 = vmatprep.subr.mxu0 %v3091
    %3342 = vmatpush1.msra.mxu0 %v3090
    %3343 = vmatprep.subr.mxu0 %v3099
    %3344 = vmatpush1.msra.mxu0 %v3098
    %3345 = vmatprep.subr.mxu0 0.0
    %3346 = vmatpush1.msra.mxu0 0.0
    %3347 = vmatprep.subr.mxu0 0.0
    %3348 = vmatpush1.msra.mxu0 0.0
    %3349 = vmatprep.subr.mxu0 0.0
    %3350 = vmatpush1.msra.mxu0 0.0
    %3351 = vmatprep.subr.mxu0 0.0
    %3352 = vmatpush1.msra.mxu0 0.0
    %3353 = vmatprep.subr.mxu0 0.0
    %3354 = vmatpush1.msra.mxu0 0.0
    %3355 = vmatprep.subr.mxu0 0.0
    %3356 = vmatpush1.msra.mxu0 0.0
    %3357 = vmatprep.subr.mxu0 0.0
    %3358 = vmatpush1.msra.mxu0 0.0
    %3359 = vmatprep.subr.mxu0 0.0
    %3360 = vmatpush1.msra.mxu0 0.0
    %3361 = vmatprep.subr.mxu0 0.0
    %3362 = vmatpush1.msra.mxu0 0.0
    %3363 = vmatprep.subr.mxu0 0.0
    %3364 = vmatpush1.msra.mxu0 0.0
    %3365 = vmatprep.subr.mxu0 0.0
    %3366 = vmatpush1.msra.mxu0 0.0
    %3367 = vmatprep.subr.mxu0 0.0
    %3368 = vmatpush1.msra.mxu0 0.0
    %3369 = vmatprep.subr.mxu0 0.0
    %3370 = vmatpush1.msra.mxu0 0.0
    %3371 = vmatprep.subr.mxu0 0.0
    %3372 = vmatpush1.msra.mxu0 0.0
    %3373 = vmatprep.subr.mxu0 0.0
    %3374 = vmatpush1.msra.mxu0 0.0
    %3375 = vmatprep.subr.mxu0 0.0
    %3376 = vmatpush1.msra.mxu0 0.0
    %3377 = vmatprep.subr.mxu0 0.0
    %3378 = vmatpush1.msra.mxu0 0.0
    %3379 = vmatprep.subr.mxu0 0.0
    %3380 = vmatpush1.msra.mxu0 0.0
    %3381 = vmatprep.subr.mxu0 0.0
    %3382 = vmatpush1.msra.mxu0 0.0
    %3383 = vmatprep.subr.mxu0 0.0
    %3384 = vmatpush1.msra.mxu0 0.0
    %3385 = vmatprep.subr.mxu0 0.0
    %3386 = vmatpush1.msra.mxu0 0.0
    %3387 = vmatprep.subr.mxu0 0.0
    %3388 = vmatpush1.msra.mxu0 0.0
    %3389 = vmatprep.subr.mxu0 0.0
    %3390 = vmatpush1.msra.mxu0 0.0
    %3391 = vmatprep.subr.mxu0 0.0
    %3392 = vmatpush1.msra.mxu0 0.0
    %3393 = vmatprep.subr.mxu0 0.0
    %3394 = vmatpush1.msra.mxu0 0.0
    %3395 = vmatprep.subr.mxu0 0.0
    %3396 = vmatpush1.msra.mxu0 0.0
    %3397 = vmatprep.subr.mxu0 0.0
    %3398 = vmatpush1.msra.mxu0 0.0
    %3399 = vmatprep.subr.mxu0 0.0
    %3400 = vmatpush1.msra.mxu0 0.0
    %3401 = vmatprep.mubr.f32.mxu0 0.0
    %3402 = vmatmul.mubr.f32.gmra.mrb[0].mxu0 %v3101
    %v3403 = vpop.f32.mrb[0].mxu0
    %v3404 = vadd.f32 0.0, %v3403
    %v3405 = vpop.f32.mrb[0].mxu0
    %v3406 = vadd.f32 0.0, %v3405
    %3407 = vmatprep.mubr.f32.mxu0 0.0
    %3408 = vmatmul.mubr.f32.gmra.mrb[0].mxu0 %v3104
    %v3409 = vpop.f32.mrb[0].mxu0
    %v3410 = vadd.f32 0.0, %v3409
    %v3411 = vpop.f32.mrb[0].mxu0
    %v3412 = vadd.f32 0.0, %v3411
    %3413 = vdwg.mxu0
    %v3414 = vmax.f32 %v3173, 0.0
    %v3415 = vmax.f32 %v3175, 0.0
    %v3416 = vmax.f32 %v3250, 0.0
    %v3417 = vmax.f32 %v3252, 0.0
    %v3418 = vmax.f32 %v3327, 0.0
    %v3419 = vmax.f32 %v3329, 0.0
    %v3420 = vmax.f32 %v3404, 0.0
    %v3421 = vmax.f32 %v3406, 0.0
    %v3422 = vmax.f32 %v3179, 0.0
    %v3423 = vmax.f32 %v3181, 0.0
    %v3424 = vmax.f32 %v3256, 0.0
    %v3425 = vmax.f32 %v3258, 0.0
    %v3426 = vmax.f32 %v3333, 0.0
    %v3427 = vmax.f32 %v3335, 0.0
    %v3428 = vmax.f32 %v3410, 0.0
    %v3429 = vmax.f32 %v3412, 0.0
    %v3430 = vld [vmem:[#allocation3] sm:$0xff]
    %v3431 = vld [vmem:[#allocation3 + $0x8] sm:$0xff]
    %v3432 = vld [vmem:[#allocation3 + $0x10] sm:$0xff]
    %v3433 = vld [vmem:[#allocation3 + $0x18] sm:$0xff]
    %v3434 = vld [vmem:[#allocation3 + $0x20] sm:$0xff]
    %v3435 = vld [vmem:[#allocation3 + $0x28] sm:$0xff]
    %v3436 = vld [vmem:[#allocation3 + $0x30] sm:$0xff]
    %v3437 = vld [vmem:[#allocation3 + $0x38] sm:$0xff]
    %v3438 = vld [vmem:[#allocation3 + $0x40] sm:$0xff]
    %v3439 = vld [vmem:[#allocation3 + $0x48] sm:$0xff]
    %v3440 = vld [vmem:[#allocation3 + $0x50] sm:$0xff]
    %v3441 = vld [vmem:[#allocation3 + $0x58] sm:$0xff]
    %v3442 = vld [vmem:[#allocation3 + $0x60] sm:$0xff]
    %v3443 = vld [vmem:[#allocation3 + $0x68] sm:$0xff]
    %v3444 = vld [vmem:[#allocation3 + $0x70] sm:$0xff]
    %v3445 = vld [vmem:[#allocation3 + $0x78] sm:$0xff]
    %v3446 = vld [vmem:[#allocation3 + $0x80] sm:$0xff]
    %v3447 = vld [vmem:[#allocation3 + $0x88] sm:$0xff]
    %v3448 = vld [vmem:[#allocation3 + $0x90] sm:$0xff]
    %v3449 = vld [vmem:[#allocation3 + $0x98] sm:$0xff]
    %v3450 = vld [vmem:[#allocation3 + $0xa0] sm:$0xff]
    %v3451 = vld [vmem:[#allocation3 + $0xa8] sm:$0xff]
    %v3452 = vld [vmem:[#allocation3 + $0xb0] sm:$0xff]
    %v3453 = vld [vmem:[#allocation3 + $0xb8] sm:$0xff]
    %v3454 = vld [vmem:[#allocation3 + $0xc0] sm:$0xff]
    %v3455 = vld [vmem:[#allocation3 + $0xc8] sm:$0xff]
    %v3456 = vld [vmem:[#allocation3 + $0xd0] sm:$0xff]
    %v3457 = vld [vmem:[#allocation3 + $0xd8] sm:$0xff]
    %v3458 = vld [vmem:[#allocation3 + $0xe0] sm:$0xff]
    %v3459 = vld [vmem:[#allocation3 + $0xe8] sm:$0xff]
    %v3460 = vld [vmem:[#allocation3 + $0xf0] sm:$0xff]
    %v3461 = vld [vmem:[#allocation3 + $0xf8] sm:$0xff]
    %v3462 = vld [vmem:[#allocation3 + $0x100] sm:$0xff]
    %v3463 = vld [vmem:[#allocation3 + $0x108] sm:$0xff]
    %v3464 = vld [vmem:[#allocation3 + $0x110] sm:$0xff]
    %v3465 = vld [vmem:[#allocation3 + $0x118] sm:$0xff]
    %v3466 = vld [vmem:[#allocation3 + $0x120] sm:$0xff]
    %v3467 = vld [vmem:[#allocation3 + $0x128] sm:$0xff]
    %v3468 = vld [vmem:[#allocation3 + $0x130] sm:$0xff]
    %v3469 = vld [vmem:[#allocation3 + $0x138] sm:$0xff]
    %v3470 = vld [vmem:[#allocation3 + $0x140] sm:$0xff]
    %v3471 = vld [vmem:[#allocation3 + $0x148] sm:$0xff]
    %v3472 = vld [vmem:[#allocation3 + $0x150] sm:$0xff]
    %v3473 = vld [vmem:[#allocation3 + $0x158] sm:$0xff]
    %v3474 = vld [vmem:[#allocation3 + $0x160] sm:$0xff]
    %v3475 = vld [vmem:[#allocation3 + $0x168] sm:$0xff]
    %v3476 = vld [vmem:[#allocation3 + $0x170] sm:$0xff]
    %v3477 = vld [vmem:[#allocation3 + $0x178] sm:$0xff]
    %v3478 = vld [vmem:[#allocation3 + $0x180] sm:$0xff]
    %v3479 = vld [vmem:[#allocation3 + $0x188] sm:$0xff]
    %v3480 = vld [vmem:[#allocation3 + $0x190] sm:$0xff]
    %v3481 = vld [vmem:[#allocation3 + $0x198] sm:$0xff]
    %v3482 = vld [vmem:[#allocation3 + $0x1a0] sm:$0xff]
    %v3483 = vld [vmem:[#allocation3 + $0x1a8] sm:$0xff]
    %v3484 = vld [vmem:[#allocation3 + $0x1b0] sm:$0xff]
    %v3485 = vld [vmem:[#allocation3 + $0x1b8] sm:$0xff]
    %v3486 = vld [vmem:[#allocation3 + $0x1c0] sm:$0xff]
    %v3487 = vld [vmem:[#allocation3 + $0x1c8] sm:$0xff]
    %v3488 = vld [vmem:[#allocation3 + $0x1d0] sm:$0xff]
    %v3489 = vld [vmem:[#allocation3 + $0x1d8] sm:$0xff]
    %v3490 = vld [vmem:[#allocation3 + $0x1e0] sm:$0xff]
    %v3491 = vld [vmem:[#allocation3 + $0x1e8] sm:$0xff]
    %v3492 = vld [vmem:[#allocation3 + $0x1f0] sm:$0xff]
    %v3493 = vld [vmem:[#allocation3 + $0x1f8] sm:$0xff]
    %v3494 = vld [vmem:[#allocation3 + $0x200] sm:$0xff]
    %v3495 = vld [vmem:[#allocation3 + $0x208] sm:$0xff]
    %v3496 = vld [vmem:[#allocation3 + $0x210] sm:$0xff]
    %v3497 = vld [vmem:[#allocation3 + $0x218] sm:$0xff]
    %v3498 = vld [vmem:[#allocation3 + $0x220] sm:$0xff]
    %v3499 = vld [vmem:[#allocation3 + $0x228] sm:$0xff]
    %v3500 = vld [vmem:[#allocation3 + $0x230] sm:$0xff]
    %v3501 = vld [vmem:[#allocation3 + $0x238] sm:$0xff]
    %v3502 = vld [vmem:[#allocation3 + $0x240] sm:$0xff]
    %v3503 = vld [vmem:[#allocation3 + $0x248] sm:$0xff]
    %v3504 = vld [vmem:[#allocation3 + $0x250] sm:$0xff]
    %v3505 = vld [vmem:[#allocation3 + $0x258] sm:$0xff]
    %v3506 = vld [vmem:[#allocation3 + $0x260] sm:$0xff]
    %v3507 = vld [vmem:[#allocation3 + $0x268] sm:$0xff]
    %v3508 = vld [vmem:[#allocation3 + $0x270] sm:$0xff]
    %v3509 = vld [vmem:[#allocation3 + $0x278] sm:$0xff]
    %v3510 = vld [vmem:[#allocation3 + $0x280] sm:$0xff]
    %v3511 = vld [vmem:[#allocation3 + $0x288] sm:$0xff]
    %v3512 = vld [vmem:[#allocation3 + $0x290] sm:$0xff]
    %v3513 = vld [vmem:[#allocation3 + $0x298] sm:$0xff]
    %v3514 = vld [vmem:[#allocation3 + $0x2a0] sm:$0xff]
    %v3515 = vld [vmem:[#allocation3 + $0x2a8] sm:$0xff]
    %v3516 = vld [vmem:[#allocation3 + $0x2b0] sm:$0xff]
    %v3517 = vld [vmem:[#allocation3 + $0x2b8] sm:$0xff]
    %v3518 = vld [vmem:[#allocation3 + $0x2c0] sm:$0xff]
    %v3519 = vld [vmem:[#allocation3 + $0x2c8] sm:$0xff]
    %v3520 = vld [vmem:[#allocation3 + $0x2d0] sm:$0xff]
    %v3521 = vld [vmem:[#allocation3 + $0x2d8] sm:$0xff]
    %v3522 = vld [vmem:[#allocation3 + $0x2e0] sm:$0xff]
    %v3523 = vld [vmem:[#allocation3 + $0x2e8] sm:$0xff]
    %v3524 = vld [vmem:[#allocation3 + $0x2f0] sm:$0xff]
    %v3525 = vld [vmem:[#allocation3 + $0x2f8] sm:$0xff]
    %v3526 = vld [vmem:[#allocation3 + $0x300] sm:$0xff]
    %v3527 = vld [vmem:[#allocation3 + $0x308] sm:$0xff]
    %v3528 = vld [vmem:[#allocation3 + $0x310] sm:$0xff]
    %v3529 = vld [vmem:[#allocation3 + $0x318] sm:$0xff]
    %v3530 = vld [vmem:[#allocation3 + $0x320] sm:$0xff]
    %v3531 = vld [vmem:[#allocation3 + $0x328] sm:$0xff]
    %v3532 = vld [vmem:[#allocation3 + $0x330] sm:$0xff]
    %v3533 = vld [vmem:[#allocation3 + $0x338] sm:$0xff]
    %v3534 = vld [vmem:[#allocation3 + $0x340] sm:$0xff]
    %v3535 = vld [vmem:[#allocation3 + $0x348] sm:$0xff]
    %v3536 = vld [vmem:[#allocation3 + $0x350] sm:$0xff]
    %v3537 = vld [vmem:[#allocation3 + $0x358] sm:$0xff]
    %v3538 = vld [vmem:[#allocation3 + $0x360] sm:$0xff]
    %v3539 = vld [vmem:[#allocation3 + $0x368] sm:$0xff]
    %v3540 = vld [vmem:[#allocation3 + $0x370] sm:$0xff]
    %v3541 = vld [vmem:[#allocation3 + $0x378] sm:$0xff]
    %v3542 = vld [vmem:[#allocation3 + $0x380] sm:$0xff]
    %v3543 = vld [vmem:[#allocation3 + $0x388] sm:$0xff]
    %v3544 = vld [vmem:[#allocation3 + $0x390] sm:$0xff]
    %v3545 = vld [vmem:[#allocation3 + $0x398] sm:$0xff]
    %v3546 = vld [vmem:[#allocation3 + $0x3a0] sm:$0xff]
    %v3547 = vld [vmem:[#allocation3 + $0x3a8] sm:$0xff]
    %v3548 = vld [vmem:[#allocation3 + $0x3b0] sm:$0xff]
    %v3549 = vld [vmem:[#allocation3 + $0x3b8] sm:$0xff]
    %v3550 = vld [vmem:[#allocation3 + $0x3c0] sm:$0xff]
    %v3551 = vld [vmem:[#allocation3 + $0x3c8] sm:$0xff]
    %v3552 = vld [vmem:[#allocation3 + $0x3d0] sm:$0xff]
    %v3553 = vld [vmem:[#allocation3 + $0x3d8] sm:$0xff]
    %v3554 = vld [vmem:[#allocation3 + $0x3e0] sm:$0xff]
    %v3555 = vld [vmem:[#allocation3 + $0x3e8] sm:$0xff]
    %v3556 = vld [vmem:[#allocation3 + $0x3f0] sm:$0xff]
    %v3557 = vld [vmem:[#allocation3 + $0x3f8] sm:$0xff]
    %3558 = vmatprep.subr.mxu0 0.0
    %3559 = vmatpush1.msra.mxu0 %v3430
    %3560 = vmatprep.subr.mxu0 0.0
    %3561 = vmatpush1.msra.mxu0 %v3431
    %3562 = vmatprep.subr.mxu0 0.0
    %3563 = vmatpush1.msra.mxu0 %v3432
    %3564 = vmatprep.subr.mxu0 0.0
    %3565 = vmatpush1.msra.mxu0 %v3433
    %3566 = vmatprep.subr.mxu0 0.0
    %3567 = vmatpush1.msra.mxu0 %v3434
    %3568 = vmatprep.subr.mxu0 0.0
    %3569 = vmatpush1.msra.mxu0 %v3435
    %3570 = vmatprep.subr.mxu0 0.0
    %3571 = vmatpush1.msra.mxu0 %v3436
    %3572 = vmatprep.subr.mxu0 0.0
    %3573 = vmatpush1.msra.mxu0 %v3437
    %3574 = vmatprep.subr.mxu0 0.0
    %3575 = vmatpush1.msra.mxu0 %v3438
    %3576 = vmatprep.subr.mxu0 0.0
    %3577 = vmatpush1.msra.mxu0 %v3439
    %3578 = vmatprep.subr.mxu0 0.0
    %3579 = vmatpush1.msra.mxu0 %v3440
    %3580 = vmatprep.subr.mxu0 0.0
    %3581 = vmatpush1.msra.mxu0 %v3441
    %3582 = vmatprep.subr.mxu0 0.0
    %3583 = vmatpush1.msra.mxu0 %v3442
    %3584 = vmatprep.subr.mxu0 0.0
    %3585 = vmatpush1.msra.mxu0 %v3443
    %3586 = vmatprep.subr.mxu0 0.0
    %3587 = vmatpush1.msra.mxu0 %v3444
    %3588 = vmatprep.subr.mxu0 0.0
    %3589 = vmatpush1.msra.mxu0 %v3445
    %3590 = vmatprep.subr.mxu0 0.0
    %3591 = vmatpush1.msra.mxu0 %v3446
    %3592 = vmatprep.subr.mxu0 0.0
    %3593 = vmatpush1.msra.mxu0 %v3447
    %3594 = vmatprep.subr.mxu0 0.0
    %3595 = vmatpush1.msra.mxu0 %v3448
    %3596 = vmatprep.subr.mxu0 0.0
    %3597 = vmatpush1.msra.mxu0 %v3449
    %3598 = vmatprep.subr.mxu0 0.0
    %3599 = vmatpush1.msra.mxu0 %v3450
    %3600 = vmatprep.subr.mxu0 0.0
    %3601 = vmatpush1.msra.mxu0 %v3451
    %3602 = vmatprep.subr.mxu0 0.0
    %3603 = vmatpush1.msra.mxu0 %v3452
    %3604 = vmatprep.subr.mxu0 0.0
    %3605 = vmatpush1.msra.mxu0 %v3453
    %3606 = vmatprep.subr.mxu0 0.0
    %3607 = vmatpush1.msra.mxu0 %v3454
    %3608 = vmatprep.subr.mxu0 0.0
    %3609 = vmatpush1.msra.mxu0 %v3455
    %3610 = vmatprep.subr.mxu0 0.0
    %3611 = vmatpush1.msra.mxu0 %v3456
    %3612 = vmatprep.subr.mxu0 0.0
    %3613 = vmatpush1.msra.mxu0 %v3457
    %3614 = vmatprep.subr.mxu0 0.0
    %3615 = vmatpush1.msra.mxu0 %v3458
    %3616 = vmatprep.subr.mxu0 0.0
    %3617 = vmatpush1.msra.mxu0 %v3459
    %3618 = vmatprep.subr.mxu0 0.0
    %3619 = vmatpush1.msra.mxu0 %v3460
    %3620 = vmatprep.subr.mxu0 0.0
    %3621 = vmatpush1.msra.mxu0 %v3461
    %3622 = vmatprep.mubr.f32.mxu0 %v3415
    %3623 = vmatmul.mubr.f32.gmra.mrb[0].mxu0 %v3414
    %v3624 = vpop.f32.mrb[0].mxu0
    %v3625 = vadd.f32 %v3059, %v3624
    %v3626 = vpop.f32.mrb[0].mxu0
    %3627 = vmatprep.mubr.f32.mxu0 %v3423
    %3628 = vmatmul.mubr.f32.gmra.mrb[0].mxu0 %v3422
    %v3629 = vpop.f32.mrb[0].mxu0
    %v3630 = vadd.f32 %v3060, %v3629
    %v3631 = vpop.f32.mrb[0].mxu0
    %3632 = vdwg.mxu0
    %3633 = vmatprep.subr.mxu0 0.0
    %3634 = vmatpush1.msra.mxu0 %v3462
    %3635 = vmatprep.subr.mxu0 0.0
    %3636 = vmatpush1.msra.mxu0 %v3463
    %3637 = vmatprep.subr.mxu0 0.0
    %3638 = vmatpush1.msra.mxu0 %v3464
    %3639 = vmatprep.subr.mxu0 0.0
    %3640 = vmatpush1.msra.mxu0 %v3465
    %3641 = vmatprep.subr.mxu0 0.0
    %3642 = vmatpush1.msra.mxu0 %v3466
    %3643 = vmatprep.subr.mxu0 0.0
    %3644 = vmatpush1.msra.mxu0 %v3467
    %3645 = vmatprep.subr.mxu0 0.0
    %3646 = vmatpush1.msra.mxu0 %v3468
    %3647 = vmatprep.subr.mxu0 0.0
    %3648 = vmatpush1.msra.mxu0 %v3469
    %3649 = vmatprep.subr.mxu0 0.0
    %3650 = vmatpush1.msra.mxu0 %v3470
    %3651 = vmatprep.subr.mxu0 0.0
    %3652 = vmatpush1.msra.mxu0 %v3471
    %3653 = vmatprep.subr.mxu0 0.0
    %3654 = vmatpush1.msra.mxu0 %v3472
    %3655 = vmatprep.subr.mxu0 0.0
    %3656 = vmatpush1.msra.mxu0 %v3473
    %3657 = vmatprep.subr.mxu0 0.0
    %3658 = vmatpush1.msra.mxu0 %v3474
    %3659 = vmatprep.subr.mxu0 0.0
    %3660 = vmatpush1.msra.mxu0 %v3475
    %3661 = vmatprep.subr.mxu0 0.0
    %3662 = vmatpush1.msra.mxu0 %v3476
    %3663 = vmatprep.subr.mxu0 0.0
    %3664 = vmatpush1.msra.mxu0 %v3477
    %3665 = vmatprep.subr.mxu0 0.0
    %3666 = vmatpush1.msra.mxu0 %v3478
    %3667 = vmatprep.subr.mxu0 0.0
    %3668 = vmatpush1.msra.mxu0 %v3479
    %3669 = vmatprep.subr.mxu0 0.0
    %3670 = vmatpush1.msra.mxu0 %v3480
    %3671 = vmatprep.subr.mxu0 0.0
    %3672 = vmatpush1.msra.mxu0 %v3481
    %3673 = vmatprep.subr.mxu0 0.0
    %3674 = vmatpush1.msra.mxu0 %v3482
    %3675 = vmatprep.subr.mxu0 0.0
    %3676 = vmatpush1.msra.mxu0 %v3483
    %3677 = vmatprep.subr.mxu0 0.0
    %3678 = vmatpush1.msra.mxu0 %v3484
    %3679 = vmatprep.subr.mxu0 0.0
    %3680 = vmatpush1.msra.mxu0 %v3485
    %3681 = vmatprep.subr.mxu0 0.0
    %3682 = vmatpush1.msra.mxu0 %v3486
    %3683 = vmatprep.subr.mxu0 0.0
    %3684 = vmatpush1.msra.mxu0 %v3487
    %3685 = vmatprep.subr.mxu0 0.0
    %3686 = vmatpush1.msra.mxu0 %v3488
    %3687 = vmatprep.subr.mxu0 0.0
    %3688 = vmatpush1.msra.mxu0 %v3489
    %3689 = vmatprep.subr.mxu0 0.0
    %3690 = vmatpush1.msra.mxu0 %v3490
    %3691 = vmatprep.subr.mxu0 0.0
    %3692 = vmatpush1.msra.mxu0 %v3491
    %3693 = vmatprep.subr.mxu0 0.0
    %3694 = vmatpush1.msra.mxu0 %v3492
    %3695 = vmatprep.subr.mxu0 0.0
    %3696 = vmatpush1.msra.mxu0 %v3493
    %3697 = vmatprep.mubr.f32.mxu0 %v3417
    %3698 = vmatmul.mubr.f32.gmra.mrb[0].mxu0 %v3416
    %v3699 = vpop.f32.mrb[0].mxu0
    %v3700 = vadd.f32 %v3625, %v3699
    %v3701 = vpop.f32.mrb[0].mxu0
    %3702 = vmatprep.mubr.f32.mxu0 %v3425
    %3703 = vmatmul.mubr.f32.gmra.mrb[0].mxu0 %v3424
    %v3704 = vpop.f32.mrb[0].mxu0
    %v3705 = vadd.f32 %v3630, %v3704
    %v3706 = vpop.f32.mrb[0].mxu0
    %3707 = vdwg.mxu0
    %3708 = vmatprep.subr.mxu0 0.0
    %3709 = vmatpush1.msra.mxu0 %v3494
    %3710 = vmatprep.subr.mxu0 0.0
    %3711 = vmatpush1.msra.mxu0 %v3495
    %3712 = vmatprep.subr.mxu0 0.0
    %3713 = vmatpush1.msra.mxu0 %v3496
    %3714 = vmatprep.subr.mxu0 0.0
    %3715 = vmatpush1.msra.mxu0 %v3497
    %3716 = vmatprep.subr.mxu0 0.0
    %3717 = vmatpush1.msra.mxu0 %v3498
    %3718 = vmatprep.subr.mxu0 0.0
    %3719 = vmatpush1.msra.mxu0 %v3499
    %3720 = vmatprep.subr.mxu0 0.0
    %3721 = vmatpush1.msra.mxu0 %v3500
    %3722 = vmatprep.subr.mxu0 0.0
    %3723 = vmatpush1.msra.mxu0 %v3501
    %3724 = vmatprep.subr.mxu0 0.0
    %3725 = vmatpush1.msra.mxu0 %v3502
    %3726 = vmatprep.subr.mxu0 0.0
    %3727 = vmatpush1.msra.mxu0 %v3503
    %3728 = vmatprep.subr.mxu0 0.0
    %3729 = vmatpush1.msra.mxu0 %v3504
    %3730 = vmatprep.subr.mxu0 0.0
    %3731 = vmatpush1.msra.mxu0 %v3505
    %3732 = vmatprep.subr.mxu0 0.0
    %3733 = vmatpush1.msra.mxu0 %v3506
    %3734 = vmatprep.subr.mxu0 0.0
    %3735 = vmatpush1.msra.mxu0 %v3507
    %3736 = vmatprep.subr.mxu0 0.0
    %3737 = vmatpush1.msra.mxu0 %v3508
    %3738 = vmatprep.subr.mxu0 0.0
    %3739 = vmatpush1.msra.mxu0 %v3509
    %3740 = vmatprep.subr.mxu0 0.0
    %3741 = vmatpush1.msra.mxu0 %v3510
    %3742 = vmatprep.subr.mxu0 0.0
    %3743 = vmatpush1.msra.mxu0 %v3511
    %3744 = vmatprep.subr.mxu0 0.0
    %3745 = vmatpush1.msra.mxu0 %v3512
    %3746 = vmatprep.subr.mxu0 0.0
    %3747 = vmatpush1.msra.mxu0 %v3513
    %3748 = vmatprep.subr.mxu0 0.0
    %3749 = vmatpush1.msra.mxu0 %v3514
    %3750 = vmatprep.subr.mxu0 0.0
    %3751 = vmatpush1.msra.mxu0 %v3515
    %3752 = vmatprep.subr.mxu0 0.0
    %3753 = vmatpush1.msra.mxu0 %v3516
    %3754 = vmatprep.subr.mxu0 0.0
    %3755 = vmatpush1.msra.mxu0 %v3517
    %3756 = vmatprep.subr.mxu0 0.0
    %3757 = vmatpush1.msra.mxu0 %v3518
    %3758 = vmatprep.subr.mxu0 0.0
    %3759 = vmatpush1.msra.mxu0 %v3519
    %3760 = vmatprep.subr.mxu0 0.0
    %3761 = vmatpush1.msra.mxu0 %v3520
    %3762 = vmatprep.subr.mxu0 0.0
    %3763 = vmatpush1.msra.mxu0 %v3521
    %3764 = vmatprep.subr.mxu0 0.0
    %3765 = vmatpush1.msra.mxu0 %v3522
    %3766 = vmatprep.subr.mxu0 0.0
    %3767 = vmatpush1.msra.mxu0 %v3523
    %3768 = vmatprep.subr.mxu0 0.0
    %3769 = vmatpush1.msra.mxu0 %v3524
    %3770 = vmatprep.subr.mxu0 0.0
    %3771 = vmatpush1.msra.mxu0 %v3525
    %3772 = vmatprep.mubr.f32.mxu0 %v3419
    %3773 = vmatmul.mubr.f32.gmra.mrb[0].mxu0 %v3418
    %v3774 = vpop.f32.mrb[0].mxu0
    %v3775 = vadd.f32 %v3700, %v3774
    %v3776 = vpop.f32.mrb[0].mxu0
    %3777 = vmatprep.mubr.f32.mxu0 %v3427
    %3778 = vmatmul.mubr.f32.gmra.mrb[0].mxu0 %v3426
    %v3779 = vpop.f32.mrb[0].mxu0
    %v3780 = vadd.f32 %v3705, %v3779
    %v3781 = vpop.f32.mrb[0].mxu0
    %3782 = vdwg.mxu0
    %3783 = vmatprep.subr.mxu0 0.0
    %3784 = vmatpush1.msra.mxu0 %v3526
    %3785 = vmatprep.subr.mxu0 0.0
    %3786 = vmatpush1.msra.mxu0 %v3527
    %3787 = vmatprep.subr.mxu0 0.0
    %3788 = vmatpush1.msra.mxu0 %v3528
    %3789 = vmatprep.subr.mxu0 0.0
    %3790 = vmatpush1.msra.mxu0 %v3529
    %3791 = vmatprep.subr.mxu0 0.0
    %3792 = vmatpush1.msra.mxu0 %v3530
    %3793 = vmatprep.subr.mxu0 0.0
    %3794 = vmatpush1.msra.mxu0 %v3531
    %3795 = vmatprep.subr.mxu0 0.0
    %3796 = vmatpush1.msra.mxu0 %v3532
    %3797 = vmatprep.subr.mxu0 0.0
    %3798 = vmatpush1.msra.mxu0 %v3533
    %3799 = vmatprep.subr.mxu0 0.0
    %3800 = vmatpush1.msra.mxu0 %v3534
    %3801 = vmatprep.subr.mxu0 0.0
    %3802 = vmatpush1.msra.mxu0 %v3535
    %3803 = vmatprep.subr.mxu0 0.0
    %3804 = vmatpush1.msra.mxu0 %v3536
    %3805 = vmatprep.subr.mxu0 0.0
    %3806 = vmatpush1.msra.mxu0 %v3537
    %3807 = vmatprep.subr.mxu0 0.0
    %3808 = vmatpush1.msra.mxu0 %v3538
    %3809 = vmatprep.subr.mxu0 0.0
    %3810 = vmatpush1.msra.mxu0 %v3539
    %3811 = vmatprep.subr.mxu0 0.0
    %3812 = vmatpush1.msra.mxu0 %v3540
    %3813 = vmatprep.subr.mxu0 0.0
    %3814 = vmatpush1.msra.mxu0 %v3541
    %3815 = vmatprep.subr.mxu0 0.0
    %3816 = vmatpush1.msra.mxu0 %v3542
    %3817 = vmatprep.subr.mxu0 0.0
    %3818 = vmatpush1.msra.mxu0 %v3543
    %3819 = vmatprep.subr.mxu0 0.0
    %3820 = vmatpush1.msra.mxu0 %v3544
    %3821 = vmatprep.subr.mxu0 0.0
    %3822 = vmatpush1.msra.mxu0 %v3545
    %3823 = vmatprep.subr.mxu0 0.0
    %3824 = vmatpush1.msra.mxu0 %v3546
    %3825 = vmatprep.subr.mxu0 0.0
    %3826 = vmatpush1.msra.mxu0 %v3547
    %3827 = vmatprep.subr.mxu0 0.0
    %3828 = vmatpush1.msra.mxu0 %v3548
    %3829 = vmatprep.subr.mxu0 0.0
    %3830 = vmatpush1.msra.mxu0 %v3549
    %3831 = vmatprep.subr.mxu0 0.0
    %3832 = vmatpush1.msra.mxu0 %v3550
    %3833 = vmatprep.subr.mxu0 0.0
    %3834 = vmatpush1.msra.mxu0 %v3551
    %3835 = vmatprep.subr.mxu0 0.0
    %3836 = vmatpush1.msra.mxu0 %v3552
    %3837 = vmatprep.subr.mxu0 0.0
    %3838 = vmatpush1.msra.mxu0 %v3553
    %3839 = vmatprep.subr.mxu0 0.0
    %3840 = vmatpush1.msra.mxu0 %v3554
    %3841 = vmatprep.subr.mxu0 0.0
    %3842 = vmatpush1.msra.mxu0 %v3555
    %3843 = vmatprep.subr.mxu0 0.0
    %3844 = vmatpush1.msra.mxu0 %v3556
    %3845 = vmatprep.subr.mxu0 0.0
    %3846 = vmatpush1.msra.mxu0 %v3557
    %3847 = vmatprep.mubr.f32.mxu0 %v3421
    %3848 = vmatmul.mubr.f32.gmra.mrb[0].mxu0 %v3420
    %v3849 = vpop.f32.mrb[0].mxu0
    %v3850 = vadd.f32 %v3775, %v3849
    %v3851 = vpop.f32.mrb[0].mxu0
    %3852 = vmatprep.mubr.f32.mxu0 %v3429
    %3853 = vmatmul.mubr.f32.gmra.mrb[0].mxu0 %v3428
    %v3854 = vpop.f32.mrb[0].mxu0
    %v3855 = vadd.f32 %v3780, %v3854
    %v3856 = vpop.f32.mrb[0].mxu0
    %3857 = vdwg.mxu0
    %v3858 = vsel %vm470, %v3850, 0.0
    %3859 = vadd.xlane.f32.xlu0 %v3858
    %v3860 = vpop.xlane.xlu0 %3859
    %v3861 = vsel %vm470, %v3855, 0.0
    %3862 = vadd.xlane.f32.xlu0 %v3861
    %v3863 = vpop.xlane.xlu0 %3862
    %v3864 = vmul.f32 %v3860, %v3040
    %v3865 = vmul.f32 %v3863, %v3040
    %v3866 = vsub.f32 %v3850, %v3864
    %v3867 = vsub.f32 %v3855, %v3865
    %v3868 = vmul.f32 %v3866, %v3866
    %v3869 = vmul.f32 %v3867, %v3867
    %v3870 = vsel %vm470, %v3868, 0.0
    %3871 = vadd.xlane.f32.xlu0 %v3870
    %v3872 = vpop.xlane.xlu0 %3871
    %v3873 = vsel %vm470, %v3869, 0.0
    %3874 = vadd.xlane.f32.xlu0 %v3873
    %v3875 = vpop.xlane.xlu0 %3874
    %v3876 = vmul.f32 %v3872, %v3040
    %v3877 = vmul.f32 %v3875, %v3040
    %v3878 = vadd.f32 %v3876, 1e-05
    %v3879 = vadd.f32 %v3877, 1e-05
    %v3880 = vrsqrt.pop %v3878
    %v3881 = vrsqrt.pop %v3879
    %v3882 = vmul.f32 %v3866, %v3880
    %v3883 = vmul.f32 %v3867, %v3881
    %3884 = vst.msk [vmem:[#allocation5] sm:$0xff] %vm470, %v3882
    %3885 = vst.msk [vmem:[#allocation5 + $0x8] sm:$0xff] %vm470, %v3883
    // Predicated region
    $region82: #{_encoder_layer.1} parent=1 // pred_check
      _
    $region83: #{_encoder_layer.1} parent=1 // pred_check_branch
      %3887 = sbr.rel (0) target = $region85
    $region84: #{_encoder_layer.1} parent=1 // pred_region
      %s3889 = ssub.s32 256, 256
      %3890 = vsyncadd [#allocation6], %s3889
      %s3891 = sshll.u32 [#allocation5], 4
      %s3892 = int_to_ptr.vmem [resolvable:$true] %s3891
      %3897 = dma.vmem_to_hbm [thread:$0]  %s3892, 256, %s5, [#allocation6], 128, 128, 8
    $region85: #{_encoder_layer.1} parent=1 // pred_fallthru
      _
    // Predicated region
    $region86: #{_encoder_layer.1} parent=1 // pred_check
      _
    $region87: #{_encoder_layer.1} parent=1 // pred_check_branch
      %3899 = sbr.rel (0) target = $region89
    $region88: #{_encoder_layer.1} parent=1 // pred_region
      _
    $region89: #{_encoder_layer.1} parent=1 // pred_fallthru
      _
    // Predicated region
    $region90: #{_encoder_layer.1} parent=1 // pred_check
      _
    $region91: #{_encoder_layer.1} parent=1 // pred_check_branch
      %3901 = sbr.rel (0) target = $region93
    $region92: #{_encoder_layer.1} parent=1 // pred_region
      %3902 = dma.done [#allocation6], 256
    $region93: #{_encoder_layer.1} parent=1 // pred_fallthru
      _
    // Predicated region
    $region94: #{_encoder_layer.1} parent=1 // pred_check
      _
    $region95: #{_encoder_layer.1} parent=1 // pred_check_branch
      %3904 = sbr.rel (0) target = $region97
    $region96: #{_encoder_layer.1} parent=1 // pred_region
      _
    $region97: #{_encoder_layer.1} parent=1 // pred_fallthru
      _
    %3905 = vsyncpa [#allocation6], 1
  %3906 = vsyncmov [#allocation4]
  %s3907 = vpop.sfrf %3906
  %p3908 = scmp.eq.s32.totalorder %s3907, 0
  %p3909 = pneg %p3908
  %3911 = shalt.err (%p3909)
  %s3912 = scalar_lea.sflag [#allocation4], 1
  %3913 = vsyncmov %s3912
  %s3914 = vpop.sfrf %3913
  %p3915 = scmp.eq.s32.totalorder %s3914, 0
  %p3916 = pneg %p3915
  %3918 = shalt.err (%p3916)

</llo_original>
